<compile_context>
chip_gen: v6e
topology: v6e:2x2x1
jax: 0.10.0
libtpu: 0.0.40
codegen_flags: <defaults>
</compile_context>

<pallas_src>
import math
import numpy as np
import jax
import jax.numpy as jnp
from jax import lax
from jax.experimental import pallas as pl
from jax.experimental.pallas import tpu as pltpu

LANE = 128
SUBLANE = 8


def _round_up(x, m):
    return ((x + m - 1) // m) * m


def _cdiv(a, b):
    return -(-a // b)


# ----------------------------------------------------------------------------
# Hardware / feature probes
# ----------------------------------------------------------------------------
def _vmem_capacity_bytes():
    """Per-core VMEM capacity; conservative 64 MiB (v7x) fallback."""
    try:
        cap = int(pltpu.get_tpu_info().vmem_capacity_bytes)
        if cap > 0:
            return cap
    except Exception:
        pass
    return 64 << 20


_BUFFERED_ONE = None


def _buffered_one_supported():
    """Probe whether pipeline_mode=pl.Buffered(1) works end-to-end."""
    global _BUFFERED_ONE
    if _BUFFERED_ONE is not None:
        return _BUFFERED_ONE
    try:
        w_spec = pl.BlockSpec((8, 128), lambda i: (0, 0),
                              pipeline_mode=pl.Buffered(1))

        def _probe(w_ref, o_ref):
            o_ref[...] = w_ref[...] + 1.0

        out = pl.pallas_call(
            _probe,
            out_shape=jax.ShapeDtypeStruct((16, 128), jnp.float32),
            grid=(2,),
            in_specs=[w_spec],
            out_specs=pl.BlockSpec((8, 128), lambda i: (i, 0)),
        )(jnp.zeros((8, 128), jnp.float32))
        jax.block_until_ready(out)
        _BUFFERED_ONE = True
    except Exception:
        _BUFFERED_ONE = False
    return _BUFFERED_ONE


def _const_spec(shape, single_buffer):
    """BlockSpec for a grid-invariant operand (weights / bias)."""
    zeros = (0,) * len(shape)
    idx = lambda bi, ti: zeros
    if single_buffer:
        try:
            return pl.BlockSpec(shape, idx, pipeline_mode=pl.Buffered(1))
        except Exception:
            pass
    return pl.BlockSpec(shape, idx)


# ----------------------------------------------------------------------------
# Kernel factory
# ----------------------------------------------------------------------------
def _make_lstm_kernel(*, has_proj, fuse_fc, n_sub, t_total, t_chunk, ragged):
    """Build an LSTM-layer kernel.

    has_proj : compute gx = x @ W_ih + b in-kernel (layers >= 1).  Layer 0 gets
               gx precomputed in XLA (tiny feature dim) and streamed as `x`.
    fuse_fc  : last layer -> no sequence output, fused Linear(H,1) on final h.
    n_sub    : number of independent batch sub-tiles interleaved per step.
    ragged   : time axis is zero-padded; mask h/c updates for t >= t_total.
    """

    def kernel(*refs):
        it = iter(refs)
        x_ref = next(it)
        wih_ref = next(it) if has_proj else None
        b_ref = next(it) if has_proj else None
        whh_ref = next(it)
        wfc_ref = next(it) if fuse_fc else None
        bfc_ref = next(it) if fuse_fc else None
        y_ref = None if fuse_fc else next(it)
        out_ref = next(it) if fuse_fc else None
        h_scr = next(it)
        c_scr = next(it)
        gx_scr = next(it) if has_proj else None

        ti = pl.program_id(1)
        Tc = x_ref.shape[0]
        Bt, Hp = h_scr.shape
        Bh = Bt // n_sub

        @pl.when(ti == 0)
        def _init():
            h_scr[...] = jnp.zeros_like(h_scr)
            c_scr[...] = jnp.zeros_like(c_scr)

        if has_proj:
            # Hoisted chunk-wide input projection: one bf16 MXU matmul, f32 acc,
            # bias folded in once (not re-broadcast per step).
            D = x_ref.shape[2]
            x_flat = x_ref[...].reshape(Tc * Bt, D)
            gx_scr[...] = (
                jnp.dot(x_flat, wih_ref[...], preferred_element_type=jnp.float32)
                + b_ref[...]
            )

        def sigmoid(v):
            # Exact sigmoid via one tanh on the EUP (avoids exp + divide).
            return 0.5 * jnp.tanh(0.5 * v) + 0.5

        def step(t, carry):
            # Interleave n_sub independent batch sub-tiles so the scheduler can
            # hide one tile's MXU/EUP latency behind the other's.
            for s in range(n_sub):
                b0 = s * Bh
                if has_proj:
                    off = pl.multiple_of(t * Bt + b0, Bh)
                    g_x = gx_scr[pl.ds(off, Bh), :]
                else:
                    g_x = x_ref[t, pl.ds(b0, Bh), :].astype(jnp.float32)
                h_prev = h_scr[pl.ds(b0, Bh), :]
                c_prev = c_scr[pl.ds(b0, Bh), :]
                gates = g_x + jnp.dot(
                    h_prev.astype(whh_ref.dtype), whh_ref[...],
                    preferred_element_type=jnp.float32)
                i_g = sigmoid(gates[:, 0 * Hp:1 * Hp])
                f_g = sigmoid(gates[:, 1 * Hp:2 * Hp])
                g_g = jnp.tanh(gates[:, 2 * Hp:3 * Hp])
                o_g = sigmoid(gates[:, 3 * Hp:4 * Hp])
                c_new = f_g * c_prev + i_g * g_g
                h_new = o_g * jnp.tanh(c_new)
                if ragged:
                    valid = (ti * t_chunk + t) < t_total
                    c_new = jnp.where(valid, c_new, c_prev)
                    h_new = jnp.where(valid, h_new, h_prev)
                c_scr[pl.ds(b0, Bh), :] = c_new
                h_scr[pl.ds(b0, Bh), :] = h_new
                if y_ref is not None:
                    y_ref[t, pl.ds(b0, Bh), :] = h_new.astype(y_ref.dtype)
            return carry

        unroll = Tc if (Tc * n_sub) <= 16 else 4
        lax.fori_loop(0, Tc, step, 0, unroll=unroll)

        if fuse_fc:
            @pl.when(ti == pl.num_programs(1) - 1)
            def _finalize():
                out_ref[...] = (
                    jnp.dot(h_scr[...], wfc_ref[...],
                            preferred_element_type=jnp.float32)
                    + bfc_ref[...]
                ).astype(out_ref.dtype)

    return kernel


# ----------------------------------------------------------------------------
# VMEM estimates / tiling heuristics
# ----------------------------------------------------------------------------
def _layer_vmem_estimate(tc, Bt, Hp, x_width, *, has_proj, emit_y, fuse_fc, wbuf):
    G = 4 * Hp
    est = 2 * (2 * tc * Bt * x_width)              # bf16 x blocks, double-buffered
    if emit_y:
        est += 2 * (2 * tc * Bt * Hp)              # bf16 y blocks, double-buffered
    est += 2 * 4 * Bt * Hp                         # h/c scratch (f32)
    if has_proj:
        est += 4 * tc * Bt * G                     # gx scratch (f32)
        est += wbuf * (2 * x_width * G + 4 * G)    # W_ih (bf16) + bias (f32)
    est += wbuf * 2 * Hp * G                       # W_hh (bf16)
    if fuse_fc:
        est += wbuf * (4 * Hp + 4) + 2 * 4 * Bt    # fc weights + out block
    return est


def _max_time_chunk(T, Bt, Hp, x_width, *, has_proj, emit_y, fuse_fc, wbuf, budget):
    best = 1
    for tc in range(1, min(T, 1024) + 1):
        if _layer_vmem_estimate(tc, Bt, Hp, x_width, has_proj=has_proj,
                                emit_y=emit_y, fuse_fc=fuse_fc,
                                wbuf=wbuf) <= budget:
            best = tc
        else:
            break
    return best


def _choose_batch_tile(Bp):
    """Largest tile (<=256) dividing Bp: fills MXU rows; Bp>=512 still gives
    n_b>=2 so the 'parallel' batch axis shards across v7x's two TensorCores."""
    for cand in (256, 128, 64, 32, 16, 8):
        if Bp % cand == 0:
            return cand
    return Bp


# ----------------------------------------------------------------------------
# Pallas-call wrapper for one layer
# ----------------------------------------------------------------------------
def _lstm_layer_call(seq, layer, *, has_proj, fuse_fc, n_sub, t_total, Bt, tc,
                     w_fc=None, b_fc=None, wbuf=2, vmem_cap=None):
    """seq: (n_b, T_pad, Bt, width) bf16, batch-tile-major.

    Returns (n_b, T_pad, Bt, Hp) bf16 hidden sequence, or (n_b, Bt, 1) f32 if
    fuse_fc (last layer with the fused final Linear).
    """
    n_b, T_pad, Bt_, width = seq.shape
    assert Bt_ == Bt and T_pad % tc == 0
    n_t = T_pad // tc
    Hp = layer["w_hh"].shape[0]
    G = 4 * Hp
    ragged = (T_pad != t_total)
    single_w = (wbuf == 1)

    kernel = _make_lstm_kernel(has_proj=has_proj, fuse_fc=fuse_fc, n_sub=n_sub,
                               t_total=t_total, t_chunk=tc, ragged=ragged)

    in_specs = [pl.BlockSpec((pl.Squeezed(), tc, Bt, width),
                             lambda bi, ti: (bi, ti, 0, 0))]
    inputs = [seq]
    if has_proj:
        in_specs += [_const_spec((width, G), single_w), _const_spec((1, G), single_w)]
        inputs += [layer["w_ih"], layer["b"]]
    in_specs += [_const_spec((Hp, G), single_w)]
    inputs += [layer["w_hh"]]
    if fuse_fc:
        in_specs += [_const_spec((Hp, 1), single_w), _const_spec((1, 1), single_w)]
        inputs += [w_fc, b_fc]

    scratch_shapes = [
        pltpu.VMEM((Bt, Hp), jnp.float32),   # h
        pltpu.VMEM((Bt, Hp), jnp.float32),   # c
    ]
    if has_proj:
        scratch_shapes.append(pltpu.VMEM((tc * Bt, G), jnp.float32))  # gx

    if fuse_fc:
        out_shape = jax.ShapeDtypeStruct((n_b, Bt, 1), jnp.float32)
        out_specs = pl.BlockSpec((pl.Squeezed(), Bt, 1),
                                 lambda bi, ti: (bi, 0, 0))
    else:
        out_shape = jax.ShapeDtypeStruct((n_b, T_pad, Bt, Hp), jnp.bfloat16)
        out_specs = pl.BlockSpec((pl.Squeezed(), tc, Bt, Hp),
                                 lambda bi, ti: (bi, ti, 0, 0))

    est = _layer_vmem_estimate(tc, Bt, Hp, width, has_proj=has_proj,
                               emit_y=not fuse_fc, fuse_fc=fuse_fc, wbuf=wbuf)
    cap = vmem_cap if vmem_cap is not None else _vmem_capacity_bytes()
    # Always set an explicit limit (v5e default is only 16 MiB); never exceed
    # ~90% of the physical per-core capacity (64 MiB on v7x).
    vmem_limit = int(min(max(int(est * 1.5), 32 << 20), int(0.9 * cap)))

    cparams = pltpu.CompilerParams(
        dimension_semantics=("parallel", "arbitrary"),
        vmem_limit_bytes=vmem_limit,
    )

    return pl.pallas_call(
        kernel,
        out_shape=out_shape,
        grid_spec=pltpu.PrefetchScalarGridSpec(
            num_scalar_prefetch=0,
            grid=(n_b, n_t),
            in_specs=in_specs,
            out_specs=out_specs,
            scratch_shapes=scratch_shapes,
        ),
        compiler_params=cparams,
    )(*inputs)


# ----------------------------------------------------------------------------
# Parameters (PyTorch-equivalent) + TPU-friendly padding / dtype casts
# ----------------------------------------------------------------------------
def init_params(key, input_size, hidden_size, num_layers):
    """Shapes equivalent to nn.LSTM / nn.Linear, stored transposed for
    right-multiplication. Gate order [i, f, g, o]."""
    params = {"layers": [], "hidden_size": hidden_size}
    H = hidden_size
    bound = 1.0 / math.sqrt(H)
    for layer in range(num_layers):
        d_in = input_size if layer == 0 else H
        key, k1, k2, k3, k4 = jax.random.split(key, 5)
        w_ih = jax.random.uniform(k1, (d_in, 4 * H), jnp.float32, -bound, bound)
        w_hh = jax.random.uniform(k2, (H, 4 * H), jnp.float32, -bound, bound)
        b_ih = jax.random.uniform(k3, (4 * H,), jnp.float32, -bound, bound)
        b_hh = jax.random.uniform(k4, (4 * H,), jnp.float32, -bound, bound)
        params["layers"].append(
            {"w_ih": w_ih, "w_hh": w_hh, "b": (b_ih + b_hh).reshape(1, 4 * H)}
        )
    key, k5, k6 = jax.random.split(key, 3)
    params["w_fc"] = jax.random.uniform(k5, (H, 1), jnp.float32, -bound, bound)
    params["b_fc"] = jax.random.uniform(k6, (1, 1), jnp.float32, -bound, bound)
    return params


def _pad_gate_cols(w, H, Hp):
    """(R, 4H) -> (R, 4*Hp): each gate block zero-padded to Hp lanes."""
    if Hp == H:
        return w
    blocks = [
        jnp.pad(w[:, g * H:(g + 1) * H], ((0, 0), (0, Hp - H))) for g in range(4)
    ]
    return jnp.concatenate(blocks, axis=1)


def pad_params_for_tpu(params):
    """Zero-pad hidden dim to a multiple of 128 (lane-dense gate slices / state)
    and cast the in-kernel matmul weights to bf16 (f32 accumulation in-kernel).
    Exact padding: padded gate columns are 0 => padded h,c stay exactly 0."""
    H = params["hidden_size"]
    Hp = _round_up(H, LANE)
    padded = {"hidden_size": H, "hidden_padded": Hp, "layers": []}
    for li, layer in enumerate(params["layers"]):
        w_ih, w_hh, b = layer["w_ih"], layer["w_hh"], layer["b"]
        if li > 0 and Hp != H:
            w_ih = jnp.pad(w_ih, ((0, Hp - H), (0, 0)))   # padded inputs are zero
        w_ih = _pad_gate_cols(w_ih, H, Hp)
        w_hh = _pad_gate_cols(jnp.pad(w_hh, ((0, Hp - H), (0, 0))), H, Hp)
        b = _pad_gate_cols(b, H, Hp)
        # Layer 0's input projection is done in XLA (f32); other layers' W_ih is
        # used in-kernel against a bf16 activation stream -> store bf16.
        if li > 0:
            w_ih = w_ih.astype(jnp.bfloat16)
        padded["layers"].append({
            "w_ih": w_ih,
            "w_hh": w_hh.astype(jnp.bfloat16),
            "b": b.astype(jnp.float32),
        })
    padded["w_fc"] = jnp.pad(params["w_fc"], ((0, Hp - H), (0, 0)))
    padded["b_fc"] = params["b_fc"]
    return padded


# ----------------------------------------------------------------------------
# Full forward
# ----------------------------------------------------------------------------
def lstm_model_forward(padded_params, x_btd, *, time_chunk_cap=None):
    """x: (B, T, input_size) batch-first -> (B, 1) (matches the PyTorch module)."""
    x = jnp.asarray(x_btd, jnp.float32)
    B, T, _ = x.shape
    layers = padded_params["layers"]
    n_layers = len(layers)
    Hp = padded_params["hidden_padded"]
    G = 4 * Hp

    # Pad batch to full sublanes so (B, .) matmuls / stores are not masked.
    Bp = _round_up(max(B, SUBLANE), SUBLANE)
    if Bp != B:
        x = jnp.pad(x, ((0, Bp - B), (0, 0), (0, 0)))

    Bt = _choose_batch_tile(Bp)
    n_b = Bp // Bt
    n_sub = 2 if (Bt % (2 * SUBLANE) == 0) else 1

    cap = _vmem_capacity_bytes()
    wbuf = 1 if _buffered_one_supported() else 2
    budget = max(4 << 20, int(0.35 * cap))        # generation-aware chunk budget

    def role(li):
        return li > 0, li == n_layers - 1          # (has_proj, fuse_fc)

    # Common time chunk: the tightest per-layer maximum under the VMEM budget,
    # then balanced over n_t chunks (no divisibility requirement on T).
    tc_max = T
    for li in range(n_layers):
        has_proj, fuse_fc = role(li)
        width = Hp if has_proj else G
        tc_max = min(tc_max, _max_time_chunk(
            T, Bt, Hp, width, has_proj=has_proj, emit_y=not fuse_fc,
            fuse_fc=fuse_fc, wbuf=wbuf, budget=budget))
    if time_chunk_cap is not None:
        tc_max = max(1, min(tc_max, int(time_chunk_cap)))
    n_t = _cdiv(T, tc_max)
    tc = _cdiv(T, n_t)
    T_pad = n_t * tc

    # Layer-0 input projection hoisted to one XLA matmul (tiny K=input_size would
    # otherwise force masked loads / a relayout / near-zero MXU fill inside the
    # serial kernel); gx0 streamed in bf16.
    l0 = layers[0]
    gx0 = jnp.einsum("btd,dg->btg", x, l0["w_ih"]) + l0["b"]   # (Bp, T, G) f32

    def to_tiles(a):
        # (Bp, T, W) -> (n_b, T_pad, Bt, W): batch-tile-major so every streamed
        # block is a single contiguous HBM segment.
        W = a.shape[-1]
        a = jnp.pad(a, ((0, 0), (0, T_pad - T), (0, 0)))
        return a.reshape(n_b, Bt, T_pad, W).transpose(0, 2, 1, 3)

    seq = to_tiles(gx0).astype(jnp.bfloat16)

    out = None
    for li, layer in enumerate(layers):
        has_proj, fuse_fc = role(li)
        res = _lstm_layer_call(
            seq, layer, has_proj=has_proj, fuse_fc=fuse_fc, n_sub=n_sub,
            t_total=T, Bt=Bt, tc=tc,
            w_fc=padded_params["w_fc"] if fuse_fc else None,
            b_fc=padded_params["b_fc"] if fuse_fc else None,
            wbuf=wbuf, vmem_cap=cap)
        if fuse_fc:
            out = res
        else:
            seq = res
    return out.reshape(Bp, 1)[:B]


# ----------------------------------------------------------------------------
# Pure-JAX reference (unpadded f32 params) for correctness
# ----------------------------------------------------------------------------
def lstm_model_reference(params, x_btd):
    x = jnp.asarray(x_btd, jnp.float32)
    B = x.shape[0]
    seq = x
    for layer in params["layers"]:
        H = layer["w_hh"].shape[0]
        h = jnp.zeros((B, H), jnp.float32)
        c = jnp.zeros((B, H), jnp.float32)
        outs = []
        for t in range(seq.shape[1]):
            gates = seq[:, t, :] @ layer["w_ih"] + h @ layer["w_hh"] + layer["b"]
            i_g = jax.nn.sigmoid(gates[:, 0 * H:1 * H])
            f_g = jax.nn.sigmoid(gates[:, 1 * H:2 * H])
            g_g = jnp.tanh(gates[:, 2 * H:3 * H])
            o_g = jax.nn.sigmoid(gates[:, 3 * H:4 * H])
            c = f_g * c + i_g * g_g
            h = o_g * jnp.tanh(c)
            outs.append(h)
        seq = jnp.stack(outs, axis=1)
    return seq[:, -1, :] @ params["w_fc"] + params["b_fc"]


# ----------------------------------------------------------------------------
if __name__ == "__main__":
    INPUT_SIZE, HIDDEN, LAYERS = 4, 32, 2

    key = jax.random.PRNGKey(0)
    key_params, key_x1, key_x2 = jax.random.split(key, 3)
    raw_params = init_params(key_params, INPUT_SIZE, HIDDEN, LAYERS)
    padded_params = pad_params_for_tpu(raw_params)

    # bf16 activation/weight storage (f32 accumulation) => relaxed tolerance.
    TOL = dict(rtol=2e-2, atol=2e-2)

    # Config 1: small batch, even T (single time chunk, single sub-tile).
    x1 = jax.random.normal(key_x1, (2, 8, INPUT_SIZE), jnp.float32)
    out1 = jax.block_until_ready(lstm_model_forward(padded_params, x1))
    assert out1.shape == (2, 1)
    ref1 = lstm_model_reference(raw_params, x1)
    np.testing.assert_allclose(np.asarray(out1), np.asarray(ref1), **TOL)

    # Config 2: exercises the ragged-T path (T=7, forced time_chunk=3) and the
    # interleaved two-sub-tile recurrence (Bp=16 -> Bt=16, n_sub=2).
    x2 = jax.random.normal(key_x2, (16, 7, INPUT_SIZE), jnp.float32)
    out2 = jax.block_until_ready(
        lstm_model_forward(padded_params, x2, time_chunk_cap=3))
    assert out2.shape == (16, 1)
    ref2 = lstm_model_reference(raw_params, x2)
    np.testing.assert_allclose(np.asarray(out2), np.asarray(ref2), **TOL)

    print("KERNEL_OK")
</pallas_src>

<mosaic_0001>
module attributes {stable_mosaic.version = 11 : i64} {
  func.func @_probe(%arg0: i32, %arg1: memref<8x128xf32, #tpu.memory_space<vmem>>, %arg2: memref<8x128xf32, #tpu.memory_space<vmem>>) attributes {dimension_semantics = [#tpu.dimension_semantics<arbitrary>], iteration_bounds = array<i64: 2>, scalar_prefetch = 0 : i64, scratch_operands = 0 : i64, tpu.core_type = #tpu.core_type<tc>, window_params = [{pipeline_mode = #tpu.pipeline_mode<synchronous>, transform_indices = @transform_0, window_bounds = array<i64: 8, 128>}, {transform_indices = @transform_1, window_bounds = array<i64: 8, 128>}]} {
    %c0 = arith.constant 0 : index
    %c0_0 = arith.constant 0 : index
    %0 = vector.load %arg1[%c0, %c0_0] : memref<8x128xf32, #tpu.memory_space<vmem>>, vector<8x128xf32>
    %cst = arith.constant 1.000000e+00 : f32
    %1 = vector.broadcast %cst : f32 to vector<8x128xf32>
    %2 = arith.addf %0, %1 : vector<8x128xf32>
    %c0_1 = arith.constant 0 : index
    %c0_2 = arith.constant 0 : index
    %3 = vector.load %arg2[%c0_1, %c0_2] : memref<8x128xf32, #tpu.memory_space<vmem>>, vector<8x128xf32>
    tpu.vector_store %arg2[%c0_1, %c0_2], %2 {strides = array<i32>} : memref<8x128xf32, #tpu.memory_space<vmem>>, vector<8x128xf32>,
    return
  }
  func.func @transform_0(%arg0: i32) -> (i32, i32) {
    %c0_i32 = arith.constant 0 : i32
    %c0_i32_0 = arith.constant 0 : i32
    %c0_i32_1 = arith.constant 0 : i32
    return %c0_i32, %c0_i32_0 : i32, i32
  }
  func.func @transform_1(%arg0: i32) -> (i32, i32) {
    %c0_i32 = arith.constant 0 : i32
    %c0_i32_0 = arith.constant 0 : i32
    return %arg0, %c0_i32 : i32, i32
  }
}

module attributes {stable_mosaic.version = 11 : i64} {
  func.func @kernel(%arg0: i32, %arg1: i32, %arg2: memref<1x8x8x512xbf16, #tpu.memory_space<vmem>>, %arg3: memref<128x512xbf16, #tpu.memory_space<vmem>>, %arg4: memref<1x8x8x128xbf16, #tpu.memory_space<vmem>>, %arg5: memref<8x128xf32, #tpu.memory_space<vmem>>, %arg6: memref<8x128xf32, #tpu.memory_space<vmem>>) attributes {dimension_semantics = [#tpu.dimension_semantics<parallel>, #tpu.dimension_semantics<arbitrary>], iteration_bounds = array<i64: 1, 1>, scalar_prefetch = 0 : i64, scratch_operands = 2 : i64, tpu.core_type = #tpu.core_type<tc>, window_params = [{transform_indices = @transform_0, window_bounds = array<i64: 1, 8, 8, 512>}, {pipeline_mode = #tpu.pipeline_mode<synchronous>, transform_indices = @transform_1, window_bounds = array<i64: 128, 512>}, {transform_indices = @transform_2, window_bounds = array<i64: 1, 8, 8, 128>}]} {
    %c0_i32 = arith.constant 0 : i32
    %0 = arith.cmpi eq, %arg1, %c0_i32 : i32
    %1 = arith.extui %0 : i1 to i32
    %c0_i32_0 = arith.constant 0 : i32
    %2 = arith.cmpi ne, %1, %c0_i32_0 : i32
    scf.if %2 {
      %cst_208 = arith.constant 0.000000e+00 : f32
      %387 = vector.broadcast %cst_208 : f32 to vector<8x128xf32>
      %c0_209 = arith.constant 0 : index
      %c0_210 = arith.constant 0 : index
      %388 = vector.load %arg5[%c0_209, %c0_210] : memref<8x128xf32, #tpu.memory_space<vmem>>, vector<8x128xf32>
      tpu.vector_store %arg5[%c0_209, %c0_210], %387 {strides = array<i32>} : memref<8x128xf32, #tpu.memory_space<vmem>>, vector<8x128xf32>,
      %cst_211 = arith.constant 0.000000e+00 : f32
      %389 = vector.broadcast %cst_211 : f32 to vector<8x128xf32>
      %c0_212 = arith.constant 0 : index
      %c0_213 = arith.constant 0 : index
      %390 = vector.load %arg6[%c0_212, %c0_213] : memref<8x128xf32, #tpu.memory_space<vmem>>, vector<8x128xf32>
      tpu.vector_store %arg6[%c0_212, %c0_213], %389 {strides = array<i32>} : memref<8x128xf32, #tpu.memory_space<vmem>>, vector<8x128xf32>,
    } else {
    }
    %c0_i32_1 = arith.constant 0 : i32
    %c0 = arith.constant 0 : index
    %3 = arith.index_cast %c0_i32_1 : i32 to index
    %c0_2 = arith.constant 0 : index
    %c0_3 = arith.constant 0 : index
    %4 = vector.load %arg2[%c0, %3, %c0_2, %c0_3] : memref<1x8x8x512xbf16, #tpu.memory_space<vmem>>, vector<1x1x8x512xbf16>
    %5 = vector.shape_cast %4 : vector<1x1x8x512xbf16> to vector<8x512xbf16>
    %6 = arith.extf %5 : vector<8x512xbf16> to vector<8x512xf32>
    %c0_4 = arith.constant 0 : index
    %c0_5 = arith.constant 0 : index
    %7 = vector.load %arg5[%c0_4, %c0_5] : memref<8x128xf32, #tpu.memory_space<vmem>>, vector<8x128xf32>
    %c0_6 = arith.constant 0 : index
    %c0_7 = arith.constant 0 : index
    %8 = vector.load %arg6[%c0_6, %c0_7] : memref<8x128xf32, #tpu.memory_space<vmem>>, vector<8x128xf32>
    %9 = arith.truncf %7 : vector<8x128xf32> to vector<8x128xbf16>
    %c0_8 = arith.constant 0 : index
    %c0_9 = arith.constant 0 : index
    %10 = vector.load %arg3[%c0_8, %c0_9] : memref<128x512xbf16, #tpu.memory_space<vmem>>, vector<128x512xbf16>
    %cst = arith.constant dense<0.000000e+00> : vector<8x512xf32>
    %11 = tpu.matmul %9, %10, %cst {dimension_numbers = #tpu.dot_dimension_numbers<[1], [0], [0], [1], [0, 0, 1, 1], [], []>} : vector<8x128xbf16>, vector<128x512xbf16>, vector<8x512xf32> -> vector<8x512xf32>
    %12 = arith.addf %6, %11 : vector<8x512xf32>
    %13 = vector.extract_strided_slice %12 {offsets = [0, 0], sizes = [8, 128], strides = [1, 1]} : vector<8x512xf32> to vector<8x128xf32>
    %cst_10 = arith.constant 5.000000e-01 : f32
    %14 = vector.broadcast %cst_10 : f32 to vector<8x128xf32>
    %15 = arith.mulf %14, %13 : vector<8x128xf32>
    %16 = math.tanh %15 : vector<8x128xf32>
    %cst_11 = arith.constant 5.000000e-01 : f32
    %17 = vector.broadcast %cst_11 : f32 to vector<8x128xf32>
    %18 = arith.mulf %17, %16 : vector<8x128xf32>
    %cst_12 = arith.constant 5.000000e-01 : f32
    %19 = vector.broadcast %cst_12 : f32 to vector<8x128xf32>
    %20 = arith.addf %18, %19 : vector<8x128xf32>
    %21 = vector.extract_strided_slice %12 {offsets = [0, 128], sizes = [8, 128], strides = [1, 1]} : vector<8x512xf32> to vector<8x128xf32>
    %cst_13 = arith.constant 5.000000e-01 : f32
    %22 = vector.broadcast %cst_13 : f32 to vector<8x128xf32>
    %23 = arith.mulf %22, %21 : vector<8x128xf32>
    %24 = math.tanh %23 : vector<8x128xf32>
    %cst_14 = arith.constant 5.000000e-01 : f32
    %25 = vector.broadcast %cst_14 : f32 to vector<8x128xf32>
    %26 = arith.mulf %25, %24 : vector<8x128xf32>
    %cst_15 = arith.constant 5.000000e-01 : f32
    %27 = vector.broadcast %cst_15 : f32 to vector<8x128xf32>
    %28 = arith.addf %26, %27 : vector<8x128xf32>
    %29 = vector.extract_strided_slice %12 {offsets = [0, 256], sizes = [8, 128], strides = [1, 1]} : vector<8x512xf32> to vector<8x128xf32>
    %30 = math.tanh %29 : vector<8x128xf32>
    %31 = vector.extract_strided_slice %12 {offsets = [0, 384], sizes = [8, 128], strides = [1, 1]} : vector<8x512xf32> to vector<8x128xf32>
    %cst_16 = arith.constant 5.000000e-01 : f32
    %32 = vector.broadcast %cst_16 : f32 to vector<8x128xf32>
    %33 = arith.mulf %32, %31 : vector<8x128xf32>
    %34 = math.tanh %33 : vector<8x128xf32>
    %cst_17 = arith.constant 5.000000e-01 : f32
    %35 = vector.broadcast %cst_17 : f32 to vector<8x128xf32>
    %36 = arith.mulf %35, %34 : vector<8x128xf32>
    %cst_18 = arith.constant 5.000000e-01 : f32
    %37 = vector.broadcast %cst_18 : f32 to vector<8x128xf32>
    %38 = arith.addf %36, %37 : vector<8x128xf32>
    %39 = arith.mulf %28, %8 : vector<8x128xf32>
    %40 = arith.mulf %20, %30 : vector<8x128xf32>
    %41 = arith.addf %39, %40 : vector<8x128xf32>
    %42 = math.tanh %41 : vector<8x128xf32>
    %43 = arith.mulf %38, %42 : vector<8x128xf32>
    %c0_19 = arith.constant 0 : index
    %c0_20 = arith.constant 0 : index
    %44 = vector.load %arg6[%c0_19, %c0_20] : memref<8x128xf32, #tpu.memory_space<vmem>>, vector<8x128xf32>
    tpu.vector_store %arg6[%c0_19, %c0_20], %41 {strides = array<i32>} : memref<8x128xf32, #tpu.memory_space<vmem>>, vector<8x128xf32>,
    %c0_21 = arith.constant 0 : index
    %c0_22 = arith.constant 0 : index
    %45 = vector.load %arg5[%c0_21, %c0_22] : memref<8x128xf32, #tpu.memory_space<vmem>>, vector<8x128xf32>
    tpu.vector_store %arg5[%c0_21, %c0_22], %43 {strides = array<i32>} : memref<8x128xf32, #tpu.memory_space<vmem>>, vector<8x128xf32>,
    %46 = arith.truncf %43 : vector<8x128xf32> to vector<8x128xbf16>
    %c0_23 = arith.constant 0 : index
    %47 = arith.index_cast %c0_i32_1 : i32 to index
    %c0_24 = arith.constant 0 : index
    %c0_25 = arith.constant 0 : index
    %48 = vector.load %arg4[%c0_23, %47, %c0_24, %c0_25] : memref<1x8x8x128xbf16, #tpu.memory_space<vmem>>, vector<1x1x8x128xbf16>
    %49 = vector.shape_cast %48 : vector<1x1x8x128xbf16> to vector<8x128xbf16>
    %50 = vector.shape_cast %46 : vector<8x128xbf16> to vector<1x1x8x128xbf16>
    tpu.vector_store %arg4[%c0_23, %47, %c0_24, %c0_25], %50 {strides = array<i32>} : memref<1x8x8x128xbf16, #tpu.memory_space<vmem>>, vector<1x1x8x128xbf16>,
    %c1_i32 = arith.constant 1 : i32
    %c0_26 = arith.constant 0 : index
    %51 = arith.index_cast %c1_i32 : i32 to index
    %c0_27 = arith.constant 0 : index
    %c0_28 = arith.constant 0 : index
    %52 = vector.load %arg2[%c0_26, %51, %c0_27, %c0_28] : memref<1x8x8x512xbf16, #tpu.memory_space<vmem>>, vector<1x1x8x512xbf16>
    %53 = vector.shape_cast %52 : vector<1x1x8x512xbf16> to vector<8x512xbf16>
    %54 = arith.extf %53 : vector<8x512xbf16> to vector<8x512xf32>
    %c0_29 = arith.constant 0 : index
    %c0_30 = arith.constant 0 : index
    %55 = vector.load %arg5[%c0_29, %c0_30] : memref<8x128xf32, #tpu.memory_space<vmem>>, vector<8x128xf32>
    %c0_31 = arith.constant 0 : index
    %c0_32 = arith.constant 0 : index
    %56 = vector.load %arg6[%c0_31, %c0_32] : memref<8x128xf32, #tpu.memory_space<vmem>>, vector<8x128xf32>
    %57 = arith.truncf %55 : vector<8x128xf32> to vector<8x128xbf16>
    %c0_33 = arith.constant 0 : index
    %c0_34 = arith.constant 0 : index
    %58 = vector.load %arg3[%c0_33, %c0_34] : memref<128x512xbf16, #tpu.memory_space<vmem>>, vector<128x512xbf16>
    %cst_35 = arith.constant dense<0.000000e+00> : vector<8x512xf32>
    %59 = tpu.matmul %57, %58, %cst_35 {dimension_numbers = #tpu.dot_dimension_numbers<[1], [0], [0], [1], [0, 0, 1, 1], [], []>} : vector<8x128xbf16>, vector<128x512xbf16>, vector<8x512xf32> -> vector<8x512xf32>
    %60 = arith.addf %54, %59 : vector<8x512xf32>
    %61 = vector.extract_strided_slice %60 {offsets = [0, 0], sizes = [8, 128], strides = [1, 1]} : vector<8x512xf32> to vector<8x128xf32>
    %cst_36 = arith.constant 5.000000e-01 : f32
    %62 = vector.broadcast %cst_36 : f32 to vector<8x128xf32>
    %63 = arith.mulf %62, %61 : vector<8x128xf32>
    %64 = math.tanh %63 : vector<8x128xf32>
    %cst_37 = arith.constant 5.000000e-01 : f32
    %65 = vector.broadcast %cst_37 : f32 to vector<8x128xf32>
    %66 = arith.mulf %65, %64 : vector<8x128xf32>
    %cst_38 = arith.constant 5.000000e-01 : f32
    %67 = vector.broadcast %cst_38 : f32 to vector<8x128xf32>
    %68 = arith.addf %66, %67 : vector<8x128xf32>
    %69 = vector.extract_strided_slice %60 {offsets = [0, 128], sizes = [8, 128], strides = [1, 1]} : vector<8x512xf32> to vector<8x128xf32>
    %cst_39 = arith.constant 5.000000e-01 : f32
    %70 = vector.broadcast %cst_39 : f32 to vector<8x128xf32>
    %71 = arith.mulf %70, %69 : vector<8x128xf32>
    %72 = math.tanh %71 : vector<8x128xf32>
    %cst_40 = arith.constant 5.000000e-01 : f32
    %73 = vector.broadcast %cst_40 : f32 to vector<8x128xf32>
    %74 = arith.mulf %73, %72 : vector<8x128xf32>
    %cst_41 = arith.constant 5.000000e-01 : f32
    %75 = vector.broadcast %cst_41 : f32 to vector<8x128xf32>
    %76 = arith.addf %74, %75 : vector<8x128xf32>
    %77 = vector.extract_strided_slice %60 {offsets = [0, 256], sizes = [8, 128], strides = [1, 1]} : vector<8x512xf32> to vector<8x128xf32>
    %78 = math.tanh %77 : vector<8x128xf32>
    %79 = vector.extract_strided_slice %60 {offsets = [0, 384], sizes = [8, 128], strides = [1, 1]} : vector<8x512xf32> to vector<8x128xf32>
    %cst_42 = arith.constant 5.000000e-01 : f32
    %80 = vector.broadcast %cst_42 : f32 to vector<8x128xf32>
    %81 = arith.mulf %80, %79 : vector<8x128xf32>
    %82 = math.tanh %81 : vector<8x128xf32>
    %cst_43 = arith.constant 5.000000e-01 : f32
    %83 = vector.broadcast %cst_43 : f32 to vector<8x128xf32>
    %84 = arith.mulf %83, %82 : vector<8x128xf32>
    %cst_44 = arith.constant 5.000000e-01 : f32
    %85 = vector.broadcast %cst_44 : f32 to vector<8x128xf32>
    %86 = arith.addf %84, %85 : vector<8x128xf32>
    %87 = arith.mulf %76, %56 : vector<8x128xf32>
    %88 = arith.mulf %68, %78 : vector<8x128xf32>
    %89 = arith.addf %87, %88 : vector<8x128xf32>
    %90 = math.tanh %89 : vector<8x128xf32>
    %91 = arith.mulf %86, %90 : vector<8x128xf32>
    %c0_45 = arith.constant 0 : index
    %c0_46 = arith.constant 0 : index
    %92 = vector.load %arg6[%c0_45, %c0_46] : memref<8x128xf32, #tpu.memory_space<vmem>>, vector<8x128xf32>
    tpu.vector_store %arg6[%c0_45, %c0_46], %89 {strides = array<i32>} : memref<8x128xf32, #tpu.memory_space<vmem>>, vector<8x128xf32>,
    %c0_47 = arith.constant 0 : index
    %c0_48 = arith.constant 0 : index
    %93 = vector.load %arg5[%c0_47, %c0_48] : memref<8x128xf32, #tpu.memory_space<vmem>>, vector<8x128xf32>
    tpu.vector_store %arg5[%c0_47, %c0_48], %91 {strides = array<i32>} : memref<8x128xf32, #tpu.memory_space<vmem>>, vector<8x128xf32>,
    %94 = arith.truncf %91 : vector<8x128xf32> to vector<8x128xbf16>
    %c0_49 = arith.constant 0 : index
    %95 = arith.index_cast %c1_i32 : i32 to index
    %c0_50 = arith.constant 0 : index
    %c0_51 = arith.constant 0 : index
    %96 = vector.load %arg4[%c0_49, %95, %c0_50, %c0_51] : memref<1x8x8x128xbf16, #tpu.memory_space<vmem>>, vector<1x1x8x128xbf16>
    %97 = vector.shape_cast %96 : vector<1x1x8x128xbf16> to vector<8x128xbf16>
    %98 = vector.shape_cast %94 : vector<8x128xbf16> to vector<1x1x8x128xbf16>
    tpu.vector_store %arg4[%c0_49, %95, %c0_50, %c0_51], %98 {strides = array<i32>} : memref<1x8x8x128xbf16, #tpu.memory_space<vmem>>, vector<1x1x8x128xbf16>,
    %c2_i32 = arith.constant 2 : i32
    %c0_52 = arith.constant 0 : index
    %99 = arith.index_cast %c2_i32 : i32 to index
    %c0_53 = arith.constant 0 : index
    %c0_54 = arith.constant 0 : index
    %100 = vector.load %arg2[%c0_52, %99, %c0_53, %c0_54] : memref<1x8x8x512xbf16, #tpu.memory_space<vmem>>, vector<1x1x8x512xbf16>
    %101 = vector.shape_cast %100 : vector<1x1x8x512xbf16> to vector<8x512xbf16>
    %102 = arith.extf %101 : vector<8x512xbf16> to vector<8x512xf32>
    %c0_55 = arith.constant 0 : index
    %c0_56 = arith.constant 0 : index
    %103 = vector.load %arg5[%c0_55, %c0_56] : memref<8x128xf32, #tpu.memory_space<vmem>>, vector<8x128xf32>
    %c0_57 = arith.constant 0 : index
    %c0_58 = arith.constant 0 : index
    %104 = vector.load %arg6[%c0_57, %c0_58] : memref<8x128xf32, #tpu.memory_space<vmem>>, vector<8x128xf32>
    %105 = arith.truncf %103 : vector<8x128xf32> to vector<8x128xbf16>
    %c0_59 = arith.constant 0 : index
    %c0_60 = arith.constant 0 : index
    %106 = vector.load %arg3[%c0_59, %c0_60] : memref<128x512xbf16, #tpu.memory_space<vmem>>, vector<128x512xbf16>
    %cst_61 = arith.constant dense<0.000000e+00> : vector<8x512xf32>
    %107 = tpu.matmul %105, %106, %cst_61 {dimension_numbers = #tpu.dot_dimension_numbers<[1], [0], [0], [1], [0, 0, 1, 1], [], []>} : vector<8x128xbf16>, vector<128x512xbf16>, vector<8x512xf32> -> vector<8x512xf32>
    %108 = arith.addf %102, %107 : vector<8x512xf32>
    %109 = vector.extract_strided_slice %108 {offsets = [0, 0], sizes = [8, 128], strides = [1, 1]} : vector<8x512xf32> to vector<8x128xf32>
    %cst_62 = arith.constant 5.000000e-01 : f32
    %110 = vector.broadcast %cst_62 : f32 to vector<8x128xf32>
    %111 = arith.mulf %110, %109 : vector<8x128xf32>
    %112 = math.tanh %111 : vector<8x128xf32>
    %cst_63 = arith.constant 5.000000e-01 : f32
    %113 = vector.broadcast %cst_63 : f32 to vector<8x128xf32>
    %114 = arith.mulf %113, %112 : vector<8x128xf32>
    %cst_64 = arith.constant 5.000000e-01 : f32
    %115 = vector.broadcast %cst_64 : f32 to vector<8x128xf32>
    %116 = arith.addf %114, %115 : vector<8x128xf32>
    %117 = vector.extract_strided_slice %108 {offsets = [0, 128], sizes = [8, 128], strides = [1, 1]} : vector<8x512xf32> to vector<8x128xf32>
    %cst_65 = arith.constant 5.000000e-01 : f32
    %118 = vector.broadcast %cst_65 : f32 to vector<8x128xf32>
    %119 = arith.mulf %118, %117 : vector<8x128xf32>
    %120 = math.tanh %119 : vector<8x128xf32>
    %cst_66 = arith.constant 5.000000e-01 : f32
    %121 = vector.broadcast %cst_66 : f32 to vector<8x128xf32>
    %122 = arith.mulf %121, %120 : vector<8x128xf32>
    %cst_67 = arith.constant 5.000000e-01 : f32
    %123 = vector.broadcast %cst_67 : f32 to vector<8x128xf32>
    %124 = arith.addf %122, %123 : vector<8x128xf32>
    %125 = vector.extract_strided_slice %108 {offsets = [0, 256], sizes = [8, 128], strides = [1, 1]} : vector<8x512xf32> to vector<8x128xf32>
    %126 = math.tanh %125 : vector<8x128xf32>
    %127 = vector.extract_strided_slice %108 {offsets = [0, 384], sizes = [8, 128], strides = [1, 1]} : vector<8x512xf32> to vector<8x128xf32>
    %cst_68 = arith.constant 5.000000e-01 : f32
    %128 = vector.broadcast %cst_68 : f32 to vector<8x128xf32>
    %129 = arith.mulf %128, %127 : vector<8x128xf32>
    %130 = math.tanh %129 : vector<8x128xf32>
    %cst_69 = arith.constant 5.000000e-01 : f32
    %131 = vector.broadcast %cst_69 : f32 to vector<8x128xf32>
    %132 = arith.mulf %131, %130 : vector<8x128xf32>
    %cst_70 = arith.constant 5.000000e-01 : f32
    %133 = vector.broadcast %cst_70 : f32 to vector<8x128xf32>
    %134 = arith.addf %132, %133 : vector<8x128xf32>
    %135 = arith.mulf %124, %104 : vector<8x128xf32>
    %136 = arith.mulf %116, %126 : vector<8x128xf32>
    %137 = arith.addf %135, %136 : vector<8x128xf32>
    %138 = math.tanh %137 : vector<8x128xf32>
    %139 = arith.mulf %134, %138 : vector<8x128xf32>
    %c0_71 = arith.constant 0 : index
    %c0_72 = arith.constant 0 : index
    %140 = vector.load %arg6[%c0_71, %c0_72] : memref<8x128xf32, #tpu.memory_space<vmem>>, vector<8x128xf32>
    tpu.vector_store %arg6[%c0_71, %c0_72], %137 {strides = array<i32>} : memref<8x128xf32, #tpu.memory_space<vmem>>, vector<8x128xf32>,
    %c0_73 = arith.constant 0 : index
    %c0_74 = arith.constant 0 : index
    %141 = vector.load %arg5[%c0_73, %c0_74] : memref<8x128xf32, #tpu.memory_space<vmem>>, vector<8x128xf32>
    tpu.vector_store %arg5[%c0_73, %c0_74], %139 {strides = array<i32>} : memref<8x128xf32, #tpu.memory_space<vmem>>, vector<8x128xf32>,
    %142 = arith.truncf %139 : vector<8x128xf32> to vector<8x128xbf16>
    %c0_75 = arith.constant 0 : index
    %143 = arith.index_cast %c2_i32 : i32 to index
    %c0_76 = arith.constant 0 : index
    %c0_77 = arith.constant 0 : index
    %144 = vector.load %arg4[%c0_75, %143, %c0_76, %c0_77] : memref<1x8x8x128xbf16, #tpu.memory_space<vmem>>, vector<1x1x8x128xbf16>
    %145 = vector.shape_cast %144 : vector<1x1x8x128xbf16> to vector<8x128xbf16>
    %146 = vector.shape_cast %142 : vector<8x128xbf16> to vector<1x1x8x128xbf16>
    tpu.vector_store %arg4[%c0_75, %143, %c0_76, %c0_77], %146 {strides = array<i32>} : memref<1x8x8x128xbf16, #tpu.memory_space<vmem>>, vector<1x1x8x128xbf16>,
    %c3_i32 = arith.constant 3 : i32
    %c0_78 = arith.constant 0 : index
    %147 = arith.index_cast %c3_i32 : i32 to index
    %c0_79 = arith.constant 0 : index
    %c0_80 = arith.constant 0 : index
    %148 = vector.load %arg2[%c0_78, %147, %c0_79, %c0_80] : memref<1x8x8x512xbf16, #tpu.memory_space<vmem>>, vector<1x1x8x512xbf16>
    %149 = vector.shape_cast %148 : vector<1x1x8x512xbf16> to vector<8x512xbf16>
    %150 = arith.extf %149 : vector<8x512xbf16> to vector<8x512xf32>
    %c0_81 = arith.constant 0 : index
    %c0_82 = arith.constant 0 : index
    %151 = vector.load %arg5[%c0_81, %c0_82] : memref<8x128xf32, #tpu.memory_space<vmem>>, vector<8x128xf32>
    %c0_83 = arith.constant 0 : index
    %c0_84 = arith.constant 0 : index
    %152 = vector.load %arg6[%c0_83, %c0_84] : memref<8x128xf32, #tpu.memory_space<vmem>>, vector<8x128xf32>
    %153 = arith.truncf %151 : vector<8x128xf32> to vector<8x128xbf16>
    %c0_85 = arith.constant 0 : index
    %c0_86 = arith.constant 0 : index
    %154 = vector.load %arg3[%c0_85, %c0_86] : memref<128x512xbf16, #tpu.memory_space<vmem>>, vector<128x512xbf16>
    %cst_87 = arith.constant dense<0.000000e+00> : vector<8x512xf32>
    %155 = tpu.matmul %153, %154, %cst_87 {dimension_numbers = #tpu.dot_dimension_numbers<[1], [0], [0], [1], [0, 0, 1, 1], [], []>} : vector<8x128xbf16>, vector<128x512xbf16>, vector<8x512xf32> -> vector<8x512xf32>
    %156 = arith.addf %150, %155 : vector<8x512xf32>
    %157 = vector.extract_strided_slice %156 {offsets = [0, 0], sizes = [8, 128], strides = [1, 1]} : vector<8x512xf32> to vector<8x128xf32>
    %cst_88 = arith.constant 5.000000e-01 : f32
    %158 = vector.broadcast %cst_88 : f32 to vector<8x128xf32>
    %159 = arith.mulf %158, %157 : vector<8x128xf32>
    %160 = math.tanh %159 : vector<8x128xf32>
    %cst_89 = arith.constant 5.000000e-01 : f32
    %161 = vector.broadcast %cst_89 : f32 to vector<8x128xf32>
    %162 = arith.mulf %161, %160 : vector<8x128xf32>
    %cst_90 = arith.constant 5.000000e-01 : f32
    %163 = vector.broadcast %cst_90 : f32 to vector<8x128xf32>
    %164 = arith.addf %162, %163 : vector<8x128xf32>
    %165 = vector.extract_strided_slice %156 {offsets = [0, 128], sizes = [8, 128], strides = [1, 1]} : vector<8x512xf32> to vector<8x128xf32>
    %cst_91 = arith.constant 5.000000e-01 : f32
    %166 = vector.broadcast %cst_91 : f32 to vector<8x128xf32>
    %167 = arith.mulf %166, %165 : vector<8x128xf32>
    %168 = math.tanh %167 : vector<8x128xf32>
    %cst_92 = arith.constant 5.000000e-01 : f32
    %169 = vector.broadcast %cst_92 : f32 to vector<8x128xf32>
    %170 = arith.mulf %169, %168 : vector<8x128xf32>
    %cst_93 = arith.constant 5.000000e-01 : f32
    %171 = vector.broadcast %cst_93 : f32 to vector<8x128xf32>
    %172 = arith.addf %170, %171 : vector<8x128xf32>
    %173 = vector.extract_strided_slice %156 {offsets = [0, 256], sizes = [8, 128], strides = [1, 1]} : vector<8x512xf32> to vector<8x128xf32>
    %174 = math.tanh %173 : vector<8x128xf32>
    %175 = vector.extract_strided_slice %156 {offsets = [0, 384], sizes = [8, 128], strides = [1, 1]} : vector<8x512xf32> to vector<8x128xf32>
    %cst_94 = arith.constant 5.000000e-01 : f32
    %176 = vector.broadcast %cst_94 : f32 to vector<8x128xf32>
    %177 = arith.mulf %176, %175 : vector<8x128xf32>
    %178 = math.tanh %177 : vector<8x128xf32>
    %cst_95 = arith.constant 5.000000e-01 : f32
    %179 = vector.broadcast %cst_95 : f32 to vector<8x128xf32>
    %180 = arith.mulf %179, %178 : vector<8x128xf32>
    %cst_96 = arith.constant 5.000000e-01 : f32
    %181 = vector.broadcast %cst_96 : f32 to vector<8x128xf32>
    %182 = arith.addf %180, %181 : vector<8x128xf32>
    %183 = arith.mulf %172, %152 : vector<8x128xf32>
    %184 = arith.mulf %164, %174 : vector<8x128xf32>
    %185 = arith.addf %183, %184 : vector<8x128xf32>
    %186 = math.tanh %185 : vector<8x128xf32>
    %187 = arith.mulf %182, %186 : vector<8x128xf32>
    %c0_97 = arith.constant 0 : index
    %c0_98 = arith.constant 0 : index
    %188 = vector.load %arg6[%c0_97, %c0_98] : memref<8x128xf32, #tpu.memory_space<vmem>>, vector<8x128xf32>
    tpu.vector_store %arg6[%c0_97, %c0_98], %185 {strides = array<i32>} : memref<8x128xf32, #tpu.memory_space<vmem>>, vector<8x128xf32>,
    %c0_99 = arith.constant 0 : index
    %c0_100 = arith.constant 0 : index
    %189 = vector.load %arg5[%c0_99, %c0_100] : memref<8x128xf32, #tpu.memory_space<vmem>>, vector<8x128xf32>
    tpu.vector_store %arg5[%c0_99, %c0_100], %187 {strides = array<i32>} : memref<8x128xf32, #tpu.memory_space<vmem>>, vector<8x128xf32>,
    %190 = arith.truncf %187 : vector<8x128xf32> to vector<8x128xbf16>
    %c0_101 = arith.constant 0 : index
    %191 = arith.index_cast %c3_i32 : i32 to index
    %c0_102 = arith.constant 0 : index
    %c0_103 = arith.constant 0 : index
    %192 = vector.load %arg4[%c0_101, %191, %c0_102, %c0_103] : memref<1x8x8x128xbf16, #tpu.memory_space<vmem>>, vector<1x1x8x128xbf16>
    %193 = vector.shape_cast %192 : vector<1x1x8x128xbf16> to vector<8x128xbf16>
    %194 = vector.shape_cast %190 : vector<8x128xbf16> to vector<1x1x8x128xbf16>
    tpu.vector_store %arg4[%c0_101, %191, %c0_102, %c0_103], %194 {strides = array<i32>} : memref<1x8x8x128xbf16, #tpu.memory_space<vmem>>, vector<1x1x8x128xbf16>,
    %c4_i32 = arith.constant 4 : i32
    %c0_104 = arith.constant 0 : index
    %195 = arith.index_cast %c4_i32 : i32 to index
    %c0_105 = arith.constant 0 : index
    %c0_106 = arith.constant 0 : index
    %196 = vector.load %arg2[%c0_104, %195, %c0_105, %c0_106] : memref<1x8x8x512xbf16, #tpu.memory_space<vmem>>, vector<1x1x8x512xbf16>
    %197 = vector.shape_cast %196 : vector<1x1x8x512xbf16> to vector<8x512xbf16>
    %198 = arith.extf %197 : vector<8x512xbf16> to vector<8x512xf32>
    %c0_107 = arith.constant 0 : index
    %c0_108 = arith.constant 0 : index
    %199 = vector.load %arg5[%c0_107, %c0_108] : memref<8x128xf32, #tpu.memory_space<vmem>>, vector<8x128xf32>
    %c0_109 = arith.constant 0 : index
    %c0_110 = arith.constant 0 : index
    %200 = vector.load %arg6[%c0_109, %c0_110] : memref<8x128xf32, #tpu.memory_space<vmem>>, vector<8x128xf32>
    %201 = arith.truncf %199 : vector<8x128xf32> to vector<8x128xbf16>
    %c0_111 = arith.constant 0 : index
    %c0_112 = arith.constant 0 : index
    %202 = vector.load %arg3[%c0_111, %c0_112] : memref<128x512xbf16, #tpu.memory_space<vmem>>, vector<128x512xbf16>
    %cst_113 = arith.constant dense<0.000000e+00> : vector<8x512xf32>
    %203 = tpu.matmul %201, %202, %cst_113 {dimension_numbers = #tpu.dot_dimension_numbers<[1], [0], [0], [1], [0, 0, 1, 1], [], []>} : vector<8x128xbf16>, vector<128x512xbf16>, vector<8x512xf32> -> vector<8x512xf32>
    %204 = arith.addf %198, %203 : vector<8x512xf32>
    %205 = vector.extract_strided_slice %204 {offsets = [0, 0], sizes = [8, 128], strides = [1, 1]} : vector<8x512xf32> to vector<8x128xf32>
    %cst_114 = arith.constant 5.000000e-01 : f32
    %206 = vector.broadcast %cst_114 : f32 to vector<8x128xf32>
    %207 = arith.mulf %206, %205 : vector<8x128xf32>
    %208 = math.tanh %207 : vector<8x128xf32>
    %cst_115 = arith.constant 5.000000e-01 : f32
    %209 = vector.broadcast %cst_115 : f32 to vector<8x128xf32>
    %210 = arith.mulf %209, %208 : vector<8x128xf32>
    %cst_116 = arith.constant 5.000000e-01 : f32
    %211 = vector.broadcast %cst_116 : f32 to vector<8x128xf32>
    %212 = arith.addf %210, %211 : vector<8x128xf32>
    %213 = vector.extract_strided_slice %204 {offsets = [0, 128], sizes = [8, 128], strides = [1, 1]} : vector<8x512xf32> to vector<8x128xf32>
    %cst_117 = arith.constant 5.000000e-01 : f32
    %214 = vector.broadcast %cst_117 : f32 to vector<8x128xf32>
    %215 = arith.mulf %214, %213 : vector<8x128xf32>
    %216 = math.tanh %215 : vector<8x128xf32>
    %cst_118 = arith.constant 5.000000e-01 : f32
    %217 = vector.broadcast %cst_118 : f32 to vector<8x128xf32>
    %218 = arith.mulf %217, %216 : vector<8x128xf32>
    %cst_119 = arith.constant 5.000000e-01 : f32
    %219 = vector.broadcast %cst_119 : f32 to vector<8x128xf32>
    %220 = arith.addf %218, %219 : vector<8x128xf32>
    %221 = vector.extract_strided_slice %204 {offsets = [0, 256], sizes = [8, 128], strides = [1, 1]} : vector<8x512xf32> to vector<8x128xf32>
    %222 = math.tanh %221 : vector<8x128xf32>
    %223 = vector.extract_strided_slice %204 {offsets = [0, 384], sizes = [8, 128], strides = [1, 1]} : vector<8x512xf32> to vector<8x128xf32>
    %cst_120 = arith.constant 5.000000e-01 : f32
    %224 = vector.broadcast %cst_120 : f32 to vector<8x128xf32>
    %225 = arith.mulf %224, %223 : vector<8x128xf32>
    %226 = math.tanh %225 : vector<8x128xf32>
    %cst_121 = arith.constant 5.000000e-01 : f32
    %227 = vector.broadcast %cst_121 : f32 to vector<8x128xf32>
    %228 = arith.mulf %227, %226 : vector<8x128xf32>
    %cst_122 = arith.constant 5.000000e-01 : f32
    %229 = vector.broadcast %cst_122 : f32 to vector<8x128xf32>
    %230 = arith.addf %228, %229 : vector<8x128xf32>
    %231 = arith.mulf %220, %200 : vector<8x128xf32>
    %232 = arith.mulf %212, %222 : vector<8x128xf32>
    %233 = arith.addf %231, %232 : vector<8x128xf32>
    %234 = math.tanh %233 : vector<8x128xf32>
    %235 = arith.mulf %230, %234 : vector<8x128xf32>
    %c0_123 = arith.constant 0 : index
    %c0_124 = arith.constant 0 : index
    %236 = vector.load %arg6[%c0_123, %c0_124] : memref<8x128xf32, #tpu.memory_space<vmem>>, vector<8x128xf32>
    tpu.vector_store %arg6[%c0_123, %c0_124], %233 {strides = array<i32>} : memref<8x128xf32, #tpu.memory_space<vmem>>, vector<8x128xf32>,
    %c0_125 = arith.constant 0 : index
    %c0_126 = arith.constant 0 : index
    %237 = vector.load %arg5[%c0_125, %c0_126] : memref<8x128xf32, #tpu.memory_space<vmem>>, vector<8x128xf32>
    tpu.vector_store %arg5[%c0_125, %c0_126], %235 {strides = array<i32>} : memref<8x128xf32, #tpu.memory_space<vmem>>, vector<8x128xf32>,
    %238 = arith.truncf %235 : vector<8x128xf32> to vector<8x128xbf16>
    %c0_127 = arith.constant 0 : index
    %239 = arith.index_cast %c4_i32 : i32 to index
    %c0_128 = arith.constant 0 : index
    %c0_129 = arith.constant 0 : index
    %240 = vector.load %arg4[%c0_127, %239, %c0_128, %c0_129] : memref<1x8x8x128xbf16, #tpu.memory_space<vmem>>, vector<1x1x8x128xbf16>
    %241 = vector.shape_cast %240 : vector<1x1x8x128xbf16> to vector<8x128xbf16>
    %242 = vector.shape_cast %238 : vector<8x128xbf16> to vector<1x1x8x128xbf16>
    tpu.vector_store %arg4[%c0_127, %239, %c0_128, %c0_129], %242 {strides = array<i32>} : memref<1x8x8x128xbf16, #tpu.memory_space<vmem>>, vector<1x1x8x128xbf16>,
    %c5_i32 = arith.constant 5 : i32
    %c0_130 = arith.constant 0 : index
    %243 = arith.index_cast %c5_i32 : i32 to index
    %c0_131 = arith.constant 0 : index
    %c0_132 = arith.constant 0 : index
    %244 = vector.load %arg2[%c0_130, %243, %c0_131, %c0_132] : memref<1x8x8x512xbf16, #tpu.memory_space<vmem>>, vector<1x1x8x512xbf16>
    %245 = vector.shape_cast %244 : vector<1x1x8x512xbf16> to vector<8x512xbf16>
    %246 = arith.extf %245 : vector<8x512xbf16> to vector<8x512xf32>
    %c0_133 = arith.constant 0 : index
    %c0_134 = arith.constant 0 : index
    %247 = vector.load %arg5[%c0_133, %c0_134] : memref<8x128xf32, #tpu.memory_space<vmem>>, vector<8x128xf32>
    %c0_135 = arith.constant 0 : index
    %c0_136 = arith.constant 0 : index
    %248 = vector.load %arg6[%c0_135, %c0_136] : memref<8x128xf32, #tpu.memory_space<vmem>>, vector<8x128xf32>
    %249 = arith.truncf %247 : vector<8x128xf32> to vector<8x128xbf16>
    %c0_137 = arith.constant 0 : index
    %c0_138 = arith.constant 0 : index
    %250 = vector.load %arg3[%c0_137, %c0_138] : memref<128x512xbf16, #tpu.memory_space<vmem>>, vector<128x512xbf16>
    %cst_139 = arith.constant dense<0.000000e+00> : vector<8x512xf32>
    %251 = tpu.matmul %249, %250, %cst_139 {dimension_numbers = #tpu.dot_dimension_numbers<[1], [0], [0], [1], [0, 0, 1, 1], [], []>} : vector<8x128xbf16>, vector<128x512xbf16>, vector<8x512xf32> -> vector<8x512xf32>
    %252 = arith.addf %246, %251 : vector<8x512xf32>
    %253 = vector.extract_strided_slice %252 {offsets = [0, 0], sizes = [8, 128], strides = [1, 1]} : vector<8x512xf32> to vector<8x128xf32>
    %cst_140 = arith.constant 5.000000e-01 : f32
    %254 = vector.broadcast %cst_140 : f32 to vector<8x128xf32>
    %255 = arith.mulf %254, %253 : vector<8x128xf32>
    %256 = math.tanh %255 : vector<8x128xf32>
    %cst_141 = arith.constant 5.000000e-01 : f32
    %257 = vector.broadcast %cst_141 : f32 to vector<8x128xf32>
    %258 = arith.mulf %257, %256 : vector<8x128xf32>
    %cst_142 = arith.constant 5.000000e-01 : f32
    %259 = vector.broadcast %cst_142 : f32 to vector<8x128xf32>
    %260 = arith.addf %258, %259 : vector<8x128xf32>
    %261 = vector.extract_strided_slice %252 {offsets = [0, 128], sizes = [8, 128], strides = [1, 1]} : vector<8x512xf32> to vector<8x128xf32>
    %cst_143 = arith.constant 5.000000e-01 : f32
    %262 = vector.broadcast %cst_143 : f32 to vector<8x128xf32>
    %263 = arith.mulf %262, %261 : vector<8x128xf32>
    %264 = math.tanh %263 : vector<8x128xf32>
    %cst_144 = arith.constant 5.000000e-01 : f32
    %265 = vector.broadcast %cst_144 : f32 to vector<8x128xf32>
    %266 = arith.mulf %265, %264 : vector<8x128xf32>
    %cst_145 = arith.constant 5.000000e-01 : f32
    %267 = vector.broadcast %cst_145 : f32 to vector<8x128xf32>
    %268 = arith.addf %266, %267 : vector<8x128xf32>
    %269 = vector.extract_strided_slice %252 {offsets = [0, 256], sizes = [8, 128], strides = [1, 1]} : vector<8x512xf32> to vector<8x128xf32>
    %270 = math.tanh %269 : vector<8x128xf32>
    %271 = vector.extract_strided_slice %252 {offsets = [0, 384], sizes = [8, 128], strides = [1, 1]} : vector<8x512xf32> to vector<8x128xf32>
    %cst_146 = arith.constant 5.000000e-01 : f32
    %272 = vector.broadcast %cst_146 : f32 to vector<8x128xf32>
    %273 = arith.mulf %272, %271 : vector<8x128xf32>
    %274 = math.tanh %273 : vector<8x128xf32>
    %cst_147 = arith.constant 5.000000e-01 : f32
    %275 = vector.broadcast %cst_147 : f32 to vector<8x128xf32>
    %276 = arith.mulf %275, %274 : vector<8x128xf32>
    %cst_148 = arith.constant 5.000000e-01 : f32
    %277 = vector.broadcast %cst_148 : f32 to vector<8x128xf32>
    %278 = arith.addf %276, %277 : vector<8x128xf32>
    %279 = arith.mulf %268, %248 : vector<8x128xf32>
    %280 = arith.mulf %260, %270 : vector<8x128xf32>
    %281 = arith.addf %279, %280 : vector<8x128xf32>
    %282 = math.tanh %281 : vector<8x128xf32>
    %283 = arith.mulf %278, %282 : vector<8x128xf32>
    %c0_149 = arith.constant 0 : index
    %c0_150 = arith.constant 0 : index
    %284 = vector.load %arg6[%c0_149, %c0_150] : memref<8x128xf32, #tpu.memory_space<vmem>>, vector<8x128xf32>
    tpu.vector_store %arg6[%c0_149, %c0_150], %281 {strides = array<i32>} : memref<8x128xf32, #tpu.memory_space<vmem>>, vector<8x128xf32>,
    %c0_151 = arith.constant 0 : index
    %c0_152 = arith.constant 0 : index
    %285 = vector.load %arg5[%c0_151, %c0_152] : memref<8x128xf32, #tpu.memory_space<vmem>>, vector<8x128xf32>
    tpu.vector_store %arg5[%c0_151, %c0_152], %283 {strides = array<i32>} : memref<8x128xf32, #tpu.memory_space<vmem>>, vector<8x128xf32>,
    %286 = arith.truncf %283 : vector<8x128xf32> to vector<8x128xbf16>
    %c0_153 = arith.constant 0 : index
    %287 = arith.index_cast %c5_i32 : i32 to index
    %c0_154 = arith.constant 0 : index
    %c0_155 = arith.constant 0 : index
    %288 = vector.load %arg4[%c0_153, %287, %c0_154, %c0_155] : memref<1x8x8x128xbf16, #tpu.memory_space<vmem>>, vector<1x1x8x128xbf16>
    %289 = vector.shape_cast %288 : vector<1x1x8x128xbf16> to vector<8x128xbf16>
    %290 = vector.shape_cast %286 : vector<8x128xbf16> to vector<1x1x8x128xbf16>
    tpu.vector_store %arg4[%c0_153, %287, %c0_154, %c0_155], %290 {strides = array<i32>} : memref<1x8x8x128xbf16, #tpu.memory_space<vmem>>, vector<1x1x8x128xbf16>,
    %c6_i32 = arith.constant 6 : i32
    %c0_156 = arith.constant 0 : index
    %291 = arith.index_cast %c6_i32 : i32 to index
    %c0_157 = arith.constant 0 : index
    %c0_158 = arith.constant 0 : index
    %292 = vector.load %arg2[%c0_156, %291, %c0_157, %c0_158] : memref<1x8x8x512xbf16, #tpu.memory_space<vmem>>, vector<1x1x8x512xbf16>
    %293 = vector.shape_cast %292 : vector<1x1x8x512xbf16> to vector<8x512xbf16>
    %294 = arith.extf %293 : vector<8x512xbf16> to vector<8x512xf32>
    %c0_159 = arith.constant 0 : index
    %c0_160 = arith.constant 0 : index
    %295 = vector.load %arg5[%c0_159, %c0_160] : memref<8x128xf32, #tpu.memory_space<vmem>>, vector<8x128xf32>
    %c0_161 = arith.constant 0 : index
    %c0_162 = arith.constant 0 : index
    %296 = vector.load %arg6[%c0_161, %c0_162] : memref<8x128xf32, #tpu.memory_space<vmem>>, vector<8x128xf32>
    %297 = arith.truncf %295 : vector<8x128xf32> to vector<8x128xbf16>
    %c0_163 = arith.constant 0 : index
    %c0_164 = arith.constant 0 : index
    %298 = vector.load %arg3[%c0_163, %c0_164] : memref<128x512xbf16, #tpu.memory_space<vmem>>, vector<128x512xbf16>
    %cst_165 = arith.constant dense<0.000000e+00> : vector<8x512xf32>
    %299 = tpu.matmul %297, %298, %cst_165 {dimension_numbers = #tpu.dot_dimension_numbers<[1], [0], [0], [1], [0, 0, 1, 1], [], []>} : vector<8x128xbf16>, vector<128x512xbf16>, vector<8x512xf32> -> vector<8x512xf32>
    %300 = arith.addf %294, %299 : vector<8x512xf32>
    %301 = vector.extract_strided_slice %300 {offsets = [0, 0], sizes = [8, 128], strides = [1, 1]} : vector<8x512xf32> to vector<8x128xf32>
    %cst_166 = arith.constant 5.000000e-01 : f32
    %302 = vector.broadcast %cst_166 : f32 to vector<8x128xf32>
    %303 = arith.mulf %302, %301 : vector<8x128xf32>
    %304 = math.tanh %303 : vector<8x128xf32>
    %cst_167 = arith.constant 5.000000e-01 : f32
    %305 = vector.broadcast %cst_167 : f32 to vector<8x128xf32>
    %306 = arith.mulf %305, %304 : vector<8x128xf32>
    %cst_168 = arith.constant 5.000000e-01 : f32
    %307 = vector.broadcast %cst_168 : f32 to vector<8x128xf32>
    %308 = arith.addf %306, %307 : vector<8x128xf32>
    %309 = vector.extract_strided_slice %300 {offsets = [0, 128], sizes = [8, 128], strides = [1, 1]} : vector<8x512xf32> to vector<8x128xf32>
    %cst_169 = arith.constant 5.000000e-01 : f32
    %310 = vector.broadcast %cst_169 : f32 to vector<8x128xf32>
    %311 = arith.mulf %310, %309 : vector<8x128xf32>
    %312 = math.tanh %311 : vector<8x128xf32>
    %cst_170 = arith.constant 5.000000e-01 : f32
    %313 = vector.broadcast %cst_170 : f32 to vector<8x128xf32>
    %314 = arith.mulf %313, %312 : vector<8x128xf32>
    %cst_171 = arith.constant 5.000000e-01 : f32
    %315 = vector.broadcast %cst_171 : f32 to vector<8x128xf32>
    %316 = arith.addf %314, %315 : vector<8x128xf32>
    %317 = vector.extract_strided_slice %300 {offsets = [0, 256], sizes = [8, 128], strides = [1, 1]} : vector<8x512xf32> to vector<8x128xf32>
    %318 = math.tanh %317 : vector<8x128xf32>
    %319 = vector.extract_strided_slice %300 {offsets = [0, 384], sizes = [8, 128], strides = [1, 1]} : vector<8x512xf32> to vector<8x128xf32>
    %cst_172 = arith.constant 5.000000e-01 : f32
    %320 = vector.broadcast %cst_172 : f32 to vector<8x128xf32>
    %321 = arith.mulf %320, %319 : vector<8x128xf32>
    %322 = math.tanh %321 : vector<8x128xf32>
    %cst_173 = arith.constant 5.000000e-01 : f32
    %323 = vector.broadcast %cst_173 : f32 to vector<8x128xf32>
    %324 = arith.mulf %323, %322 : vector<8x128xf32>
    %cst_174 = arith.constant 5.000000e-01 : f32
    %325 = vector.broadcast %cst_174 : f32 to vector<8x128xf32>
    %326 = arith.addf %324, %325 : vector<8x128xf32>
    %327 = arith.mulf %316, %296 : vector<8x128xf32>
    %328 = arith.mulf %308, %318 : vector<8x128xf32>
    %329 = arith.addf %327, %328 : vector<8x128xf32>
    %330 = math.tanh %329 : vector<8x128xf32>
    %331 = arith.mulf %326, %330 : vector<8x128xf32>
    %c0_175 = arith.constant 0 : index
    %c0_176 = arith.constant 0 : index
    %332 = vector.load %arg6[%c0_175, %c0_176] : memref<8x128xf32, #tpu.memory_space<vmem>>, vector<8x128xf32>
    tpu.vector_store %arg6[%c0_175, %c0_176], %329 {strides = array<i32>} : memref<8x128xf32, #tpu.memory_space<vmem>>, vector<8x128xf32>,
    %c0_177 = arith.constant 0 : index
    %c0_178 = arith.constant 0 : index
    %333 = vector.load %arg5[%c0_177, %c0_178] : memref<8x128xf32, #tpu.memory_space<vmem>>, vector<8x128xf32>
    tpu.vector_store %arg5[%c0_177, %c0_178], %331 {strides = array<i32>} : memref<8x128xf32, #tpu.memory_space<vmem>>, vector<8x128xf32>,
    %334 = arith.truncf %331 : vector<8x128xf32> to vector<8x128xbf16>
    %c0_179 = arith.constant 0 : index
    %335 = arith.index_cast %c6_i32 : i32 to index
    %c0_180 = arith.constant 0 : index
    %c0_181 = arith.constant 0 : index
    %336 = vector.load %arg4[%c0_179, %335, %c0_180, %c0_181] : memref<1x8x8x128xbf16, #tpu.memory_space<vmem>>, vector<1x1x8x128xbf16>
    %337 = vector.shape_cast %336 : vector<1x1x8x128xbf16> to vector<8x128xbf16>
    %338 = vector.shape_cast %334 : vector<8x128xbf16> to vector<1x1x8x128xbf16>
    tpu.vector_store %arg4[%c0_179, %335, %c0_180, %c0_181], %338 {strides = array<i32>} : memref<1x8x8x128xbf16, #tpu.memory_space<vmem>>, vector<1x1x8x128xbf16>,
    %c7_i32 = arith.constant 7 : i32
    %c0_182 = arith.constant 0 : index
    %339 = arith.index_cast %c7_i32 : i32 to index
    %c0_183 = arith.constant 0 : index
    %c0_184 = arith.constant 0 : index
    %340 = vector.load %arg2[%c0_182, %339, %c0_183, %c0_184] : memref<1x8x8x512xbf16, #tpu.memory_space<vmem>>, vector<1x1x8x512xbf16>
    %341 = vector.shape_cast %340 : vector<1x1x8x512xbf16> to vector<8x512xbf16>
    %342 = arith.extf %341 : vector<8x512xbf16> to vector<8x512xf32>
    %c0_185 = arith.constant 0 : index
    %c0_186 = arith.constant 0 : index
    %343 = vector.load %arg5[%c0_185, %c0_186] : memref<8x128xf32, #tpu.memory_space<vmem>>, vector<8x128xf32>
    %c0_187 = arith.constant 0 : index
    %c0_188 = arith.constant 0 : index
    %344 = vector.load %arg6[%c0_187, %c0_188] : memref<8x128xf32, #tpu.memory_space<vmem>>, vector<8x128xf32>
    %345 = arith.truncf %343 : vector<8x128xf32> to vector<8x128xbf16>
    %c0_189 = arith.constant 0 : index
    %c0_190 = arith.constant 0 : index
    %346 = vector.load %arg3[%c0_189, %c0_190] : memref<128x512xbf16, #tpu.memory_space<vmem>>, vector<128x512xbf16>
    %cst_191 = arith.constant dense<0.000000e+00> : vector<8x512xf32>
    %347 = tpu.matmul %345, %346, %cst_191 {dimension_numbers = #tpu.dot_dimension_numbers<[1], [0], [0], [1], [0, 0, 1, 1], [], []>} : vector<8x128xbf16>, vector<128x512xbf16>, vector<8x512xf32> -> vector<8x512xf32>
    %348 = arith.addf %342, %347 : vector<8x512xf32>
    %349 = vector.extract_strided_slice %348 {offsets = [0, 0], sizes = [8, 128], strides = [1, 1]} : vector<8x512xf32> to vector<8x128xf32>
    %cst_192 = arith.constant 5.000000e-01 : f32
    %350 = vector.broadcast %cst_192 : f32 to vector<8x128xf32>
    %351 = arith.mulf %350, %349 : vector<8x128xf32>
    %352 = math.tanh %351 : vector<8x128xf32>
    %cst_193 = arith.constant 5.000000e-01 : f32
    %353 = vector.broadcast %cst_193 : f32 to vector<8x128xf32>
    %354 = arith.mulf %353, %352 : vector<8x128xf32>
    %cst_194 = arith.constant 5.000000e-01 : f32
    %355 = vector.broadcast %cst_194 : f32 to vector<8x128xf32>
    %356 = arith.addf %354, %355 : vector<8x128xf32>
    %357 = vector.extract_strided_slice %348 {offsets = [0, 128], sizes = [8, 128], strides = [1, 1]} : vector<8x512xf32> to vector<8x128xf32>
    %cst_195 = arith.constant 5.000000e-01 : f32
    %358 = vector.broadcast %cst_195 : f32 to vector<8x128xf32>
    %359 = arith.mulf %358, %357 : vector<8x128xf32>
    %360 = math.tanh %359 : vector<8x128xf32>
    %cst_196 = arith.constant 5.000000e-01 : f32
    %361 = vector.broadcast %cst_196 : f32 to vector<8x128xf32>
    %362 = arith.mulf %361, %360 : vector<8x128xf32>
    %cst_197 = arith.constant 5.000000e-01 : f32
    %363 = vector.broadcast %cst_197 : f32 to vector<8x128xf32>
    %364 = arith.addf %362, %363 : vector<8x128xf32>
    %365 = vector.extract_strided_slice %348 {offsets = [0, 256], sizes = [8, 128], strides = [1, 1]} : vector<8x512xf32> to vector<8x128xf32>
    %366 = math.tanh %365 : vector<8x128xf32>
    %367 = vector.extract_strided_slice %348 {offsets = [0, 384], sizes = [8, 128], strides = [1, 1]} : vector<8x512xf32> to vector<8x128xf32>
    %cst_198 = arith.constant 5.000000e-01 : f32
    %368 = vector.broadcast %cst_198 : f32 to vector<8x128xf32>
    %369 = arith.mulf %368, %367 : vector<8x128xf32>
    %370 = math.tanh %369 : vector<8x128xf32>
    %cst_199 = arith.constant 5.000000e-01 : f32
    %371 = vector.broadcast %cst_199 : f32 to vector<8x128xf32>
    %372 = arith.mulf %371, %370 : vector<8x128xf32>
    %cst_200 = arith.constant 5.000000e-01 : f32
    %373 = vector.broadcast %cst_200 : f32 to vector<8x128xf32>
    %374 = arith.addf %372, %373 : vector<8x128xf32>
    %375 = arith.mulf %364, %344 : vector<8x128xf32>
    %376 = arith.mulf %356, %366 : vector<8x128xf32>
    %377 = arith.addf %375, %376 : vector<8x128xf32>
    %378 = math.tanh %377 : vector<8x128xf32>
    %379 = arith.mulf %374, %378 : vector<8x128xf32>
    %c0_201 = arith.constant 0 : index
    %c0_202 = arith.constant 0 : index
    %380 = vector.load %arg6[%c0_201, %c0_202] : memref<8x128xf32, #tpu.memory_space<vmem>>, vector<8x128xf32>
    tpu.vector_store %arg6[%c0_201, %c0_202], %377 {strides = array<i32>} : memref<8x128xf32, #tpu.memory_space<vmem>>, vector<8x128xf32>,
    %c0_203 = arith.constant 0 : index
    %c0_204 = arith.constant 0 : index
    %381 = vector.load %arg5[%c0_203, %c0_204] : memref<8x128xf32, #tpu.memory_space<vmem>>, vector<8x128xf32>
    tpu.vector_store %arg5[%c0_203, %c0_204], %379 {strides = array<i32>} : memref<8x128xf32, #tpu.memory_space<vmem>>, vector<8x128xf32>,
    %382 = arith.truncf %379 : vector<8x128xf32> to vector<8x128xbf16>
    %c0_205 = arith.constant 0 : index
    %383 = arith.index_cast %c7_i32 : i32 to index
    %c0_206 = arith.constant 0 : index
    %c0_207 = arith.constant 0 : index
    %384 = vector.load %arg4[%c0_205, %383, %c0_206, %c0_207] : memref<1x8x8x128xbf16, #tpu.memory_space<vmem>>, vector<1x1x8x128xbf16>
    %385 = vector.shape_cast %384 : vector<1x1x8x128xbf16> to vector<8x128xbf16>
    %386 = vector.shape_cast %382 : vector<8x128xbf16> to vector<1x1x8x128xbf16>
    tpu.vector_store %arg4[%c0_205, %383, %c0_206, %c0_207], %386 {strides = array<i32>} : memref<1x8x8x128xbf16, #tpu.memory_space<vmem>>, vector<1x1x8x128xbf16>,
    %c8_i32 = arith.constant 8 : i32
    return
  }
  func.func @transform_0(%arg0: i32, %arg1: i32) -> (i32, i32, i32, i32) {
    %c0_i32 = arith.constant 0 : i32
    %c0_i32_0 = arith.constant 0 : i32
    %c0_i32_1 = arith.constant 0 : i32
    return %arg0, %arg1, %c0_i32, %c0_i32_0 : i32, i32, i32, i32
  }
  func.func @transform_1(%arg0: i32, %arg1: i32) -> (i32, i32) {
    %c0_i32 = arith.constant 0 : i32
    %c0_i32_0 = arith.constant 0 : i32
    %c0_i32_1 = arith.constant 0 : i32
    return %c0_i32, %c0_i32_0 : i32, i32
  }
  func.func @transform_2(%arg0: i32, %arg1: i32) -> (i32, i32, i32, i32) {
    %c0_i32 = arith.constant 0 : i32
    %c0_i32_0 = arith.constant 0 : i32
    %c0_i32_1 = arith.constant 0 : i32
    return %arg0, %arg1, %c0_i32, %c0_i32_0 : i32, i32, i32, i32
  }
}

</mosaic_0001>

<llo_original>
// kernel: tpu_custom_call.1
$region0: #{tpu_custom_call.1}
  #allocation0 [shape = 'u32[]', space=smem, size = 0x4, offset = 0x4, fixed_abs, tag = 'smem constant byte address 0x4 - core index']
  #allocation1 [shape = 'u32[144,128]{1,0:T(1,128)}', space=vmem, size = 0x12000, scoped, tag = 'internal scratch']
  %s0 = inlined_call_operand.hbm [shape: f32[8,128], index: 0, kind: input, shape index: {}]
  %s1 = inlined_call_operand.hbm [shape: f32[16,128], index: 1, kind: output, shape index: {}]
  %s2 = sld [smem:[#allocation0]]
  $region41: #{tpu_custom_call.1} parent=0
    _
  %s4 = ssub.s32 1, %s2
  %s5 = scalar_select 0, %s4, %s2
  $region1: #{tpu_custom_call.1} parent=0
    #allocation2 [shape = 'u8[4096]{0}', space=vmem, size = 0x1000, scoped, tag = 'input window, operand 0, single buffered']
    #allocation3 [shape = 's32[2]{0}', space=sflag, size = 0x8, scoped, tag = 'scoped memory for tpu_custom_call.1']
    #allocation4 [shape = 's32[2]{0}', space=sflag, size = 0x8, scoped, tag = 'scoped memory for tpu_custom_call.1']
    #allocation5 [shape = 'u8[8192]{0}', space=vmem, size = 0x2000, scoped, tag = 'output window, operand 0']
    %6 = vsyncpa [#allocation3], 0
    %7 = vsyncpa [#allocation4], 0
    %s8 = scalar_lea.sflag [#allocation4], 1
    %9 = vsyncpa %s8, 0
    loop: start=0, step=1, limit=4
    $region2: #{tpu_custom_call.1} parent=1 // loop_pre_header
      _
    $region3: #{tpu_custom_call.1} parent=1 // loop_header
      %s11 = sphi 0, %s15
      %p12 = scmp.ge.s32.totalorder %s11, 4
      %s19 = sphi 0, %s19
      %s21 = sphi 0, %s19
      %s22 = sphi 0, %s21
      %s36 = sphi 0, %s22
      %s42 = sphi 0, %s44
      %s45 = sphi 0, %s42
      %s46 = sphi 0, %s45
      %s62 = sphi 0, %s46
    $region4: #{tpu_custom_call.1} parent=1 // loop_header_branch
      %14 = sbr.rel (%p12) target = $region8
    $region5: #{tpu_custom_call.1} parent=1 // loop_body
      %s16 = ssub.s32 %s11, 1
      %s17 = ssub.s32 %s11, 2
      %s18 = sadd.s32 %s11, 1
      %s20 = sadd.s32 %s19, 1
      %p23 = scmp.eq.s32.totalorder %s11, 1
      %p24 = scmp.ne.s32.totalorder %s19, %s21
      %p25 = scmp.eq.s32.totalorder %s11, 0
      %p26 = por %p24, %p25
      %p27 = scmp.ne.s32.totalorder %s19, %s21
      %p28 = scmp.eq.s32.totalorder %s16, 1
      %p29 = por %p27, %p28
      %p30 = scmp.ne.s32.totalorder %s21, %s22
      %p31 = scmp.eq.s32.totalorder %s16, 0
      %p32 = por %p30, %p31
      %p33 = scmp.ne.s32.totalorder %s21, %s22
      %p34 = scmp.eq.s32.totalorder %s17, 1
      %p35 = por %p33, %p34
      %p37 = scmp.ne.s32.totalorder %s22, %s36
      %p38 = scmp.eq.s32.totalorder %s17, 0
      %p39 = por %p37, %p38
      %s40 = ssub.s32 %s11, %s18
      %p41 = scmp.eq.s32.totalorder %s40, 0
      %s43 = sadd.s32 %s42, 1
      %s44 = scalar_select %p41, %s42, %s43
      %p47 = pneg %p41
      %p48 = scmp.eq.s32.totalorder %s11, 1
      %p49 = por %p47, %p48
      %p50 = scmp.ne.s32.totalorder %s42, %s45
      %p51 = scmp.eq.s32.totalorder %s11, 0
      %p52 = por %p50, %p51
      %p53 = scmp.ne.s32.totalorder %s42, %s45
      %p54 = scmp.eq.s32.totalorder %s16, 1
      %p55 = por %p53, %p54
      %p56 = scmp.ne.s32.totalorder %s45, %s46
      %p57 = scmp.eq.s32.totalorder %s16, 0
      %p58 = por %p56, %p57
      %p59 = scmp.ne.s32.totalorder %s45, %s46
      %p60 = scmp.eq.s32.totalorder %s17, 1
      %p61 = por %p59, %p60
      %p63 = scmp.ne.s32.totalorder %s46, %s62
      %p64 = scmp.eq.s32.totalorder %s17, 0
      %p65 = por %p63, %p64
      %p66 = scmp.le.s32.totalorder 1, %s11
      %p67 = scmp.lt.s32.totalorder %s11, 3
      %p68 = pnand %p66, %p67
      %p69 = pneg %p68
      // Predicated region
      $region9: #{tpu_custom_call.1} parent=5 // pred_check
        _
      $region10: #{tpu_custom_call.1} parent=5 // pred_check_branch
        %71 = sbr.rel (%p68) target = $region12
      $region11: #{tpu_custom_call.1} parent=5 // pred_region
        %s72 = ssub.s32 %s11, 1
        // Predicated region
        $region13: #{tpu_custom_call.1} parent=11 // pred_check
          %p73 = pneg %p32
        $region14: #{tpu_custom_call.1} parent=11 // pred_check_branch
          %75 = sbr.rel (%p73) target = $region16
        $region15: #{tpu_custom_call.1} parent=11 // pred_region
          %s77 = ssub.s32 128, 128
          %78 = vsyncadd [#allocation3], %s77
          %s80 = sshll.u32 [#allocation2], 4
          %s81 = int_to_ptr.vmem [resolvable:$true] %s80
          %83 = dma.hbm_to_vmem [thread:$0]  %s0, 128, %s81, [#allocation3]
        $region16: #{tpu_custom_call.1} parent=11 // pred_fallthru
          _
      $region12: #{tpu_custom_call.1} parent=5 // pred_fallthru
        _
      %p84 = scmp.lt.s32.totalorder %s11, 2
      // Predicated region
      $region17: #{tpu_custom_call.1} parent=5 // pred_check
        %p85 = pneg %p84
      $region18: #{tpu_custom_call.1} parent=5 // pred_check_branch
        %87 = sbr.rel (%p85) target = $region20
      $region19: #{tpu_custom_call.1} parent=5 // pred_region
        _
      $region20: #{tpu_custom_call.1} parent=5 // pred_fallthru
        _
      %p88 = scmp.le.s32.totalorder 1, %s11
      %p89 = scmp.lt.s32.totalorder %s11, 3
      %p90 = pnand %p88, %p89
      %p91 = pneg %p90
      // Predicated region
      $region21: #{tpu_custom_call.1} parent=5 // pred_check
        _
      $region22: #{tpu_custom_call.1} parent=5 // pred_check_branch
        %93 = sbr.rel (%p90) target = $region24
      $region23: #{tpu_custom_call.1} parent=5 // pred_region
        %s94 = ssub.s32 %s11, 1
        // Predicated region
        $region25: #{tpu_custom_call.1} parent=23 // pred_check
          %p95 = pneg %p32
        $region26: #{tpu_custom_call.1} parent=23 // pred_check_branch
          %97 = sbr.rel (%p95) target = $region28
        $region27: #{tpu_custom_call.1} parent=23 // pred_region
          %98 = dma.done [#allocation3], 128
        $region28: #{tpu_custom_call.1} parent=23 // pred_fallthru
          _
        %p99 = pneg %p32
        %p100 = pneg %p29
        %p101 = pneg %p58
        %p102 = pneg %p55
        %s103 = sand.u32 %s45, 1
        %s104 = scalar_lea.sflag [#allocation4], %s103
        %s105 = sand.u32 %s45, 1
        %s106 = smul.addr %s105, 8
        %s107 = scalar_lea.vmem [#allocation5], %s106
        %v108 = vld [vmem:[#allocation2] sm:$0xff]
        %v109 = vadd.f32 %v108, 1.0
        %110 = vst [vmem:[%s107] sm:$0xff] %v109
        %s111 = sand.u32 %s45, 1
        %s112 = scalar_lea.sflag [#allocation4], %s111
        %s113 = sand.u32 %s45, 1
        %s114 = smul.addr %s113, 8
        %s115 = scalar_lea.vmem [#allocation5], %s114
        // Predicated region
        $region29: #{tpu_custom_call.1} parent=23 // pred_check
          %p116 = pneg %p55
        $region30: #{tpu_custom_call.1} parent=23 // pred_check_branch
          %118 = sbr.rel (%p116) target = $region32
        $region31: #{tpu_custom_call.1} parent=23 // pred_region
          %s120 = ssub.s32 128, 128
          %121 = vsyncadd %s112, %s120
          %s122 = smul.addr %s16, 128
          %s123 = scalar_lea.hbm %s1, %s122
          %s125 = sshll.u32 %s115, 4
          %s126 = int_to_ptr.vmem [resolvable:$true] %s125
          %128 = dma.vmem_to_hbm [thread:$0]  %s126, 128, %s123, %s112
        $region32: #{tpu_custom_call.1} parent=23 // pred_fallthru
          _
      $region24: #{tpu_custom_call.1} parent=5 // pred_fallthru
        _
      %p129 = scmp.le.s32.totalorder 2, %s11
      // Predicated region
      $region33: #{tpu_custom_call.1} parent=5 // pred_check
        %p130 = pneg %p129
      $region34: #{tpu_custom_call.1} parent=5 // pred_check_branch
        %132 = sbr.rel (%p130) target = $region36
      $region35: #{tpu_custom_call.1} parent=5 // pred_region
        %s133 = ssub.s32 %s11, 2
        // Predicated region
        $region37: #{tpu_custom_call.1} parent=35 // pred_check
          %p134 = pneg %p61
        $region38: #{tpu_custom_call.1} parent=35 // pred_check_branch
          %136 = sbr.rel (%p134) target = $region40
        $region39: #{tpu_custom_call.1} parent=35 // pred_region
          %s137 = sand.u32 %s46, 1
          %s138 = scalar_lea.sflag [#allocation4], %s137
          %s139 = sand.u32 %s46, 1
          %s140 = smul.addr %s139, 8
          %s141 = scalar_lea.vmem [#allocation5], %s140
          %142 = dma.done %s138, 128
        $region40: #{tpu_custom_call.1} parent=35 // pred_fallthru
          _
      $region36: #{tpu_custom_call.1} parent=5 // pred_fallthru
        _
    $region6: #{tpu_custom_call.1} parent=1 // loop_footer
      %s15 = sadd.s32 1, %s11
    $region7: #{tpu_custom_call.1} parent=1 // loop_footer_branch
      %10 = sbr.rel target = $region3
    $region8: #{tpu_custom_call.1} parent=1 // loop_exit
      _
    %143 = vsyncpa [#allocation3], 1
    %s144 = scalar_lea.sflag [#allocation3], 1
    %145 = vsyncpa %s144, 1
    %146 = vsyncpa [#allocation4], 1
    %s147 = scalar_lea.sflag [#allocation4], 1
    %148 = vsyncpa %s147, 1

// kernel: tpu_custom_call.1
$region0: #{tpu_custom_call.1}
  #allocation0 [shape = 'u32[]', space=smem, size = 0x4, offset = 0x4, fixed_abs, tag = 'smem constant byte address 0x4 - core index']
  #allocation1 [shape = 'u32[144,128]{1,0:T(1,128)}', space=vmem, size = 0x12000, scoped, tag = 'internal scratch']
  #allocation2 [shape = 'f32[8,128]{1,0:T(8,128)}', space=vmem, size = 0x1000, scoped, tag = 'scratch operand']
  #allocation3 [shape = 'f32[8,128]{1,0:T(8,128)}', space=vmem, size = 0x1000, scoped, tag = 'scratch operand']
  %s0 = inlined_call_operand.hbm [shape: bf16[1,8,8,512], index: 0, kind: input, shape index: {}]
  %s1 = inlined_call_operand.hbm [shape: bf16[128,512], index: 1, kind: input, shape index: {}]
  %s2 = inlined_call_operand.hbm [shape: bf16[1,8,8,128], index: 2, kind: output, shape index: {}]
  %s3 = sld [smem:[#allocation0]]
  $region30: #{tpu_custom_call.1} parent=0
    _
  %s5 = ssub.s32 1, %s3
  %s6 = scalar_select 0, %s5, %s3
  $region1: #{tpu_custom_call.1} parent=0
    #allocation4 [shape = 'u8[65536]{0}', space=vmem, size = 0x10000, scoped, tag = 'input window, operand 0, single buffered']
    #allocation5 [shape = 's32[1]{0}', space=sflag, size = 0x4, scoped, tag = 'scoped memory for tpu_custom_call.1']
    #allocation6 [shape = 's32[1]{0}', space=sflag, size = 0x4, scoped, tag = 'scoped memory for tpu_custom_call.1']
    #allocation7 [shape = 'u8[131072]{0}', space=vmem, size = 0x20000, scoped, tag = 'input window, operand 1, single buffered']
    #allocation8 [shape = 's32[1]{0}', space=sflag, size = 0x4, scoped, tag = 'scoped memory for tpu_custom_call.1']
    #allocation9 [shape = 'u8[16384]{0}', space=vmem, size = 0x4000, scoped, tag = 'output window, operand 0, single buffered']
    %7 = vsyncpa [#allocation5], 0
    %8 = vsyncpa [#allocation8], 0
    %9 = vsyncpa [#allocation6], 0
    // Predicated region
    $region2: #{tpu_custom_call.1} parent=1 // pred_check
      _
    $region3: #{tpu_custom_call.1} parent=1 // pred_check_branch
      %11 = sbr.rel (0) target = $region5
    $region4: #{tpu_custom_call.1} parent=1 // pred_region
      %s13 = ssub.s32 2048, 2048
      %14 = vsyncadd [#allocation5], %s13
      %s15 = sshll.u32 [#allocation4], 4
      %s16 = int_to_ptr.vmem [resolvable:$true] %s15
      %21 = dma.hbm_to_vmem [thread:$0]  %s0, 2048, %s16, [#allocation5], 256, 256, 16
    $region5: #{tpu_custom_call.1} parent=1 // pred_fallthru
      _
    // Predicated region
    $region6: #{tpu_custom_call.1} parent=1 // pred_check
      _
    $region7: #{tpu_custom_call.1} parent=1 // pred_check_branch
      %23 = sbr.rel (0) target = $region9
    $region8: #{tpu_custom_call.1} parent=1 // pred_region
      %s25 = ssub.s32 4096, 4096
      %26 = vsyncadd [#allocation8], %s25
      %s27 = sshll.u32 [#allocation7], 4
      %s28 = int_to_ptr.vmem [resolvable:$true] %s27
      %33 = dma.hbm_to_vmem [thread:$0]  %s1, 4096, %s28, [#allocation8], 256, 256, 16
    $region9: #{tpu_custom_call.1} parent=1 // pred_fallthru
      _
    // Predicated region
    $region10: #{tpu_custom_call.1} parent=1 // pred_check
      _
    $region11: #{tpu_custom_call.1} parent=1 // pred_check_branch
      %35 = sbr.rel (0) target = $region13
    $region12: #{tpu_custom_call.1} parent=1 // pred_region
      %36 = dma.done [#allocation5], 2048
    $region13: #{tpu_custom_call.1} parent=1 // pred_fallthru
      _
    // Predicated region
    $region14: #{tpu_custom_call.1} parent=1 // pred_check
      _
    $region15: #{tpu_custom_call.1} parent=1 // pred_check_branch
      %38 = sbr.rel (0) target = $region17
    $region16: #{tpu_custom_call.1} parent=1 // pred_region
      %39 = dma.done [#allocation8], 4096
    $region17: #{tpu_custom_call.1} parent=1 // pred_fallthru
      _
    %p41 = scmp.eq.s32.totalorder 0, 0
    // Predicated region
    $region18: #{tpu_custom_call.1} parent=1 // pred_check
      %p42 = pneg %p41
    $region19: #{tpu_custom_call.1} parent=1 // pred_check_branch
      %44 = sbr.rel (%p42) target = $region21
    $region20: #{tpu_custom_call.1} parent=1 // pred_region
      %45 = vst [vmem:[#allocation2] sm:$0xff] 0.0
      %46 = vst [vmem:[#allocation3] sm:$0xff] 0.0
    $region21: #{tpu_custom_call.1} parent=1 // pred_fallthru
      _
    %v47 = vld [vmem:[#allocation4] sm:$0xff]
    %v48 = vld [vmem:[#allocation4 + $0x8] sm:$0xff]
    %v49 = vunpack.c.l.bf16 %v47
    %v50 = vunpack.c.h.bf16 %v47
    %v51 = vunpack.c.l.bf16 %v48
    %v52 = vunpack.c.h.bf16 %v48
    %v53 = vld [vmem:[#allocation2] sm:$0xff]
    %v54 = vld [vmem:[#allocation3] sm:$0xff]
    %v55 = vpack.c.bf16 %v53, %v53
    %v56 = vld [vmem:[#allocation7] sm:$0xff]
    %v57 = vld [vmem:[#allocation7 + $0x8] sm:$0xff]
    %v58 = vld [vmem:[#allocation7 + $0x10] sm:$0xff]
    %v59 = vld [vmem:[#allocation7 + $0x18] sm:$0xff]
    %v60 = vld [vmem:[#allocation7 + $0x20] sm:$0xff]
    %v61 = vld [vmem:[#allocation7 + $0x28] sm:$0xff]
    %v62 = vld [vmem:[#allocation7 + $0x30] sm:$0xff]
    %v63 = vld [vmem:[#allocation7 + $0x38] sm:$0xff]
    %v64 = vld [vmem:[#allocation7 + $0x40] sm:$0xff]
    %v65 = vld [vmem:[#allocation7 + $0x48] sm:$0xff]
    %v66 = vld [vmem:[#allocation7 + $0x50] sm:$0xff]
    %v67 = vld [vmem:[#allocation7 + $0x58] sm:$0xff]
    %v68 = vld [vmem:[#allocation7 + $0x60] sm:$0xff]
    %v69 = vld [vmem:[#allocation7 + $0x68] sm:$0xff]
    %v70 = vld [vmem:[#allocation7 + $0x70] sm:$0xff]
    %v71 = vld [vmem:[#allocation7 + $0x78] sm:$0xff]
    %v72 = vld [vmem:[#allocation7 + $0x80] sm:$0xff]
    %v73 = vld [vmem:[#allocation7 + $0x88] sm:$0xff]
    %v74 = vld [vmem:[#allocation7 + $0x90] sm:$0xff]
    %v75 = vld [vmem:[#allocation7 + $0x98] sm:$0xff]
    %v76 = vld [vmem:[#allocation7 + $0xa0] sm:$0xff]
    %v77 = vld [vmem:[#allocation7 + $0xa8] sm:$0xff]
    %v78 = vld [vmem:[#allocation7 + $0xb0] sm:$0xff]
    %v79 = vld [vmem:[#allocation7 + $0xb8] sm:$0xff]
    %v80 = vld [vmem:[#allocation7 + $0xc0] sm:$0xff]
    %v81 = vld [vmem:[#allocation7 + $0xc8] sm:$0xff]
    %v82 = vld [vmem:[#allocation7 + $0xd0] sm:$0xff]
    %v83 = vld [vmem:[#allocation7 + $0xd8] sm:$0xff]
    %v84 = vld [vmem:[#allocation7 + $0xe0] sm:$0xff]
    %v85 = vld [vmem:[#allocation7 + $0xe8] sm:$0xff]
    %v86 = vld [vmem:[#allocation7 + $0xf0] sm:$0xff]
    %v87 = vld [vmem:[#allocation7 + $0xf8] sm:$0xff]
    %v120 = vunpack.c.l.b16 %v56
    %v121 = vunpack.c.h.b16 %v56
    %v122 = vunpack.c.l.b16 %v57
    %v123 = vunpack.c.h.b16 %v57
    %v124 = vunpack.c.l.b16 %v58
    %v125 = vunpack.c.h.b16 %v58
    %v126 = vunpack.c.l.b16 %v59
    %v127 = vunpack.c.h.b16 %v59
    %v128 = vunpack.c.l.b16 %v60
    %v129 = vunpack.c.h.b16 %v60
    %v130 = vunpack.c.l.b16 %v61
    %v131 = vunpack.c.h.b16 %v61
    %v132 = vunpack.c.l.b16 %v62
    %v133 = vunpack.c.h.b16 %v62
    %v134 = vunpack.c.l.b16 %v63
    %v135 = vunpack.c.h.b16 %v63
    %v136 = vunpack.c.l.b16 %v64
    %v137 = vunpack.c.h.b16 %v64
    %v138 = vunpack.c.l.b16 %v65
    %v139 = vunpack.c.h.b16 %v65
    %v140 = vunpack.c.l.b16 %v66
    %v141 = vunpack.c.h.b16 %v66
    %v142 = vunpack.c.l.b16 %v67
    %v143 = vunpack.c.h.b16 %v67
    %v144 = vunpack.c.l.b16 %v68
    %v145 = vunpack.c.h.b16 %v68
    %v146 = vunpack.c.l.b16 %v69
    %v147 = vunpack.c.h.b16 %v69
    %v148 = vunpack.c.l.b16 %v70
    %v149 = vunpack.c.h.b16 %v70
    %v150 = vunpack.c.l.b16 %v71
    %v151 = vunpack.c.h.b16 %v71
    %v152 = vunpack.c.l.b16 %v72
    %v153 = vunpack.c.h.b16 %v72
    %v154 = vunpack.c.l.b16 %v73
    %v155 = vunpack.c.h.b16 %v73
    %v156 = vunpack.c.l.b16 %v74
    %v157 = vunpack.c.h.b16 %v74
    %v158 = vunpack.c.l.b16 %v75
    %v159 = vunpack.c.h.b16 %v75
    %v160 = vunpack.c.l.b16 %v76
    %v161 = vunpack.c.h.b16 %v76
    %v162 = vunpack.c.l.b16 %v77
    %v163 = vunpack.c.h.b16 %v77
    %v164 = vunpack.c.l.b16 %v78
    %v165 = vunpack.c.h.b16 %v78
    %v166 = vunpack.c.l.b16 %v79
    %v167 = vunpack.c.h.b16 %v79
    %v168 = vunpack.c.l.b16 %v80
    %v169 = vunpack.c.h.b16 %v80
    %v170 = vunpack.c.l.b16 %v81
    %v171 = vunpack.c.h.b16 %v81
    %v172 = vunpack.c.l.b16 %v82
    %v173 = vunpack.c.h.b16 %v82
    %v174 = vunpack.c.l.b16 %v83
    %v175 = vunpack.c.h.b16 %v83
    %v176 = vunpack.c.l.b16 %v84
    %v177 = vunpack.c.h.b16 %v84
    %v178 = vunpack.c.l.b16 %v85
    %v179 = vunpack.c.h.b16 %v85
    %v180 = vunpack.c.l.b16 %v86
    %v181 = vunpack.c.h.b16 %v86
    %v182 = vunpack.c.l.b16 %v87
    %v183 = vunpack.c.h.b16 %v87
    %v184 = vpack.c.b16 %v124, %v120
    %v185 = vpack.c.b16 %v125, %v121
    %v186 = vpack.c.b16 %v126, %v122
    %v187 = vpack.c.b16 %v127, %v123
    %v188 = vpack.c.b16 %v132, %v128
    %v189 = vpack.c.b16 %v133, %v129
    %v190 = vpack.c.b16 %v134, %v130
    %v191 = vpack.c.b16 %v135, %v131
    %v192 = vpack.c.b16 %v140, %v136
    %v193 = vpack.c.b16 %v141, %v137
    %v194 = vpack.c.b16 %v142, %v138
    %v195 = vpack.c.b16 %v143, %v139
    %v196 = vpack.c.b16 %v148, %v144
    %v197 = vpack.c.b16 %v149, %v145
    %v198 = vpack.c.b16 %v150, %v146
    %v199 = vpack.c.b16 %v151, %v147
    %v200 = vpack.c.b16 %v156, %v152
    %v201 = vpack.c.b16 %v157, %v153
    %v202 = vpack.c.b16 %v158, %v154
    %v203 = vpack.c.b16 %v159, %v155
    %v204 = vpack.c.b16 %v164, %v160
    %v205 = vpack.c.b16 %v165, %v161
    %v206 = vpack.c.b16 %v166, %v162
    %v207 = vpack.c.b16 %v167, %v163
    %v208 = vpack.c.b16 %v172, %v168
    %v209 = vpack.c.b16 %v173, %v169
    %v210 = vpack.c.b16 %v174, %v170
    %v211 = vpack.c.b16 %v175, %v171
    %v212 = vpack.c.b16 %v180, %v176
    %v213 = vpack.c.b16 %v181, %v177
    %v214 = vpack.c.b16 %v182, %v178
    %v215 = vpack.c.b16 %v183, %v179
    %248 = vmatprep.subr.bf16.mxu0 %v213
    %249 = vmatpush1.bf16.msra.mxu0 %v212
    %250 = vmatprep.subr.bf16.mxu0 %v209
    %251 = vmatpush1.bf16.msra.mxu0 %v208
    %252 = vmatprep.subr.bf16.mxu0 %v205
    %253 = vmatpush1.bf16.msra.mxu0 %v204
    %254 = vmatprep.subr.bf16.mxu0 %v201
    %255 = vmatpush1.bf16.msra.mxu0 %v200
    %256 = vmatprep.subr.bf16.mxu0 %v197
    %257 = vmatpush1.bf16.msra.mxu0 %v196
    %258 = vmatprep.subr.bf16.mxu0 %v193
    %259 = vmatpush1.bf16.msra.mxu0 %v192
    %260 = vmatprep.subr.bf16.mxu0 %v189
    %261 = vmatpush1.bf16.msra.mxu0 %v188
    %262 = vmatprep.subr.bf16.mxu0 %v185
    %263 = vmatpush1.bf16.msra.mxu0 %v184
    %264 = vmatprep.subr.bf16.mxu0 0
    %265 = vmatpush2.bf16.msra.mxu0 0
    %266 = vmatprep.subr.bf16.mxu0 0
    %267 = vmatpush2.bf16.msra.mxu0 0
    %268 = vmatprep.subr.bf16.mxu0 0
    %269 = vmatpush2.bf16.msra.mxu0 0
    %270 = vmatprep.subr.bf16.mxu0 0
    %271 = vmatpush2.bf16.msra.mxu0 0
    %272 = vmatprep.subr.bf16.mxu0 0
    %273 = vmatpush2.bf16.msra.mxu0 0
    %274 = vmatprep.subr.bf16.mxu0 0
    %275 = vmatpush2.bf16.msra.mxu0 0
    %276 = vmatprep.subr.bf16.mxu0 0
    %277 = vmatpush2.bf16.msra.mxu0 0
    %278 = vmatprep.subr.bf16.mxu0 0
    %279 = vmatpush2.bf16.msra.mxu0 0
    %280 = vmatprep.mubr.bf16.mxu0 0
    %281 = vmatmul.mubr.bf16.gmra.mxu0 %v55
    %v282 = vpop.f32.mrf.mxu0
    %v283 = vadd.f32 0.0, %v282
    %v284 = vpop.f32.mrf.mxu0
    %v285 = vadd.f32 0.0, %v284
    %v286 = vpop.f32.mrf.mxu0
    %v287 = vpop.f32.mrf.mxu0
    %288 = vdwg.mxu0
    %289 = vmatprep.subr.bf16.mxu0 %v215
    %290 = vmatpush1.bf16.msra.mxu0 %v214
    %291 = vmatprep.subr.bf16.mxu0 %v211
    %292 = vmatpush1.bf16.msra.mxu0 %v210
    %293 = vmatprep.subr.bf16.mxu0 %v207
    %294 = vmatpush1.bf16.msra.mxu0 %v206
    %295 = vmatprep.subr.bf16.mxu0 %v203
    %296 = vmatpush1.bf16.msra.mxu0 %v202
    %297 = vmatprep.subr.bf16.mxu0 %v199
    %298 = vmatpush1.bf16.msra.mxu0 %v198
    %299 = vmatprep.subr.bf16.mxu0 %v195
    %300 = vmatpush1.bf16.msra.mxu0 %v194
    %301 = vmatprep.subr.bf16.mxu0 %v191
    %302 = vmatpush1.bf16.msra.mxu0 %v190
    %303 = vmatprep.subr.bf16.mxu0 %v187
    %304 = vmatpush1.bf16.msra.mxu0 %v186
    %305 = vmatprep.subr.bf16.mxu0 0
    %306 = vmatpush2.bf16.msra.mxu0 0
    %307 = vmatprep.subr.bf16.mxu0 0
    %308 = vmatpush2.bf16.msra.mxu0 0
    %309 = vmatprep.subr.bf16.mxu0 0
    %310 = vmatpush2.bf16.msra.mxu0 0
    %311 = vmatprep.subr.bf16.mxu0 0
    %312 = vmatpush2.bf16.msra.mxu0 0
    %313 = vmatprep.subr.bf16.mxu0 0
    %314 = vmatpush2.bf16.msra.mxu0 0
    %315 = vmatprep.subr.bf16.mxu0 0
    %316 = vmatpush2.bf16.msra.mxu0 0
    %317 = vmatprep.subr.bf16.mxu0 0
    %318 = vmatpush2.bf16.msra.mxu0 0
    %319 = vmatprep.subr.bf16.mxu0 0
    %320 = vmatpush2.bf16.msra.mxu0 0
    %321 = vmatprep.mubr.bf16.mxu0 0
    %322 = vmatmul.mubr.bf16.gmra.mxu0 %v55
    %v323 = vpop.f32.mrf.mxu0
    %v324 = vadd.f32 0.0, %v323
    %v325 = vpop.f32.mrf.mxu0
    %v326 = vadd.f32 0.0, %v325
    %v327 = vpop.f32.mrf.mxu0
    %v328 = vpop.f32.mrf.mxu0
    %329 = vdwg.mxu0
    %v330 = vadd.f32 %v49, %v283
    %v331 = vadd.f32 %v50, %v285
    %v332 = vadd.f32 %v51, %v324
    %v333 = vadd.f32 %v52, %v326
    %v334 = vmul.f32 %v330, 0.5
    %v335 = vtanh.pop %v334
    %v336 = vmul.f32 %v335, 0.5
    %v337 = vadd.f32 %v336, 0.5
    %v338 = vmul.f32 %v331, 0.5
    %v339 = vtanh.pop %v338
    %v340 = vmul.f32 %v339, 0.5
    %v341 = vadd.f32 %v340, 0.5
    %v342 = vtanh.pop %v332
    %v343 = vmul.f32 %v333, 0.5
    %v344 = vtanh.pop %v343
    %v345 = vmul.f32 %v344, 0.5
    %v346 = vadd.f32 %v345, 0.5
    %v347 = vmul.f32 %v341, %v54
    %v348 = vmul.f32 %v337, %v342
    %v349 = vadd.f32 %v347, %v348
    %v350 = vtanh.pop %v349
    %v351 = vmul.f32 %v346, %v350
    %352 = vst [vmem:[#allocation3] sm:$0xff] %v349
    %353 = vst [vmem:[#allocation2] sm:$0xff] %v351
    %v354 = vpack.c.bf16 %v351, %v351
    %355 = vst [vmem:[#allocation9] sm:$0xf] %v354
    %s356 = scalar_lea.vmem [#allocation4], 16
    %v357 = vld [vmem:[%s356] sm:$0xff]
    %v358 = vld [vmem:[%s356 + $0x8] sm:$0xff]
    %v359 = vunpack.c.l.bf16 %v357
    %v360 = vunpack.c.h.bf16 %v357
    %v361 = vunpack.c.l.bf16 %v358
    %v362 = vunpack.c.h.bf16 %v358
    %v363 = vld [vmem:[#allocation2] sm:$0xff]
    %v364 = vld [vmem:[#allocation3] sm:$0xff]
    %v365 = vpack.c.bf16 %v363, %v363
    %v366 = vld [vmem:[#allocation7] sm:$0xff]
    %v367 = vld [vmem:[#allocation7 + $0x8] sm:$0xff]
    %v368 = vld [vmem:[#allocation7 + $0x10] sm:$0xff]
    %v369 = vld [vmem:[#allocation7 + $0x18] sm:$0xff]
    %v370 = vld [vmem:[#allocation7 + $0x20] sm:$0xff]
    %v371 = vld [vmem:[#allocation7 + $0x28] sm:$0xff]
    %v372 = vld [vmem:[#allocation7 + $0x30] sm:$0xff]
    %v373 = vld [vmem:[#allocation7 + $0x38] sm:$0xff]
    %v374 = vld [vmem:[#allocation7 + $0x40] sm:$0xff]
    %v375 = vld [vmem:[#allocation7 + $0x48] sm:$0xff]
    %v376 = vld [vmem:[#allocation7 + $0x50] sm:$0xff]
    %v377 = vld [vmem:[#allocation7 + $0x58] sm:$0xff]
    %v378 = vld [vmem:[#allocation7 + $0x60] sm:$0xff]
    %v379 = vld [vmem:[#allocation7 + $0x68] sm:$0xff]
    %v380 = vld [vmem:[#allocation7 + $0x70] sm:$0xff]
    %v381 = vld [vmem:[#allocation7 + $0x78] sm:$0xff]
    %v382 = vld [vmem:[#allocation7 + $0x80] sm:$0xff]
    %v383 = vld [vmem:[#allocation7 + $0x88] sm:$0xff]
    %v384 = vld [vmem:[#allocation7 + $0x90] sm:$0xff]
    %v385 = vld [vmem:[#allocation7 + $0x98] sm:$0xff]
    %v386 = vld [vmem:[#allocation7 + $0xa0] sm:$0xff]
    %v387 = vld [vmem:[#allocation7 + $0xa8] sm:$0xff]
    %v388 = vld [vmem:[#allocation7 + $0xb0] sm:$0xff]
    %v389 = vld [vmem:[#allocation7 + $0xb8] sm:$0xff]
    %v390 = vld [vmem:[#allocation7 + $0xc0] sm:$0xff]
    %v391 = vld [vmem:[#allocation7 + $0xc8] sm:$0xff]
    %v392 = vld [vmem:[#allocation7 + $0xd0] sm:$0xff]
    %v393 = vld [vmem:[#allocation7 + $0xd8] sm:$0xff]
    %v394 = vld [vmem:[#allocation7 + $0xe0] sm:$0xff]
    %v395 = vld [vmem:[#allocation7 + $0xe8] sm:$0xff]
    %v396 = vld [vmem:[#allocation7 + $0xf0] sm:$0xff]
    %v397 = vld [vmem:[#allocation7 + $0xf8] sm:$0xff]
    %v430 = vunpack.c.l.b16 %v366
    %v431 = vunpack.c.h.b16 %v366
    %v432 = vunpack.c.l.b16 %v367
    %v433 = vunpack.c.h.b16 %v367
    %v434 = vunpack.c.l.b16 %v368
    %v435 = vunpack.c.h.b16 %v368
    %v436 = vunpack.c.l.b16 %v369
    %v437 = vunpack.c.h.b16 %v369
    %v438 = vunpack.c.l.b16 %v370
    %v439 = vunpack.c.h.b16 %v370
    %v440 = vunpack.c.l.b16 %v371
    %v441 = vunpack.c.h.b16 %v371
    %v442 = vunpack.c.l.b16 %v372
    %v443 = vunpack.c.h.b16 %v372
    %v444 = vunpack.c.l.b16 %v373
    %v445 = vunpack.c.h.b16 %v373
    %v446 = vunpack.c.l.b16 %v374
    %v447 = vunpack.c.h.b16 %v374
    %v448 = vunpack.c.l.b16 %v375
    %v449 = vunpack.c.h.b16 %v375
    %v450 = vunpack.c.l.b16 %v376
    %v451 = vunpack.c.h.b16 %v376
    %v452 = vunpack.c.l.b16 %v377
    %v453 = vunpack.c.h.b16 %v377
    %v454 = vunpack.c.l.b16 %v378
    %v455 = vunpack.c.h.b16 %v378
    %v456 = vunpack.c.l.b16 %v379
    %v457 = vunpack.c.h.b16 %v379
    %v458 = vunpack.c.l.b16 %v380
    %v459 = vunpack.c.h.b16 %v380
    %v460 = vunpack.c.l.b16 %v381
    %v461 = vunpack.c.h.b16 %v381
    %v462 = vunpack.c.l.b16 %v382
    %v463 = vunpack.c.h.b16 %v382
    %v464 = vunpack.c.l.b16 %v383
    %v465 = vunpack.c.h.b16 %v383
    %v466 = vunpack.c.l.b16 %v384
    %v467 = vunpack.c.h.b16 %v384
    %v468 = vunpack.c.l.b16 %v385
    %v469 = vunpack.c.h.b16 %v385
    %v470 = vunpack.c.l.b16 %v386
    %v471 = vunpack.c.h.b16 %v386
    %v472 = vunpack.c.l.b16 %v387
    %v473 = vunpack.c.h.b16 %v387
    %v474 = vunpack.c.l.b16 %v388
    %v475 = vunpack.c.h.b16 %v388
    %v476 = vunpack.c.l.b16 %v389
    %v477 = vunpack.c.h.b16 %v389
    %v478 = vunpack.c.l.b16 %v390
    %v479 = vunpack.c.h.b16 %v390
    %v480 = vunpack.c.l.b16 %v391
    %v481 = vunpack.c.h.b16 %v391
    %v482 = vunpack.c.l.b16 %v392
    %v483 = vunpack.c.h.b16 %v392
    %v484 = vunpack.c.l.b16 %v393
    %v485 = vunpack.c.h.b16 %v393
    %v486 = vunpack.c.l.b16 %v394
    %v487 = vunpack.c.h.b16 %v394
    %v488 = vunpack.c.l.b16 %v395
    %v489 = vunpack.c.h.b16 %v395
    %v490 = vunpack.c.l.b16 %v396
    %v491 = vunpack.c.h.b16 %v396
    %v492 = vunpack.c.l.b16 %v397
    %v493 = vunpack.c.h.b16 %v397
    %v494 = vpack.c.b16 %v434, %v430
    %v495 = vpack.c.b16 %v435, %v431
    %v496 = vpack.c.b16 %v436, %v432
    %v497 = vpack.c.b16 %v437, %v433
    %v498 = vpack.c.b16 %v442, %v438
    %v499 = vpack.c.b16 %v443, %v439
    %v500 = vpack.c.b16 %v444, %v440
    %v501 = vpack.c.b16 %v445, %v441
    %v502 = vpack.c.b16 %v450, %v446
    %v503 = vpack.c.b16 %v451, %v447
    %v504 = vpack.c.b16 %v452, %v448
    %v505 = vpack.c.b16 %v453, %v449
    %v506 = vpack.c.b16 %v458, %v454
    %v507 = vpack.c.b16 %v459, %v455
    %v508 = vpack.c.b16 %v460, %v456
    %v509 = vpack.c.b16 %v461, %v457
    %v510 = vpack.c.b16 %v466, %v462
    %v511 = vpack.c.b16 %v467, %v463
    %v512 = vpack.c.b16 %v468, %v464
    %v513 = vpack.c.b16 %v469, %v465
    %v514 = vpack.c.b16 %v474, %v470
    %v515 = vpack.c.b16 %v475, %v471
    %v516 = vpack.c.b16 %v476, %v472
    %v517 = vpack.c.b16 %v477, %v473
    %v518 = vpack.c.b16 %v482, %v478
    %v519 = vpack.c.b16 %v483, %v479
    %v520 = vpack.c.b16 %v484, %v480
    %v521 = vpack.c.b16 %v485, %v481
    %v522 = vpack.c.b16 %v490, %v486
    %v523 = vpack.c.b16 %v491, %v487
    %v524 = vpack.c.b16 %v492, %v488
    %v525 = vpack.c.b16 %v493, %v489
    %558 = vmatprep.subr.bf16.mxu0 %v523
    %559 = vmatpush1.bf16.msra.mxu0 %v522
    %560 = vmatprep.subr.bf16.mxu0 %v519
    %561 = vmatpush1.bf16.msra.mxu0 %v518
    %562 = vmatprep.subr.bf16.mxu0 %v515
    %563 = vmatpush1.bf16.msra.mxu0 %v514
    %564 = vmatprep.subr.bf16.mxu0 %v511
    %565 = vmatpush1.bf16.msra.mxu0 %v510
    %566 = vmatprep.subr.bf16.mxu0 %v507
    %567 = vmatpush1.bf16.msra.mxu0 %v506
    %568 = vmatprep.subr.bf16.mxu0 %v503
    %569 = vmatpush1.bf16.msra.mxu0 %v502
    %570 = vmatprep.subr.bf16.mxu0 %v499
    %571 = vmatpush1.bf16.msra.mxu0 %v498
    %572 = vmatprep.subr.bf16.mxu0 %v495
    %573 = vmatpush1.bf16.msra.mxu0 %v494
    %574 = vmatprep.subr.bf16.mxu0 0
    %575 = vmatpush2.bf16.msra.mxu0 0
    %576 = vmatprep.subr.bf16.mxu0 0
    %577 = vmatpush2.bf16.msra.mxu0 0
    %578 = vmatprep.subr.bf16.mxu0 0
    %579 = vmatpush2.bf16.msra.mxu0 0
    %580 = vmatprep.subr.bf16.mxu0 0
    %581 = vmatpush2.bf16.msra.mxu0 0
    %582 = vmatprep.subr.bf16.mxu0 0
    %583 = vmatpush2.bf16.msra.mxu0 0
    %584 = vmatprep.subr.bf16.mxu0 0
    %585 = vmatpush2.bf16.msra.mxu0 0
    %586 = vmatprep.subr.bf16.mxu0 0
    %587 = vmatpush2.bf16.msra.mxu0 0
    %588 = vmatprep.subr.bf16.mxu0 0
    %589 = vmatpush2.bf16.msra.mxu0 0
    %590 = vmatprep.mubr.bf16.mxu0 0
    %591 = vmatmul.mubr.bf16.gmra.mxu0 %v365
    %v592 = vpop.f32.mrf.mxu0
    %v593 = vadd.f32 0.0, %v592
    %v594 = vpop.f32.mrf.mxu0
    %v595 = vadd.f32 0.0, %v594
    %v596 = vpop.f32.mrf.mxu0
    %v597 = vpop.f32.mrf.mxu0
    %598 = vdwg.mxu0
    %599 = vmatprep.subr.bf16.mxu0 %v525
    %600 = vmatpush1.bf16.msra.mxu0 %v524
    %601 = vmatprep.subr.bf16.mxu0 %v521
    %602 = vmatpush1.bf16.msra.mxu0 %v520
    %603 = vmatprep.subr.bf16.mxu0 %v517
    %604 = vmatpush1.bf16.msra.mxu0 %v516
    %605 = vmatprep.subr.bf16.mxu0 %v513
    %606 = vmatpush1.bf16.msra.mxu0 %v512
    %607 = vmatprep.subr.bf16.mxu0 %v509
    %608 = vmatpush1.bf16.msra.mxu0 %v508
    %609 = vmatprep.subr.bf16.mxu0 %v505
    %610 = vmatpush1.bf16.msra.mxu0 %v504
    %611 = vmatprep.subr.bf16.mxu0 %v501
    %612 = vmatpush1.bf16.msra.mxu0 %v500
    %613 = vmatprep.subr.bf16.mxu0 %v497
    %614 = vmatpush1.bf16.msra.mxu0 %v496
    %615 = vmatprep.subr.bf16.mxu0 0
    %616 = vmatpush2.bf16.msra.mxu0 0
    %617 = vmatprep.subr.bf16.mxu0 0
    %618 = vmatpush2.bf16.msra.mxu0 0
    %619 = vmatprep.subr.bf16.mxu0 0
    %620 = vmatpush2.bf16.msra.mxu0 0
    %621 = vmatprep.subr.bf16.mxu0 0
    %622 = vmatpush2.bf16.msra.mxu0 0
    %623 = vmatprep.subr.bf16.mxu0 0
    %624 = vmatpush2.bf16.msra.mxu0 0
    %625 = vmatprep.subr.bf16.mxu0 0
    %626 = vmatpush2.bf16.msra.mxu0 0
    %627 = vmatprep.subr.bf16.mxu0 0
    %628 = vmatpush2.bf16.msra.mxu0 0
    %629 = vmatprep.subr.bf16.mxu0 0
    %630 = vmatpush2.bf16.msra.mxu0 0
    %631 = vmatprep.mubr.bf16.mxu0 0
    %632 = vmatmul.mubr.bf16.gmra.mxu0 %v365
    %v633 = vpop.f32.mrf.mxu0
    %v634 = vadd.f32 0.0, %v633
    %v635 = vpop.f32.mrf.mxu0
    %v636 = vadd.f32 0.0, %v635
    %v637 = vpop.f32.mrf.mxu0
    %v638 = vpop.f32.mrf.mxu0
    %639 = vdwg.mxu0
    %v640 = vadd.f32 %v359, %v593
    %v641 = vadd.f32 %v360, %v595
    %v642 = vadd.f32 %v361, %v634
    %v643 = vadd.f32 %v362, %v636
    %v644 = vmul.f32 %v640, 0.5
    %v645 = vtanh.pop %v644
    %v646 = vmul.f32 %v645, 0.5
    %v647 = vadd.f32 %v646, 0.5
    %v648 = vmul.f32 %v641, 0.5
    %v649 = vtanh.pop %v648
    %v650 = vmul.f32 %v649, 0.5
    %v651 = vadd.f32 %v650, 0.5
    %v652 = vtanh.pop %v642
    %v653 = vmul.f32 %v643, 0.5
    %v654 = vtanh.pop %v653
    %v655 = vmul.f32 %v654, 0.5
    %v656 = vadd.f32 %v655, 0.5
    %v657 = vmul.f32 %v651, %v364
    %v658 = vmul.f32 %v647, %v652
    %v659 = vadd.f32 %v657, %v658
    %v660 = vtanh.pop %v659
    %v661 = vmul.f32 %v656, %v660
    %662 = vst [vmem:[#allocation3] sm:$0xff] %v659
    %663 = vst [vmem:[#allocation2] sm:$0xff] %v661
    %v664 = vpack.c.bf16 %v661, %v661
    %s665 = scalar_lea.vmem [#allocation9], 4
    %666 = vst [vmem:[%s665] sm:$0xf] %v664
    %s667 = scalar_lea.vmem [#allocation4], 32
    %v668 = vld [vmem:[%s667] sm:$0xff]
    %v669 = vld [vmem:[%s667 + $0x8] sm:$0xff]
    %v670 = vunpack.c.l.bf16 %v668
    %v671 = vunpack.c.h.bf16 %v668
    %v672 = vunpack.c.l.bf16 %v669
    %v673 = vunpack.c.h.bf16 %v669
    %v674 = vld [vmem:[#allocation2] sm:$0xff]
    %v675 = vld [vmem:[#allocation3] sm:$0xff]
    %v676 = vpack.c.bf16 %v674, %v674
    %v677 = vld [vmem:[#allocation7] sm:$0xff]
    %v678 = vld [vmem:[#allocation7 + $0x8] sm:$0xff]
    %v679 = vld [vmem:[#allocation7 + $0x10] sm:$0xff]
    %v680 = vld [vmem:[#allocation7 + $0x18] sm:$0xff]
    %v681 = vld [vmem:[#allocation7 + $0x20] sm:$0xff]
    %v682 = vld [vmem:[#allocation7 + $0x28] sm:$0xff]
    %v683 = vld [vmem:[#allocation7 + $0x30] sm:$0xff]
    %v684 = vld [vmem:[#allocation7 + $0x38] sm:$0xff]
    %v685 = vld [vmem:[#allocation7 + $0x40] sm:$0xff]
    %v686 = vld [vmem:[#allocation7 + $0x48] sm:$0xff]
    %v687 = vld [vmem:[#allocation7 + $0x50] sm:$0xff]
    %v688 = vld [vmem:[#allocation7 + $0x58] sm:$0xff]
    %v689 = vld [vmem:[#allocation7 + $0x60] sm:$0xff]
    %v690 = vld [vmem:[#allocation7 + $0x68] sm:$0xff]
    %v691 = vld [vmem:[#allocation7 + $0x70] sm:$0xff]
    %v692 = vld [vmem:[#allocation7 + $0x78] sm:$0xff]
    %v693 = vld [vmem:[#allocation7 + $0x80] sm:$0xff]
    %v694 = vld [vmem:[#allocation7 + $0x88] sm:$0xff]
    %v695 = vld [vmem:[#allocation7 + $0x90] sm:$0xff]
    %v696 = vld [vmem:[#allocation7 + $0x98] sm:$0xff]
    %v697 = vld [vmem:[#allocation7 + $0xa0] sm:$0xff]
    %v698 = vld [vmem:[#allocation7 + $0xa8] sm:$0xff]
    %v699 = vld [vmem:[#allocation7 + $0xb0] sm:$0xff]
    %v700 = vld [vmem:[#allocation7 + $0xb8] sm:$0xff]
    %v701 = vld [vmem:[#allocation7 + $0xc0] sm:$0xff]
    %v702 = vld [vmem:[#allocation7 + $0xc8] sm:$0xff]
    %v703 = vld [vmem:[#allocation7 + $0xd0] sm:$0xff]
    %v704 = vld [vmem:[#allocation7 + $0xd8] sm:$0xff]
    %v705 = vld [vmem:[#allocation7 + $0xe0] sm:$0xff]
    %v706 = vld [vmem:[#allocation7 + $0xe8] sm:$0xff]
    %v707 = vld [vmem:[#allocation7 + $0xf0] sm:$0xff]
    %v708 = vld [vmem:[#allocation7 + $0xf8] sm:$0xff]
    %v741 = vunpack.c.l.b16 %v677
    %v742 = vunpack.c.h.b16 %v677
    %v743 = vunpack.c.l.b16 %v678
    %v744 = vunpack.c.h.b16 %v678
    %v745 = vunpack.c.l.b16 %v679
    %v746 = vunpack.c.h.b16 %v679
    %v747 = vunpack.c.l.b16 %v680
    %v748 = vunpack.c.h.b16 %v680
    %v749 = vunpack.c.l.b16 %v681
    %v750 = vunpack.c.h.b16 %v681
    %v751 = vunpack.c.l.b16 %v682
    %v752 = vunpack.c.h.b16 %v682
    %v753 = vunpack.c.l.b16 %v683
    %v754 = vunpack.c.h.b16 %v683
    %v755 = vunpack.c.l.b16 %v684
    %v756 = vunpack.c.h.b16 %v684
    %v757 = vunpack.c.l.b16 %v685
    %v758 = vunpack.c.h.b16 %v685
    %v759 = vunpack.c.l.b16 %v686
    %v760 = vunpack.c.h.b16 %v686
    %v761 = vunpack.c.l.b16 %v687
    %v762 = vunpack.c.h.b16 %v687
    %v763 = vunpack.c.l.b16 %v688
    %v764 = vunpack.c.h.b16 %v688
    %v765 = vunpack.c.l.b16 %v689
    %v766 = vunpack.c.h.b16 %v689
    %v767 = vunpack.c.l.b16 %v690
    %v768 = vunpack.c.h.b16 %v690
    %v769 = vunpack.c.l.b16 %v691
    %v770 = vunpack.c.h.b16 %v691
    %v771 = vunpack.c.l.b16 %v692
    %v772 = vunpack.c.h.b16 %v692
    %v773 = vunpack.c.l.b16 %v693
    %v774 = vunpack.c.h.b16 %v693
    %v775 = vunpack.c.l.b16 %v694
    %v776 = vunpack.c.h.b16 %v694
    %v777 = vunpack.c.l.b16 %v695
    %v778 = vunpack.c.h.b16 %v695
    %v779 = vunpack.c.l.b16 %v696
    %v780 = vunpack.c.h.b16 %v696
    %v781 = vunpack.c.l.b16 %v697
    %v782 = vunpack.c.h.b16 %v697
    %v783 = vunpack.c.l.b16 %v698
    %v784 = vunpack.c.h.b16 %v698
    %v785 = vunpack.c.l.b16 %v699
    %v786 = vunpack.c.h.b16 %v699
    %v787 = vunpack.c.l.b16 %v700
    %v788 = vunpack.c.h.b16 %v700
    %v789 = vunpack.c.l.b16 %v701
    %v790 = vunpack.c.h.b16 %v701
    %v791 = vunpack.c.l.b16 %v702
    %v792 = vunpack.c.h.b16 %v702
    %v793 = vunpack.c.l.b16 %v703
    %v794 = vunpack.c.h.b16 %v703
    %v795 = vunpack.c.l.b16 %v704
    %v796 = vunpack.c.h.b16 %v704
    %v797 = vunpack.c.l.b16 %v705
    %v798 = vunpack.c.h.b16 %v705
    %v799 = vunpack.c.l.b16 %v706
    %v800 = vunpack.c.h.b16 %v706
    %v801 = vunpack.c.l.b16 %v707
    %v802 = vunpack.c.h.b16 %v707
    %v803 = vunpack.c.l.b16 %v708
    %v804 = vunpack.c.h.b16 %v708
    %v805 = vpack.c.b16 %v745, %v741
    %v806 = vpack.c.b16 %v746, %v742
    %v807 = vpack.c.b16 %v747, %v743
    %v808 = vpack.c.b16 %v748, %v744
    %v809 = vpack.c.b16 %v753, %v749
    %v810 = vpack.c.b16 %v754, %v750
    %v811 = vpack.c.b16 %v755, %v751
    %v812 = vpack.c.b16 %v756, %v752
    %v813 = vpack.c.b16 %v761, %v757
    %v814 = vpack.c.b16 %v762, %v758
    %v815 = vpack.c.b16 %v763, %v759
    %v816 = vpack.c.b16 %v764, %v760
    %v817 = vpack.c.b16 %v769, %v765
    %v818 = vpack.c.b16 %v770, %v766
    %v819 = vpack.c.b16 %v771, %v767
    %v820 = vpack.c.b16 %v772, %v768
    %v821 = vpack.c.b16 %v777, %v773
    %v822 = vpack.c.b16 %v778, %v774
    %v823 = vpack.c.b16 %v779, %v775
    %v824 = vpack.c.b16 %v780, %v776
    %v825 = vpack.c.b16 %v785, %v781
    %v826 = vpack.c.b16 %v786, %v782
    %v827 = vpack.c.b16 %v787, %v783
    %v828 = vpack.c.b16 %v788, %v784
    %v829 = vpack.c.b16 %v793, %v789
    %v830 = vpack.c.b16 %v794, %v790
    %v831 = vpack.c.b16 %v795, %v791
    %v832 = vpack.c.b16 %v796, %v792
    %v833 = vpack.c.b16 %v801, %v797
    %v834 = vpack.c.b16 %v802, %v798
    %v835 = vpack.c.b16 %v803, %v799
    %v836 = vpack.c.b16 %v804, %v800
    %869 = vmatprep.subr.bf16.mxu0 %v834
    %870 = vmatpush1.bf16.msra.mxu0 %v833
    %871 = vmatprep.subr.bf16.mxu0 %v830
    %872 = vmatpush1.bf16.msra.mxu0 %v829
    %873 = vmatprep.subr.bf16.mxu0 %v826
    %874 = vmatpush1.bf16.msra.mxu0 %v825
    %875 = vmatprep.subr.bf16.mxu0 %v822
    %876 = vmatpush1.bf16.msra.mxu0 %v821
    %877 = vmatprep.subr.bf16.mxu0 %v818
    %878 = vmatpush1.bf16.msra.mxu0 %v817
    %879 = vmatprep.subr.bf16.mxu0 %v814
    %880 = vmatpush1.bf16.msra.mxu0 %v813
    %881 = vmatprep.subr.bf16.mxu0 %v810
    %882 = vmatpush1.bf16.msra.mxu0 %v809
    %883 = vmatprep.subr.bf16.mxu0 %v806
    %884 = vmatpush1.bf16.msra.mxu0 %v805
    %885 = vmatprep.subr.bf16.mxu0 0
    %886 = vmatpush2.bf16.msra.mxu0 0
    %887 = vmatprep.subr.bf16.mxu0 0
    %888 = vmatpush2.bf16.msra.mxu0 0
    %889 = vmatprep.subr.bf16.mxu0 0
    %890 = vmatpush2.bf16.msra.mxu0 0
    %891 = vmatprep.subr.bf16.mxu0 0
    %892 = vmatpush2.bf16.msra.mxu0 0
    %893 = vmatprep.subr.bf16.mxu0 0
    %894 = vmatpush2.bf16.msra.mxu0 0
    %895 = vmatprep.subr.bf16.mxu0 0
    %896 = vmatpush2.bf16.msra.mxu0 0
    %897 = vmatprep.subr.bf16.mxu0 0
    %898 = vmatpush2.bf16.msra.mxu0 0
    %899 = vmatprep.subr.bf16.mxu0 0
    %900 = vmatpush2.bf16.msra.mxu0 0
    %901 = vmatprep.mubr.bf16.mxu0 0
    %902 = vmatmul.mubr.bf16.gmra.mxu0 %v676
    %v903 = vpop.f32.mrf.mxu0
    %v904 = vadd.f32 0.0, %v903
    %v905 = vpop.f32.mrf.mxu0
    %v906 = vadd.f32 0.0, %v905
    %v907 = vpop.f32.mrf.mxu0
    %v908 = vpop.f32.mrf.mxu0
    %909 = vdwg.mxu0
    %910 = vmatprep.subr.bf16.mxu0 %v836
    %911 = vmatpush1.bf16.msra.mxu0 %v835
    %912 = vmatprep.subr.bf16.mxu0 %v832
    %913 = vmatpush1.bf16.msra.mxu0 %v831
    %914 = vmatprep.subr.bf16.mxu0 %v828
    %915 = vmatpush1.bf16.msra.mxu0 %v827
    %916 = vmatprep.subr.bf16.mxu0 %v824
    %917 = vmatpush1.bf16.msra.mxu0 %v823
    %918 = vmatprep.subr.bf16.mxu0 %v820
    %919 = vmatpush1.bf16.msra.mxu0 %v819
    %920 = vmatprep.subr.bf16.mxu0 %v816
    %921 = vmatpush1.bf16.msra.mxu0 %v815
    %922 = vmatprep.subr.bf16.mxu0 %v812
    %923 = vmatpush1.bf16.msra.mxu0 %v811
    %924 = vmatprep.subr.bf16.mxu0 %v808
    %925 = vmatpush1.bf16.msra.mxu0 %v807
    %926 = vmatprep.subr.bf16.mxu0 0
    %927 = vmatpush2.bf16.msra.mxu0 0
    %928 = vmatprep.subr.bf16.mxu0 0
    %929 = vmatpush2.bf16.msra.mxu0 0
    %930 = vmatprep.subr.bf16.mxu0 0
    %931 = vmatpush2.bf16.msra.mxu0 0
    %932 = vmatprep.subr.bf16.mxu0 0
    %933 = vmatpush2.bf16.msra.mxu0 0
    %934 = vmatprep.subr.bf16.mxu0 0
    %935 = vmatpush2.bf16.msra.mxu0 0
    %936 = vmatprep.subr.bf16.mxu0 0
    %937 = vmatpush2.bf16.msra.mxu0 0
    %938 = vmatprep.subr.bf16.mxu0 0
    %939 = vmatpush2.bf16.msra.mxu0 0
    %940 = vmatprep.subr.bf16.mxu0 0
    %941 = vmatpush2.bf16.msra.mxu0 0
    %942 = vmatprep.mubr.bf16.mxu0 0
    %943 = vmatmul.mubr.bf16.gmra.mxu0 %v676
    %v944 = vpop.f32.mrf.mxu0
    %v945 = vadd.f32 0.0, %v944
    %v946 = vpop.f32.mrf.mxu0
    %v947 = vadd.f32 0.0, %v946
    %v948 = vpop.f32.mrf.mxu0
    %v949 = vpop.f32.mrf.mxu0
    %950 = vdwg.mxu0
    %v951 = vadd.f32 %v670, %v904
    %v952 = vadd.f32 %v671, %v906
    %v953 = vadd.f32 %v672, %v945
    %v954 = vadd.f32 %v673, %v947
    %v955 = vmul.f32 %v951, 0.5
    %v956 = vtanh.pop %v955
    %v957 = vmul.f32 %v956, 0.5
    %v958 = vadd.f32 %v957, 0.5
    %v959 = vmul.f32 %v952, 0.5
    %v960 = vtanh.pop %v959
    %v961 = vmul.f32 %v960, 0.5
    %v962 = vadd.f32 %v961, 0.5
    %v963 = vtanh.pop %v953
    %v964 = vmul.f32 %v954, 0.5
    %v965 = vtanh.pop %v964
    %v966 = vmul.f32 %v965, 0.5
    %v967 = vadd.f32 %v966, 0.5
    %v968 = vmul.f32 %v962, %v675
    %v969 = vmul.f32 %v958, %v963
    %v970 = vadd.f32 %v968, %v969
    %v971 = vtanh.pop %v970
    %v972 = vmul.f32 %v967, %v971
    %973 = vst [vmem:[#allocation3] sm:$0xff] %v970
    %974 = vst [vmem:[#allocation2] sm:$0xff] %v972
    %v975 = vpack.c.bf16 %v972, %v972
    %s976 = scalar_lea.vmem [#allocation9], 8
    %977 = vst [vmem:[%s976] sm:$0xf] %v975
    %s978 = scalar_lea.vmem [#allocation4], 48
    %v979 = vld [vmem:[%s978] sm:$0xff]
    %v980 = vld [vmem:[%s978 + $0x8] sm:$0xff]
    %v981 = vunpack.c.l.bf16 %v979
    %v982 = vunpack.c.h.bf16 %v979
    %v983 = vunpack.c.l.bf16 %v980
    %v984 = vunpack.c.h.bf16 %v980
    %v985 = vld [vmem:[#allocation2] sm:$0xff]
    %v986 = vld [vmem:[#allocation3] sm:$0xff]
    %v987 = vpack.c.bf16 %v985, %v985
    %v988 = vld [vmem:[#allocation7] sm:$0xff]
    %v989 = vld [vmem:[#allocation7 + $0x8] sm:$0xff]
    %v990 = vld [vmem:[#allocation7 + $0x10] sm:$0xff]
    %v991 = vld [vmem:[#allocation7 + $0x18] sm:$0xff]
    %v992 = vld [vmem:[#allocation7 + $0x20] sm:$0xff]
    %v993 = vld [vmem:[#allocation7 + $0x28] sm:$0xff]
    %v994 = vld [vmem:[#allocation7 + $0x30] sm:$0xff]
    %v995 = vld [vmem:[#allocation7 + $0x38] sm:$0xff]
    %v996 = vld [vmem:[#allocation7 + $0x40] sm:$0xff]
    %v997 = vld [vmem:[#allocation7 + $0x48] sm:$0xff]
    %v998 = vld [vmem:[#allocation7 + $0x50] sm:$0xff]
    %v999 = vld [vmem:[#allocation7 + $0x58] sm:$0xff]
    %v1000 = vld [vmem:[#allocation7 + $0x60] sm:$0xff]
    %v1001 = vld [vmem:[#allocation7 + $0x68] sm:$0xff]
    %v1002 = vld [vmem:[#allocation7 + $0x70] sm:$0xff]
    %v1003 = vld [vmem:[#allocation7 + $0x78] sm:$0xff]
    %v1004 = vld [vmem:[#allocation7 + $0x80] sm:$0xff]
    %v1005 = vld [vmem:[#allocation7 + $0x88] sm:$0xff]
    %v1006 = vld [vmem:[#allocation7 + $0x90] sm:$0xff]
    %v1007 = vld [vmem:[#allocation7 + $0x98] sm:$0xff]
    %v1008 = vld [vmem:[#allocation7 + $0xa0] sm:$0xff]
    %v1009 = vld [vmem:[#allocation7 + $0xa8] sm:$0xff]
    %v1010 = vld [vmem:[#allocation7 + $0xb0] sm:$0xff]
    %v1011 = vld [vmem:[#allocation7 + $0xb8] sm:$0xff]
    %v1012 = vld [vmem:[#allocation7 + $0xc0] sm:$0xff]
    %v1013 = vld [vmem:[#allocation7 + $0xc8] sm:$0xff]
    %v1014 = vld [vmem:[#allocation7 + $0xd0] sm:$0xff]
    %v1015 = vld [vmem:[#allocation7 + $0xd8] sm:$0xff]
    %v1016 = vld [vmem:[#allocation7 + $0xe0] sm:$0xff]
    %v1017 = vld [vmem:[#allocation7 + $0xe8] sm:$0xff]
    %v1018 = vld [vmem:[#allocation7 + $0xf0] sm:$0xff]
    %v1019 = vld [vmem:[#allocation7 + $0xf8] sm:$0xff]
    %v1052 = vunpack.c.l.b16 %v988
    %v1053 = vunpack.c.h.b16 %v988
    %v1054 = vunpack.c.l.b16 %v989
    %v1055 = vunpack.c.h.b16 %v989
    %v1056 = vunpack.c.l.b16 %v990
    %v1057 = vunpack.c.h.b16 %v990
    %v1058 = vunpack.c.l.b16 %v991
    %v1059 = vunpack.c.h.b16 %v991
    %v1060 = vunpack.c.l.b16 %v992
    %v1061 = vunpack.c.h.b16 %v992
    %v1062 = vunpack.c.l.b16 %v993
    %v1063 = vunpack.c.h.b16 %v993
    %v1064 = vunpack.c.l.b16 %v994
    %v1065 = vunpack.c.h.b16 %v994
    %v1066 = vunpack.c.l.b16 %v995
    %v1067 = vunpack.c.h.b16 %v995
    %v1068 = vunpack.c.l.b16 %v996
    %v1069 = vunpack.c.h.b16 %v996
    %v1070 = vunpack.c.l.b16 %v997
    %v1071 = vunpack.c.h.b16 %v997
    %v1072 = vunpack.c.l.b16 %v998
    %v1073 = vunpack.c.h.b16 %v998
    %v1074 = vunpack.c.l.b16 %v999
    %v1075 = vunpack.c.h.b16 %v999
    %v1076 = vunpack.c.l.b16 %v1000
    %v1077 = vunpack.c.h.b16 %v1000
    %v1078 = vunpack.c.l.b16 %v1001
    %v1079 = vunpack.c.h.b16 %v1001
    %v1080 = vunpack.c.l.b16 %v1002
    %v1081 = vunpack.c.h.b16 %v1002
    %v1082 = vunpack.c.l.b16 %v1003
    %v1083 = vunpack.c.h.b16 %v1003
    %v1084 = vunpack.c.l.b16 %v1004
    %v1085 = vunpack.c.h.b16 %v1004
    %v1086 = vunpack.c.l.b16 %v1005
    %v1087 = vunpack.c.h.b16 %v1005
    %v1088 = vunpack.c.l.b16 %v1006
    %v1089 = vunpack.c.h.b16 %v1006
    %v1090 = vunpack.c.l.b16 %v1007
    %v1091 = vunpack.c.h.b16 %v1007
    %v1092 = vunpack.c.l.b16 %v1008
    %v1093 = vunpack.c.h.b16 %v1008
    %v1094 = vunpack.c.l.b16 %v1009
    %v1095 = vunpack.c.h.b16 %v1009
    %v1096 = vunpack.c.l.b16 %v1010
    %v1097 = vunpack.c.h.b16 %v1010
    %v1098 = vunpack.c.l.b16 %v1011
    %v1099 = vunpack.c.h.b16 %v1011
    %v1100 = vunpack.c.l.b16 %v1012
    %v1101 = vunpack.c.h.b16 %v1012
    %v1102 = vunpack.c.l.b16 %v1013
    %v1103 = vunpack.c.h.b16 %v1013
    %v1104 = vunpack.c.l.b16 %v1014
    %v1105 = vunpack.c.h.b16 %v1014
    %v1106 = vunpack.c.l.b16 %v1015
    %v1107 = vunpack.c.h.b16 %v1015
    %v1108 = vunpack.c.l.b16 %v1016
    %v1109 = vunpack.c.h.b16 %v1016
    %v1110 = vunpack.c.l.b16 %v1017
    %v1111 = vunpack.c.h.b16 %v1017
    %v1112 = vunpack.c.l.b16 %v1018
    %v1113 = vunpack.c.h.b16 %v1018
    %v1114 = vunpack.c.l.b16 %v1019
    %v1115 = vunpack.c.h.b16 %v1019
    %v1116 = vpack.c.b16 %v1056, %v1052
    %v1117 = vpack.c.b16 %v1057, %v1053
    %v1118 = vpack.c.b16 %v1058, %v1054
    %v1119 = vpack.c.b16 %v1059, %v1055
    %v1120 = vpack.c.b16 %v1064, %v1060
    %v1121 = vpack.c.b16 %v1065, %v1061
    %v1122 = vpack.c.b16 %v1066, %v1062
    %v1123 = vpack.c.b16 %v1067, %v1063
    %v1124 = vpack.c.b16 %v1072, %v1068
    %v1125 = vpack.c.b16 %v1073, %v1069
    %v1126 = vpack.c.b16 %v1074, %v1070
    %v1127 = vpack.c.b16 %v1075, %v1071
    %v1128 = vpack.c.b16 %v1080, %v1076
    %v1129 = vpack.c.b16 %v1081, %v1077
    %v1130 = vpack.c.b16 %v1082, %v1078
    %v1131 = vpack.c.b16 %v1083, %v1079
    %v1132 = vpack.c.b16 %v1088, %v1084
    %v1133 = vpack.c.b16 %v1089, %v1085
    %v1134 = vpack.c.b16 %v1090, %v1086
    %v1135 = vpack.c.b16 %v1091, %v1087
    %v1136 = vpack.c.b16 %v1096, %v1092
    %v1137 = vpack.c.b16 %v1097, %v1093
    %v1138 = vpack.c.b16 %v1098, %v1094
    %v1139 = vpack.c.b16 %v1099, %v1095
    %v1140 = vpack.c.b16 %v1104, %v1100
    %v1141 = vpack.c.b16 %v1105, %v1101
    %v1142 = vpack.c.b16 %v1106, %v1102
    %v1143 = vpack.c.b16 %v1107, %v1103
    %v1144 = vpack.c.b16 %v1112, %v1108
    %v1145 = vpack.c.b16 %v1113, %v1109
    %v1146 = vpack.c.b16 %v1114, %v1110
    %v1147 = vpack.c.b16 %v1115, %v1111
    %1180 = vmatprep.subr.bf16.mxu0 %v1145
    %1181 = vmatpush1.bf16.msra.mxu0 %v1144
    %1182 = vmatprep.subr.bf16.mxu0 %v1141
    %1183 = vmatpush1.bf16.msra.mxu0 %v1140
    %1184 = vmatprep.subr.bf16.mxu0 %v1137
    %1185 = vmatpush1.bf16.msra.mxu0 %v1136
    %1186 = vmatprep.subr.bf16.mxu0 %v1133
    %1187 = vmatpush1.bf16.msra.mxu0 %v1132
    %1188 = vmatprep.subr.bf16.mxu0 %v1129
    %1189 = vmatpush1.bf16.msra.mxu0 %v1128
    %1190 = vmatprep.subr.bf16.mxu0 %v1125
    %1191 = vmatpush1.bf16.msra.mxu0 %v1124
    %1192 = vmatprep.subr.bf16.mxu0 %v1121
    %1193 = vmatpush1.bf16.msra.mxu0 %v1120
    %1194 = vmatprep.subr.bf16.mxu0 %v1117
    %1195 = vmatpush1.bf16.msra.mxu0 %v1116
    %1196 = vmatprep.subr.bf16.mxu0 0
    %1197 = vmatpush2.bf16.msra.mxu0 0
    %1198 = vmatprep.subr.bf16.mxu0 0
    %1199 = vmatpush2.bf16.msra.mxu0 0
    %1200 = vmatprep.subr.bf16.mxu0 0
    %1201 = vmatpush2.bf16.msra.mxu0 0
    %1202 = vmatprep.subr.bf16.mxu0 0
    %1203 = vmatpush2.bf16.msra.mxu0 0
    %1204 = vmatprep.subr.bf16.mxu0 0
    %1205 = vmatpush2.bf16.msra.mxu0 0
    %1206 = vmatprep.subr.bf16.mxu0 0
    %1207 = vmatpush2.bf16.msra.mxu0 0
    %1208 = vmatprep.subr.bf16.mxu0 0
    %1209 = vmatpush2.bf16.msra.mxu0 0
    %1210 = vmatprep.subr.bf16.mxu0 0
    %1211 = vmatpush2.bf16.msra.mxu0 0
    %1212 = vmatprep.mubr.bf16.mxu0 0
    %1213 = vmatmul.mubr.bf16.gmra.mxu0 %v987
    %v1214 = vpop.f32.mrf.mxu0
    %v1215 = vadd.f32 0.0, %v1214
    %v1216 = vpop.f32.mrf.mxu0
    %v1217 = vadd.f32 0.0, %v1216
    %v1218 = vpop.f32.mrf.mxu0
    %v1219 = vpop.f32.mrf.mxu0
    %1220 = vdwg.mxu0
    %1221 = vmatprep.subr.bf16.mxu0 %v1147
    %1222 = vmatpush1.bf16.msra.mxu0 %v1146
    %1223 = vmatprep.subr.bf16.mxu0 %v1143
    %1224 = vmatpush1.bf16.msra.mxu0 %v1142
    %1225 = vmatprep.subr.bf16.mxu0 %v1139
    %1226 = vmatpush1.bf16.msra.mxu0 %v1138
    %1227 = vmatprep.subr.bf16.mxu0 %v1135
    %1228 = vmatpush1.bf16.msra.mxu0 %v1134
    %1229 = vmatprep.subr.bf16.mxu0 %v1131
    %1230 = vmatpush1.bf16.msra.mxu0 %v1130
    %1231 = vmatprep.subr.bf16.mxu0 %v1127
    %1232 = vmatpush1.bf16.msra.mxu0 %v1126
    %1233 = vmatprep.subr.bf16.mxu0 %v1123
    %1234 = vmatpush1.bf16.msra.mxu0 %v1122
    %1235 = vmatprep.subr.bf16.mxu0 %v1119
    %1236 = vmatpush1.bf16.msra.mxu0 %v1118
    %1237 = vmatprep.subr.bf16.mxu0 0
    %1238 = vmatpush2.bf16.msra.mxu0 0
    %1239 = vmatprep.subr.bf16.mxu0 0
    %1240 = vmatpush2.bf16.msra.mxu0 0
    %1241 = vmatprep.subr.bf16.mxu0 0
    %1242 = vmatpush2.bf16.msra.mxu0 0
    %1243 = vmatprep.subr.bf16.mxu0 0
    %1244 = vmatpush2.bf16.msra.mxu0 0
    %1245 = vmatprep.subr.bf16.mxu0 0
    %1246 = vmatpush2.bf16.msra.mxu0 0
    %1247 = vmatprep.subr.bf16.mxu0 0
    %1248 = vmatpush2.bf16.msra.mxu0 0
    %1249 = vmatprep.subr.bf16.mxu0 0
    %1250 = vmatpush2.bf16.msra.mxu0 0
    %1251 = vmatprep.subr.bf16.mxu0 0
    %1252 = vmatpush2.bf16.msra.mxu0 0
    %1253 = vmatprep.mubr.bf16.mxu0 0
    %1254 = vmatmul.mubr.bf16.gmra.mxu0 %v987
    %v1255 = vpop.f32.mrf.mxu0
    %v1256 = vadd.f32 0.0, %v1255
    %v1257 = vpop.f32.mrf.mxu0
    %v1258 = vadd.f32 0.0, %v1257
    %v1259 = vpop.f32.mrf.mxu0
    %v1260 = vpop.f32.mrf.mxu0
    %1261 = vdwg.mxu0
    %v1262 = vadd.f32 %v981, %v1215
    %v1263 = vadd.f32 %v982, %v1217
    %v1264 = vadd.f32 %v983, %v1256
    %v1265 = vadd.f32 %v984, %v1258
    %v1266 = vmul.f32 %v1262, 0.5
    %v1267 = vtanh.pop %v1266
    %v1268 = vmul.f32 %v1267, 0.5
    %v1269 = vadd.f32 %v1268, 0.5
    %v1270 = vmul.f32 %v1263, 0.5
    %v1271 = vtanh.pop %v1270
    %v1272 = vmul.f32 %v1271, 0.5
    %v1273 = vadd.f32 %v1272, 0.5
    %v1274 = vtanh.pop %v1264
    %v1275 = vmul.f32 %v1265, 0.5
    %v1276 = vtanh.pop %v1275
    %v1277 = vmul.f32 %v1276, 0.5
    %v1278 = vadd.f32 %v1277, 0.5
    %v1279 = vmul.f32 %v1273, %v986
    %v1280 = vmul.f32 %v1269, %v1274
    %v1281 = vadd.f32 %v1279, %v1280
    %v1282 = vtanh.pop %v1281
    %v1283 = vmul.f32 %v1278, %v1282
    %1284 = vst [vmem:[#allocation3] sm:$0xff] %v1281
    %1285 = vst [vmem:[#allocation2] sm:$0xff] %v1283
    %v1286 = vpack.c.bf16 %v1283, %v1283
    %s1287 = scalar_lea.vmem [#allocation9], 12
    %1288 = vst [vmem:[%s1287] sm:$0xf] %v1286
    %s1289 = scalar_lea.vmem [#allocation4], 64
    %v1290 = vld [vmem:[%s1289] sm:$0xff]
    %v1291 = vld [vmem:[%s1289 + $0x8] sm:$0xff]
    %v1292 = vunpack.c.l.bf16 %v1290
    %v1293 = vunpack.c.h.bf16 %v1290
    %v1294 = vunpack.c.l.bf16 %v1291
    %v1295 = vunpack.c.h.bf16 %v1291
    %v1296 = vld [vmem:[#allocation2] sm:$0xff]
    %v1297 = vld [vmem:[#allocation3] sm:$0xff]
    %v1298 = vpack.c.bf16 %v1296, %v1296
    %v1299 = vld [vmem:[#allocation7] sm:$0xff]
    %v1300 = vld [vmem:[#allocation7 + $0x8] sm:$0xff]
    %v1301 = vld [vmem:[#allocation7 + $0x10] sm:$0xff]
    %v1302 = vld [vmem:[#allocation7 + $0x18] sm:$0xff]
    %v1303 = vld [vmem:[#allocation7 + $0x20] sm:$0xff]
    %v1304 = vld [vmem:[#allocation7 + $0x28] sm:$0xff]
    %v1305 = vld [vmem:[#allocation7 + $0x30] sm:$0xff]
    %v1306 = vld [vmem:[#allocation7 + $0x38] sm:$0xff]
    %v1307 = vld [vmem:[#allocation7 + $0x40] sm:$0xff]
    %v1308 = vld [vmem:[#allocation7 + $0x48] sm:$0xff]
    %v1309 = vld [vmem:[#allocation7 + $0x50] sm:$0xff]
    %v1310 = vld [vmem:[#allocation7 + $0x58] sm:$0xff]
    %v1311 = vld [vmem:[#allocation7 + $0x60] sm:$0xff]
    %v1312 = vld [vmem:[#allocation7 + $0x68] sm:$0xff]
    %v1313 = vld [vmem:[#allocation7 + $0x70] sm:$0xff]
    %v1314 = vld [vmem:[#allocation7 + $0x78] sm:$0xff]
    %v1315 = vld [vmem:[#allocation7 + $0x80] sm:$0xff]
    %v1316 = vld [vmem:[#allocation7 + $0x88] sm:$0xff]
    %v1317 = vld [vmem:[#allocation7 + $0x90] sm:$0xff]
    %v1318 = vld [vmem:[#allocation7 + $0x98] sm:$0xff]
    %v1319 = vld [vmem:[#allocation7 + $0xa0] sm:$0xff]
    %v1320 = vld [vmem:[#allocation7 + $0xa8] sm:$0xff]
    %v1321 = vld [vmem:[#allocation7 + $0xb0] sm:$0xff]
    %v1322 = vld [vmem:[#allocation7 + $0xb8] sm:$0xff]
    %v1323 = vld [vmem:[#allocation7 + $0xc0] sm:$0xff]
    %v1324 = vld [vmem:[#allocation7 + $0xc8] sm:$0xff]
    %v1325 = vld [vmem:[#allocation7 + $0xd0] sm:$0xff]
    %v1326 = vld [vmem:[#allocation7 + $0xd8] sm:$0xff]
    %v1327 = vld [vmem:[#allocation7 + $0xe0] sm:$0xff]
    %v1328 = vld [vmem:[#allocation7 + $0xe8] sm:$0xff]
    %v1329 = vld [vmem:[#allocation7 + $0xf0] sm:$0xff]
    %v1330 = vld [vmem:[#allocation7 + $0xf8] sm:$0xff]
    %v1363 = vunpack.c.l.b16 %v1299
    %v1364 = vunpack.c.h.b16 %v1299
    %v1365 = vunpack.c.l.b16 %v1300
    %v1366 = vunpack.c.h.b16 %v1300
    %v1367 = vunpack.c.l.b16 %v1301
    %v1368 = vunpack.c.h.b16 %v1301
    %v1369 = vunpack.c.l.b16 %v1302
    %v1370 = vunpack.c.h.b16 %v1302
    %v1371 = vunpack.c.l.b16 %v1303
    %v1372 = vunpack.c.h.b16 %v1303
    %v1373 = vunpack.c.l.b16 %v1304
    %v1374 = vunpack.c.h.b16 %v1304
    %v1375 = vunpack.c.l.b16 %v1305
    %v1376 = vunpack.c.h.b16 %v1305
    %v1377 = vunpack.c.l.b16 %v1306
    %v1378 = vunpack.c.h.b16 %v1306
    %v1379 = vunpack.c.l.b16 %v1307
    %v1380 = vunpack.c.h.b16 %v1307
    %v1381 = vunpack.c.l.b16 %v1308
    %v1382 = vunpack.c.h.b16 %v1308
    %v1383 = vunpack.c.l.b16 %v1309
    %v1384 = vunpack.c.h.b16 %v1309
    %v1385 = vunpack.c.l.b16 %v1310
    %v1386 = vunpack.c.h.b16 %v1310
    %v1387 = vunpack.c.l.b16 %v1311
    %v1388 = vunpack.c.h.b16 %v1311
    %v1389 = vunpack.c.l.b16 %v1312
    %v1390 = vunpack.c.h.b16 %v1312
    %v1391 = vunpack.c.l.b16 %v1313
    %v1392 = vunpack.c.h.b16 %v1313
    %v1393 = vunpack.c.l.b16 %v1314
    %v1394 = vunpack.c.h.b16 %v1314
    %v1395 = vunpack.c.l.b16 %v1315
    %v1396 = vunpack.c.h.b16 %v1315
    %v1397 = vunpack.c.l.b16 %v1316
    %v1398 = vunpack.c.h.b16 %v1316
    %v1399 = vunpack.c.l.b16 %v1317
    %v1400 = vunpack.c.h.b16 %v1317
    %v1401 = vunpack.c.l.b16 %v1318
    %v1402 = vunpack.c.h.b16 %v1318
    %v1403 = vunpack.c.l.b16 %v1319
    %v1404 = vunpack.c.h.b16 %v1319
    %v1405 = vunpack.c.l.b16 %v1320
    %v1406 = vunpack.c.h.b16 %v1320
    %v1407 = vunpack.c.l.b16 %v1321
    %v1408 = vunpack.c.h.b16 %v1321
    %v1409 = vunpack.c.l.b16 %v1322
    %v1410 = vunpack.c.h.b16 %v1322
    %v1411 = vunpack.c.l.b16 %v1323
    %v1412 = vunpack.c.h.b16 %v1323
    %v1413 = vunpack.c.l.b16 %v1324
    %v1414 = vunpack.c.h.b16 %v1324
    %v1415 = vunpack.c.l.b16 %v1325
    %v1416 = vunpack.c.h.b16 %v1325
    %v1417 = vunpack.c.l.b16 %v1326
    %v1418 = vunpack.c.h.b16 %v1326
    %v1419 = vunpack.c.l.b16 %v1327
    %v1420 = vunpack.c.h.b16 %v1327
    %v1421 = vunpack.c.l.b16 %v1328
    %v1422 = vunpack.c.h.b16 %v1328
    %v1423 = vunpack.c.l.b16 %v1329
    %v1424 = vunpack.c.h.b16 %v1329
    %v1425 = vunpack.c.l.b16 %v1330
    %v1426 = vunpack.c.h.b16 %v1330
    %v1427 = vpack.c.b16 %v1367, %v1363
    %v1428 = vpack.c.b16 %v1368, %v1364
    %v1429 = vpack.c.b16 %v1369, %v1365
    %v1430 = vpack.c.b16 %v1370, %v1366
    %v1431 = vpack.c.b16 %v1375, %v1371
    %v1432 = vpack.c.b16 %v1376, %v1372
    %v1433 = vpack.c.b16 %v1377, %v1373
    %v1434 = vpack.c.b16 %v1378, %v1374
    %v1435 = vpack.c.b16 %v1383, %v1379
    %v1436 = vpack.c.b16 %v1384, %v1380
    %v1437 = vpack.c.b16 %v1385, %v1381
    %v1438 = vpack.c.b16 %v1386, %v1382
    %v1439 = vpack.c.b16 %v1391, %v1387
    %v1440 = vpack.c.b16 %v1392, %v1388
    %v1441 = vpack.c.b16 %v1393, %v1389
    %v1442 = vpack.c.b16 %v1394, %v1390
    %v1443 = vpack.c.b16 %v1399, %v1395
    %v1444 = vpack.c.b16 %v1400, %v1396
    %v1445 = vpack.c.b16 %v1401, %v1397
    %v1446 = vpack.c.b16 %v1402, %v1398
    %v1447 = vpack.c.b16 %v1407, %v1403
    %v1448 = vpack.c.b16 %v1408, %v1404
    %v1449 = vpack.c.b16 %v1409, %v1405
    %v1450 = vpack.c.b16 %v1410, %v1406
    %v1451 = vpack.c.b16 %v1415, %v1411
    %v1452 = vpack.c.b16 %v1416, %v1412
    %v1453 = vpack.c.b16 %v1417, %v1413
    %v1454 = vpack.c.b16 %v1418, %v1414
    %v1455 = vpack.c.b16 %v1423, %v1419
    %v1456 = vpack.c.b16 %v1424, %v1420
    %v1457 = vpack.c.b16 %v1425, %v1421
    %v1458 = vpack.c.b16 %v1426, %v1422
    %1491 = vmatprep.subr.bf16.mxu0 %v1456
    %1492 = vmatpush1.bf16.msra.mxu0 %v1455
    %1493 = vmatprep.subr.bf16.mxu0 %v1452
    %1494 = vmatpush1.bf16.msra.mxu0 %v1451
    %1495 = vmatprep.subr.bf16.mxu0 %v1448
    %1496 = vmatpush1.bf16.msra.mxu0 %v1447
    %1497 = vmatprep.subr.bf16.mxu0 %v1444
    %1498 = vmatpush1.bf16.msra.mxu0 %v1443
    %1499 = vmatprep.subr.bf16.mxu0 %v1440
    %1500 = vmatpush1.bf16.msra.mxu0 %v1439
    %1501 = vmatprep.subr.bf16.mxu0 %v1436
    %1502 = vmatpush1.bf16.msra.mxu0 %v1435
    %1503 = vmatprep.subr.bf16.mxu0 %v1432
    %1504 = vmatpush1.bf16.msra.mxu0 %v1431
    %1505 = vmatprep.subr.bf16.mxu0 %v1428
    %1506 = vmatpush1.bf16.msra.mxu0 %v1427
    %1507 = vmatprep.subr.bf16.mxu0 0
    %1508 = vmatpush2.bf16.msra.mxu0 0
    %1509 = vmatprep.subr.bf16.mxu0 0
    %1510 = vmatpush2.bf16.msra.mxu0 0
    %1511 = vmatprep.subr.bf16.mxu0 0
    %1512 = vmatpush2.bf16.msra.mxu0 0
    %1513 = vmatprep.subr.bf16.mxu0 0
    %1514 = vmatpush2.bf16.msra.mxu0 0
    %1515 = vmatprep.subr.bf16.mxu0 0
    %1516 = vmatpush2.bf16.msra.mxu0 0
    %1517 = vmatprep.subr.bf16.mxu0 0
    %1518 = vmatpush2.bf16.msra.mxu0 0
    %1519 = vmatprep.subr.bf16.mxu0 0
    %1520 = vmatpush2.bf16.msra.mxu0 0
    %1521 = vmatprep.subr.bf16.mxu0 0
    %1522 = vmatpush2.bf16.msra.mxu0 0
    %1523 = vmatprep.mubr.bf16.mxu0 0
    %1524 = vmatmul.mubr.bf16.gmra.mxu0 %v1298
    %v1525 = vpop.f32.mrf.mxu0
    %v1526 = vadd.f32 0.0, %v1525
    %v1527 = vpop.f32.mrf.mxu0
    %v1528 = vadd.f32 0.0, %v1527
    %v1529 = vpop.f32.mrf.mxu0
    %v1530 = vpop.f32.mrf.mxu0
    %1531 = vdwg.mxu0
    %1532 = vmatprep.subr.bf16.mxu0 %v1458
    %1533 = vmatpush1.bf16.msra.mxu0 %v1457
    %1534 = vmatprep.subr.bf16.mxu0 %v1454
    %1535 = vmatpush1.bf16.msra.mxu0 %v1453
    %1536 = vmatprep.subr.bf16.mxu0 %v1450
    %1537 = vmatpush1.bf16.msra.mxu0 %v1449
    %1538 = vmatprep.subr.bf16.mxu0 %v1446
    %1539 = vmatpush1.bf16.msra.mxu0 %v1445
    %1540 = vmatprep.subr.bf16.mxu0 %v1442
    %1541 = vmatpush1.bf16.msra.mxu0 %v1441
    %1542 = vmatprep.subr.bf16.mxu0 %v1438
    %1543 = vmatpush1.bf16.msra.mxu0 %v1437
    %1544 = vmatprep.subr.bf16.mxu0 %v1434
    %1545 = vmatpush1.bf16.msra.mxu0 %v1433
    %1546 = vmatprep.subr.bf16.mxu0 %v1430
    %1547 = vmatpush1.bf16.msra.mxu0 %v1429
    %1548 = vmatprep.subr.bf16.mxu0 0
    %1549 = vmatpush2.bf16.msra.mxu0 0
    %1550 = vmatprep.subr.bf16.mxu0 0
    %1551 = vmatpush2.bf16.msra.mxu0 0
    %1552 = vmatprep.subr.bf16.mxu0 0
    %1553 = vmatpush2.bf16.msra.mxu0 0
    %1554 = vmatprep.subr.bf16.mxu0 0
    %1555 = vmatpush2.bf16.msra.mxu0 0
    %1556 = vmatprep.subr.bf16.mxu0 0
    %1557 = vmatpush2.bf16.msra.mxu0 0
    %1558 = vmatprep.subr.bf16.mxu0 0
    %1559 = vmatpush2.bf16.msra.mxu0 0
    %1560 = vmatprep.subr.bf16.mxu0 0
    %1561 = vmatpush2.bf16.msra.mxu0 0
    %1562 = vmatprep.subr.bf16.mxu0 0
    %1563 = vmatpush2.bf16.msra.mxu0 0
    %1564 = vmatprep.mubr.bf16.mxu0 0
    %1565 = vmatmul.mubr.bf16.gmra.mxu0 %v1298
    %v1566 = vpop.f32.mrf.mxu0
    %v1567 = vadd.f32 0.0, %v1566
    %v1568 = vpop.f32.mrf.mxu0
    %v1569 = vadd.f32 0.0, %v1568
    %v1570 = vpop.f32.mrf.mxu0
    %v1571 = vpop.f32.mrf.mxu0
    %1572 = vdwg.mxu0
    %v1573 = vadd.f32 %v1292, %v1526
    %v1574 = vadd.f32 %v1293, %v1528
    %v1575 = vadd.f32 %v1294, %v1567
    %v1576 = vadd.f32 %v1295, %v1569
    %v1577 = vmul.f32 %v1573, 0.5
    %v1578 = vtanh.pop %v1577
    %v1579 = vmul.f32 %v1578, 0.5
    %v1580 = vadd.f32 %v1579, 0.5
    %v1581 = vmul.f32 %v1574, 0.5
    %v1582 = vtanh.pop %v1581
    %v1583 = vmul.f32 %v1582, 0.5
    %v1584 = vadd.f32 %v1583, 0.5
    %v1585 = vtanh.pop %v1575
    %v1586 = vmul.f32 %v1576, 0.5
    %v1587 = vtanh.pop %v1586
    %v1588 = vmul.f32 %v1587, 0.5
    %v1589 = vadd.f32 %v1588, 0.5
    %v1590 = vmul.f32 %v1584, %v1297
    %v1591 = vmul.f32 %v1580, %v1585
    %v1592 = vadd.f32 %v1590, %v1591
    %v1593 = vtanh.pop %v1592
    %v1594 = vmul.f32 %v1589, %v1593
    %1595 = vst [vmem:[#allocation3] sm:$0xff] %v1592
    %1596 = vst [vmem:[#allocation2] sm:$0xff] %v1594
    %v1597 = vpack.c.bf16 %v1594, %v1594
    %s1598 = scalar_lea.vmem [#allocation9], 16
    %1599 = vst [vmem:[%s1598] sm:$0xf] %v1597
    %s1600 = scalar_lea.vmem [#allocation4], 80
    %v1601 = vld [vmem:[%s1600] sm:$0xff]
    %v1602 = vld [vmem:[%s1600 + $0x8] sm:$0xff]
    %v1603 = vunpack.c.l.bf16 %v1601
    %v1604 = vunpack.c.h.bf16 %v1601
    %v1605 = vunpack.c.l.bf16 %v1602
    %v1606 = vunpack.c.h.bf16 %v1602
    %v1607 = vld [vmem:[#allocation2] sm:$0xff]
    %v1608 = vld [vmem:[#allocation3] sm:$0xff]
    %v1609 = vpack.c.bf16 %v1607, %v1607
    %v1610 = vld [vmem:[#allocation7] sm:$0xff]
    %v1611 = vld [vmem:[#allocation7 + $0x8] sm:$0xff]
    %v1612 = vld [vmem:[#allocation7 + $0x10] sm:$0xff]
    %v1613 = vld [vmem:[#allocation7 + $0x18] sm:$0xff]
    %v1614 = vld [vmem:[#allocation7 + $0x20] sm:$0xff]
    %v1615 = vld [vmem:[#allocation7 + $0x28] sm:$0xff]
    %v1616 = vld [vmem:[#allocation7 + $0x30] sm:$0xff]
    %v1617 = vld [vmem:[#allocation7 + $0x38] sm:$0xff]
    %v1618 = vld [vmem:[#allocation7 + $0x40] sm:$0xff]
    %v1619 = vld [vmem:[#allocation7 + $0x48] sm:$0xff]
    %v1620 = vld [vmem:[#allocation7 + $0x50] sm:$0xff]
    %v1621 = vld [vmem:[#allocation7 + $0x58] sm:$0xff]
    %v1622 = vld [vmem:[#allocation7 + $0x60] sm:$0xff]
    %v1623 = vld [vmem:[#allocation7 + $0x68] sm:$0xff]
    %v1624 = vld [vmem:[#allocation7 + $0x70] sm:$0xff]
    %v1625 = vld [vmem:[#allocation7 + $0x78] sm:$0xff]
    %v1626 = vld [vmem:[#allocation7 + $0x80] sm:$0xff]
    %v1627 = vld [vmem:[#allocation7 + $0x88] sm:$0xff]
    %v1628 = vld [vmem:[#allocation7 + $0x90] sm:$0xff]
    %v1629 = vld [vmem:[#allocation7 + $0x98] sm:$0xff]
    %v1630 = vld [vmem:[#allocation7 + $0xa0] sm:$0xff]
    %v1631 = vld [vmem:[#allocation7 + $0xa8] sm:$0xff]
    %v1632 = vld [vmem:[#allocation7 + $0xb0] sm:$0xff]
    %v1633 = vld [vmem:[#allocation7 + $0xb8] sm:$0xff]
    %v1634 = vld [vmem:[#allocation7 + $0xc0] sm:$0xff]
    %v1635 = vld [vmem:[#allocation7 + $0xc8] sm:$0xff]
    %v1636 = vld [vmem:[#allocation7 + $0xd0] sm:$0xff]
    %v1637 = vld [vmem:[#allocation7 + $0xd8] sm:$0xff]
    %v1638 = vld [vmem:[#allocation7 + $0xe0] sm:$0xff]
    %v1639 = vld [vmem:[#allocation7 + $0xe8] sm:$0xff]
    %v1640 = vld [vmem:[#allocation7 + $0xf0] sm:$0xff]
    %v1641 = vld [vmem:[#allocation7 + $0xf8] sm:$0xff]
    %v1674 = vunpack.c.l.b16 %v1610
    %v1675 = vunpack.c.h.b16 %v1610
    %v1676 = vunpack.c.l.b16 %v1611
    %v1677 = vunpack.c.h.b16 %v1611
    %v1678 = vunpack.c.l.b16 %v1612
    %v1679 = vunpack.c.h.b16 %v1612
    %v1680 = vunpack.c.l.b16 %v1613
    %v1681 = vunpack.c.h.b16 %v1613
    %v1682 = vunpack.c.l.b16 %v1614
    %v1683 = vunpack.c.h.b16 %v1614
    %v1684 = vunpack.c.l.b16 %v1615
    %v1685 = vunpack.c.h.b16 %v1615
    %v1686 = vunpack.c.l.b16 %v1616
    %v1687 = vunpack.c.h.b16 %v1616
    %v1688 = vunpack.c.l.b16 %v1617
    %v1689 = vunpack.c.h.b16 %v1617
    %v1690 = vunpack.c.l.b16 %v1618
    %v1691 = vunpack.c.h.b16 %v1618
    %v1692 = vunpack.c.l.b16 %v1619
    %v1693 = vunpack.c.h.b16 %v1619
    %v1694 = vunpack.c.l.b16 %v1620
    %v1695 = vunpack.c.h.b16 %v1620
    %v1696 = vunpack.c.l.b16 %v1621
    %v1697 = vunpack.c.h.b16 %v1621
    %v1698 = vunpack.c.l.b16 %v1622
    %v1699 = vunpack.c.h.b16 %v1622
    %v1700 = vunpack.c.l.b16 %v1623
    %v1701 = vunpack.c.h.b16 %v1623
    %v1702 = vunpack.c.l.b16 %v1624
    %v1703 = vunpack.c.h.b16 %v1624
    %v1704 = vunpack.c.l.b16 %v1625
    %v1705 = vunpack.c.h.b16 %v1625
    %v1706 = vunpack.c.l.b16 %v1626
    %v1707 = vunpack.c.h.b16 %v1626
    %v1708 = vunpack.c.l.b16 %v1627
    %v1709 = vunpack.c.h.b16 %v1627
    %v1710 = vunpack.c.l.b16 %v1628
    %v1711 = vunpack.c.h.b16 %v1628
    %v1712 = vunpack.c.l.b16 %v1629
    %v1713 = vunpack.c.h.b16 %v1629
    %v1714 = vunpack.c.l.b16 %v1630
    %v1715 = vunpack.c.h.b16 %v1630
    %v1716 = vunpack.c.l.b16 %v1631
    %v1717 = vunpack.c.h.b16 %v1631
    %v1718 = vunpack.c.l.b16 %v1632
    %v1719 = vunpack.c.h.b16 %v1632
    %v1720 = vunpack.c.l.b16 %v1633
    %v1721 = vunpack.c.h.b16 %v1633
    %v1722 = vunpack.c.l.b16 %v1634
    %v1723 = vunpack.c.h.b16 %v1634
    %v1724 = vunpack.c.l.b16 %v1635
    %v1725 = vunpack.c.h.b16 %v1635
    %v1726 = vunpack.c.l.b16 %v1636
    %v1727 = vunpack.c.h.b16 %v1636
    %v1728 = vunpack.c.l.b16 %v1637
    %v1729 = vunpack.c.h.b16 %v1637
    %v1730 = vunpack.c.l.b16 %v1638
    %v1731 = vunpack.c.h.b16 %v1638
    %v1732 = vunpack.c.l.b16 %v1639
    %v1733 = vunpack.c.h.b16 %v1639
    %v1734 = vunpack.c.l.b16 %v1640
    %v1735 = vunpack.c.h.b16 %v1640
    %v1736 = vunpack.c.l.b16 %v1641
    %v1737 = vunpack.c.h.b16 %v1641
    %v1738 = vpack.c.b16 %v1678, %v1674
    %v1739 = vpack.c.b16 %v1679, %v1675
    %v1740 = vpack.c.b16 %v1680, %v1676
    %v1741 = vpack.c.b16 %v1681, %v1677
    %v1742 = vpack.c.b16 %v1686, %v1682
    %v1743 = vpack.c.b16 %v1687, %v1683
    %v1744 = vpack.c.b16 %v1688, %v1684
    %v1745 = vpack.c.b16 %v1689, %v1685
    %v1746 = vpack.c.b16 %v1694, %v1690
    %v1747 = vpack.c.b16 %v1695, %v1691
    %v1748 = vpack.c.b16 %v1696, %v1692
    %v1749 = vpack.c.b16 %v1697, %v1693
    %v1750 = vpack.c.b16 %v1702, %v1698
    %v1751 = vpack.c.b16 %v1703, %v1699
    %v1752 = vpack.c.b16 %v1704, %v1700
    %v1753 = vpack.c.b16 %v1705, %v1701
    %v1754 = vpack.c.b16 %v1710, %v1706
    %v1755 = vpack.c.b16 %v1711, %v1707
    %v1756 = vpack.c.b16 %v1712, %v1708
    %v1757 = vpack.c.b16 %v1713, %v1709
    %v1758 = vpack.c.b16 %v1718, %v1714
    %v1759 = vpack.c.b16 %v1719, %v1715
    %v1760 = vpack.c.b16 %v1720, %v1716
    %v1761 = vpack.c.b16 %v1721, %v1717
    %v1762 = vpack.c.b16 %v1726, %v1722
    %v1763 = vpack.c.b16 %v1727, %v1723
    %v1764 = vpack.c.b16 %v1728, %v1724
    %v1765 = vpack.c.b16 %v1729, %v1725
    %v1766 = vpack.c.b16 %v1734, %v1730
    %v1767 = vpack.c.b16 %v1735, %v1731
    %v1768 = vpack.c.b16 %v1736, %v1732
    %v1769 = vpack.c.b16 %v1737, %v1733
    %1802 = vmatprep.subr.bf16.mxu0 %v1767
    %1803 = vmatpush1.bf16.msra.mxu0 %v1766
    %1804 = vmatprep.subr.bf16.mxu0 %v1763
    %1805 = vmatpush1.bf16.msra.mxu0 %v1762
    %1806 = vmatprep.subr.bf16.mxu0 %v1759
    %1807 = vmatpush1.bf16.msra.mxu0 %v1758
    %1808 = vmatprep.subr.bf16.mxu0 %v1755
    %1809 = vmatpush1.bf16.msra.mxu0 %v1754
    %1810 = vmatprep.subr.bf16.mxu0 %v1751
    %1811 = vmatpush1.bf16.msra.mxu0 %v1750
    %1812 = vmatprep.subr.bf16.mxu0 %v1747
    %1813 = vmatpush1.bf16.msra.mxu0 %v1746
    %1814 = vmatprep.subr.bf16.mxu0 %v1743
    %1815 = vmatpush1.bf16.msra.mxu0 %v1742
    %1816 = vmatprep.subr.bf16.mxu0 %v1739
    %1817 = vmatpush1.bf16.msra.mxu0 %v1738
    %1818 = vmatprep.subr.bf16.mxu0 0
    %1819 = vmatpush2.bf16.msra.mxu0 0
    %1820 = vmatprep.subr.bf16.mxu0 0
    %1821 = vmatpush2.bf16.msra.mxu0 0
    %1822 = vmatprep.subr.bf16.mxu0 0
    %1823 = vmatpush2.bf16.msra.mxu0 0
    %1824 = vmatprep.subr.bf16.mxu0 0
    %1825 = vmatpush2.bf16.msra.mxu0 0
    %1826 = vmatprep.subr.bf16.mxu0 0
    %1827 = vmatpush2.bf16.msra.mxu0 0
    %1828 = vmatprep.subr.bf16.mxu0 0
    %1829 = vmatpush2.bf16.msra.mxu0 0
    %1830 = vmatprep.subr.bf16.mxu0 0
    %1831 = vmatpush2.bf16.msra.mxu0 0
    %1832 = vmatprep.subr.bf16.mxu0 0
    %1833 = vmatpush2.bf16.msra.mxu0 0
    %1834 = vmatprep.mubr.bf16.mxu0 0
    %1835 = vmatmul.mubr.bf16.gmra.mxu0 %v1609
    %v1836 = vpop.f32.mrf.mxu0
    %v1837 = vadd.f32 0.0, %v1836
    %v1838 = vpop.f32.mrf.mxu0
    %v1839 = vadd.f32 0.0, %v1838
    %v1840 = vpop.f32.mrf.mxu0
    %v1841 = vpop.f32.mrf.mxu0
    %1842 = vdwg.mxu0
    %1843 = vmatprep.subr.bf16.mxu0 %v1769
    %1844 = vmatpush1.bf16.msra.mxu0 %v1768
    %1845 = vmatprep.subr.bf16.mxu0 %v1765
    %1846 = vmatpush1.bf16.msra.mxu0 %v1764
    %1847 = vmatprep.subr.bf16.mxu0 %v1761
    %1848 = vmatpush1.bf16.msra.mxu0 %v1760
    %1849 = vmatprep.subr.bf16.mxu0 %v1757
    %1850 = vmatpush1.bf16.msra.mxu0 %v1756
    %1851 = vmatprep.subr.bf16.mxu0 %v1753
    %1852 = vmatpush1.bf16.msra.mxu0 %v1752
    %1853 = vmatprep.subr.bf16.mxu0 %v1749
    %1854 = vmatpush1.bf16.msra.mxu0 %v1748
    %1855 = vmatprep.subr.bf16.mxu0 %v1745
    %1856 = vmatpush1.bf16.msra.mxu0 %v1744
    %1857 = vmatprep.subr.bf16.mxu0 %v1741
    %1858 = vmatpush1.bf16.msra.mxu0 %v1740
    %1859 = vmatprep.subr.bf16.mxu0 0
    %1860 = vmatpush2.bf16.msra.mxu0 0
    %1861 = vmatprep.subr.bf16.mxu0 0
    %1862 = vmatpush2.bf16.msra.mxu0 0
    %1863 = vmatprep.subr.bf16.mxu0 0
    %1864 = vmatpush2.bf16.msra.mxu0 0
    %1865 = vmatprep.subr.bf16.mxu0 0
    %1866 = vmatpush2.bf16.msra.mxu0 0
    %1867 = vmatprep.subr.bf16.mxu0 0
    %1868 = vmatpush2.bf16.msra.mxu0 0
    %1869 = vmatprep.subr.bf16.mxu0 0
    %1870 = vmatpush2.bf16.msra.mxu0 0
    %1871 = vmatprep.subr.bf16.mxu0 0
    %1872 = vmatpush2.bf16.msra.mxu0 0
    %1873 = vmatprep.subr.bf16.mxu0 0
    %1874 = vmatpush2.bf16.msra.mxu0 0
    %1875 = vmatprep.mubr.bf16.mxu0 0
    %1876 = vmatmul.mubr.bf16.gmra.mxu0 %v1609
    %v1877 = vpop.f32.mrf.mxu0
    %v1878 = vadd.f32 0.0, %v1877
    %v1879 = vpop.f32.mrf.mxu0
    %v1880 = vadd.f32 0.0, %v1879
    %v1881 = vpop.f32.mrf.mxu0
    %v1882 = vpop.f32.mrf.mxu0
    %1883 = vdwg.mxu0
    %v1884 = vadd.f32 %v1603, %v1837
    %v1885 = vadd.f32 %v1604, %v1839
    %v1886 = vadd.f32 %v1605, %v1878
    %v1887 = vadd.f32 %v1606, %v1880
    %v1888 = vmul.f32 %v1884, 0.5
    %v1889 = vtanh.pop %v1888
    %v1890 = vmul.f32 %v1889, 0.5
    %v1891 = vadd.f32 %v1890, 0.5
    %v1892 = vmul.f32 %v1885, 0.5
    %v1893 = vtanh.pop %v1892
    %v1894 = vmul.f32 %v1893, 0.5
    %v1895 = vadd.f32 %v1894, 0.5
    %v1896 = vtanh.pop %v1886
    %v1897 = vmul.f32 %v1887, 0.5
    %v1898 = vtanh.pop %v1897
    %v1899 = vmul.f32 %v1898, 0.5
    %v1900 = vadd.f32 %v1899, 0.5
    %v1901 = vmul.f32 %v1895, %v1608
    %v1902 = vmul.f32 %v1891, %v1896
    %v1903 = vadd.f32 %v1901, %v1902
    %v1904 = vtanh.pop %v1903
    %v1905 = vmul.f32 %v1900, %v1904
    %1906 = vst [vmem:[#allocation3] sm:$0xff] %v1903
    %1907 = vst [vmem:[#allocation2] sm:$0xff] %v1905
    %v1908 = vpack.c.bf16 %v1905, %v1905
    %s1909 = scalar_lea.vmem [#allocation9], 20
    %1910 = vst [vmem:[%s1909] sm:$0xf] %v1908
    %s1911 = scalar_lea.vmem [#allocation4], 96
    %v1912 = vld [vmem:[%s1911] sm:$0xff]
    %v1913 = vld [vmem:[%s1911 + $0x8] sm:$0xff]
    %v1914 = vunpack.c.l.bf16 %v1912
    %v1915 = vunpack.c.h.bf16 %v1912
    %v1916 = vunpack.c.l.bf16 %v1913
    %v1917 = vunpack.c.h.bf16 %v1913
    %v1918 = vld [vmem:[#allocation2] sm:$0xff]
    %v1919 = vld [vmem:[#allocation3] sm:$0xff]
    %v1920 = vpack.c.bf16 %v1918, %v1918
    %v1921 = vld [vmem:[#allocation7] sm:$0xff]
    %v1922 = vld [vmem:[#allocation7 + $0x8] sm:$0xff]
    %v1923 = vld [vmem:[#allocation7 + $0x10] sm:$0xff]
    %v1924 = vld [vmem:[#allocation7 + $0x18] sm:$0xff]
    %v1925 = vld [vmem:[#allocation7 + $0x20] sm:$0xff]
    %v1926 = vld [vmem:[#allocation7 + $0x28] sm:$0xff]
    %v1927 = vld [vmem:[#allocation7 + $0x30] sm:$0xff]
    %v1928 = vld [vmem:[#allocation7 + $0x38] sm:$0xff]
    %v1929 = vld [vmem:[#allocation7 + $0x40] sm:$0xff]
    %v1930 = vld [vmem:[#allocation7 + $0x48] sm:$0xff]
    %v1931 = vld [vmem:[#allocation7 + $0x50] sm:$0xff]
    %v1932 = vld [vmem:[#allocation7 + $0x58] sm:$0xff]
    %v1933 = vld [vmem:[#allocation7 + $0x60] sm:$0xff]
    %v1934 = vld [vmem:[#allocation7 + $0x68] sm:$0xff]
    %v1935 = vld [vmem:[#allocation7 + $0x70] sm:$0xff]
    %v1936 = vld [vmem:[#allocation7 + $0x78] sm:$0xff]
    %v1937 = vld [vmem:[#allocation7 + $0x80] sm:$0xff]
    %v1938 = vld [vmem:[#allocation7 + $0x88] sm:$0xff]
    %v1939 = vld [vmem:[#allocation7 + $0x90] sm:$0xff]
    %v1940 = vld [vmem:[#allocation7 + $0x98] sm:$0xff]
    %v1941 = vld [vmem:[#allocation7 + $0xa0] sm:$0xff]
    %v1942 = vld [vmem:[#allocation7 + $0xa8] sm:$0xff]
    %v1943 = vld [vmem:[#allocation7 + $0xb0] sm:$0xff]
    %v1944 = vld [vmem:[#allocation7 + $0xb8] sm:$0xff]
    %v1945 = vld [vmem:[#allocation7 + $0xc0] sm:$0xff]
    %v1946 = vld [vmem:[#allocation7 + $0xc8] sm:$0xff]
    %v1947 = vld [vmem:[#allocation7 + $0xd0] sm:$0xff]
    %v1948 = vld [vmem:[#allocation7 + $0xd8] sm:$0xff]
    %v1949 = vld [vmem:[#allocation7 + $0xe0] sm:$0xff]
    %v1950 = vld [vmem:[#allocation7 + $0xe8] sm:$0xff]
    %v1951 = vld [vmem:[#allocation7 + $0xf0] sm:$0xff]
    %v1952 = vld [vmem:[#allocation7 + $0xf8] sm:$0xff]
    %v1985 = vunpack.c.l.b16 %v1921
    %v1986 = vunpack.c.h.b16 %v1921
    %v1987 = vunpack.c.l.b16 %v1922
    %v1988 = vunpack.c.h.b16 %v1922
    %v1989 = vunpack.c.l.b16 %v1923
    %v1990 = vunpack.c.h.b16 %v1923
    %v1991 = vunpack.c.l.b16 %v1924
    %v1992 = vunpack.c.h.b16 %v1924
    %v1993 = vunpack.c.l.b16 %v1925
    %v1994 = vunpack.c.h.b16 %v1925
    %v1995 = vunpack.c.l.b16 %v1926
    %v1996 = vunpack.c.h.b16 %v1926
    %v1997 = vunpack.c.l.b16 %v1927
    %v1998 = vunpack.c.h.b16 %v1927
    %v1999 = vunpack.c.l.b16 %v1928
    %v2000 = vunpack.c.h.b16 %v1928
    %v2001 = vunpack.c.l.b16 %v1929
    %v2002 = vunpack.c.h.b16 %v1929
    %v2003 = vunpack.c.l.b16 %v1930
    %v2004 = vunpack.c.h.b16 %v1930
    %v2005 = vunpack.c.l.b16 %v1931
    %v2006 = vunpack.c.h.b16 %v1931
    %v2007 = vunpack.c.l.b16 %v1932
    %v2008 = vunpack.c.h.b16 %v1932
    %v2009 = vunpack.c.l.b16 %v1933
    %v2010 = vunpack.c.h.b16 %v1933
    %v2011 = vunpack.c.l.b16 %v1934
    %v2012 = vunpack.c.h.b16 %v1934
    %v2013 = vunpack.c.l.b16 %v1935
    %v2014 = vunpack.c.h.b16 %v1935
    %v2015 = vunpack.c.l.b16 %v1936
    %v2016 = vunpack.c.h.b16 %v1936
    %v2017 = vunpack.c.l.b16 %v1937
    %v2018 = vunpack.c.h.b16 %v1937
    %v2019 = vunpack.c.l.b16 %v1938
    %v2020 = vunpack.c.h.b16 %v1938
    %v2021 = vunpack.c.l.b16 %v1939
    %v2022 = vunpack.c.h.b16 %v1939
    %v2023 = vunpack.c.l.b16 %v1940
    %v2024 = vunpack.c.h.b16 %v1940
    %v2025 = vunpack.c.l.b16 %v1941
    %v2026 = vunpack.c.h.b16 %v1941
    %v2027 = vunpack.c.l.b16 %v1942
    %v2028 = vunpack.c.h.b16 %v1942
    %v2029 = vunpack.c.l.b16 %v1943
    %v2030 = vunpack.c.h.b16 %v1943
    %v2031 = vunpack.c.l.b16 %v1944
    %v2032 = vunpack.c.h.b16 %v1944
    %v2033 = vunpack.c.l.b16 %v1945
    %v2034 = vunpack.c.h.b16 %v1945
    %v2035 = vunpack.c.l.b16 %v1946
    %v2036 = vunpack.c.h.b16 %v1946
    %v2037 = vunpack.c.l.b16 %v1947
    %v2038 = vunpack.c.h.b16 %v1947
    %v2039 = vunpack.c.l.b16 %v1948
    %v2040 = vunpack.c.h.b16 %v1948
    %v2041 = vunpack.c.l.b16 %v1949
    %v2042 = vunpack.c.h.b16 %v1949
    %v2043 = vunpack.c.l.b16 %v1950
    %v2044 = vunpack.c.h.b16 %v1950
    %v2045 = vunpack.c.l.b16 %v1951
    %v2046 = vunpack.c.h.b16 %v1951
    %v2047 = vunpack.c.l.b16 %v1952
    %v2048 = vunpack.c.h.b16 %v1952
    %v2049 = vpack.c.b16 %v1989, %v1985
    %v2050 = vpack.c.b16 %v1990, %v1986
    %v2051 = vpack.c.b16 %v1991, %v1987
    %v2052 = vpack.c.b16 %v1992, %v1988
    %v2053 = vpack.c.b16 %v1997, %v1993
    %v2054 = vpack.c.b16 %v1998, %v1994
    %v2055 = vpack.c.b16 %v1999, %v1995
    %v2056 = vpack.c.b16 %v2000, %v1996
    %v2057 = vpack.c.b16 %v2005, %v2001
    %v2058 = vpack.c.b16 %v2006, %v2002
    %v2059 = vpack.c.b16 %v2007, %v2003
    %v2060 = vpack.c.b16 %v2008, %v2004
    %v2061 = vpack.c.b16 %v2013, %v2009
    %v2062 = vpack.c.b16 %v2014, %v2010
    %v2063 = vpack.c.b16 %v2015, %v2011
    %v2064 = vpack.c.b16 %v2016, %v2012
    %v2065 = vpack.c.b16 %v2021, %v2017
    %v2066 = vpack.c.b16 %v2022, %v2018
    %v2067 = vpack.c.b16 %v2023, %v2019
    %v2068 = vpack.c.b16 %v2024, %v2020
    %v2069 = vpack.c.b16 %v2029, %v2025
    %v2070 = vpack.c.b16 %v2030, %v2026
    %v2071 = vpack.c.b16 %v2031, %v2027
    %v2072 = vpack.c.b16 %v2032, %v2028
    %v2073 = vpack.c.b16 %v2037, %v2033
    %v2074 = vpack.c.b16 %v2038, %v2034
    %v2075 = vpack.c.b16 %v2039, %v2035
    %v2076 = vpack.c.b16 %v2040, %v2036
    %v2077 = vpack.c.b16 %v2045, %v2041
    %v2078 = vpack.c.b16 %v2046, %v2042
    %v2079 = vpack.c.b16 %v2047, %v2043
    %v2080 = vpack.c.b16 %v2048, %v2044
    %2113 = vmatprep.subr.bf16.mxu0 %v2078
    %2114 = vmatpush1.bf16.msra.mxu0 %v2077
    %2115 = vmatprep.subr.bf16.mxu0 %v2074
    %2116 = vmatpush1.bf16.msra.mxu0 %v2073
    %2117 = vmatprep.subr.bf16.mxu0 %v2070
    %2118 = vmatpush1.bf16.msra.mxu0 %v2069
    %2119 = vmatprep.subr.bf16.mxu0 %v2066
    %2120 = vmatpush1.bf16.msra.mxu0 %v2065
    %2121 = vmatprep.subr.bf16.mxu0 %v2062
    %2122 = vmatpush1.bf16.msra.mxu0 %v2061
    %2123 = vmatprep.subr.bf16.mxu0 %v2058
    %2124 = vmatpush1.bf16.msra.mxu0 %v2057
    %2125 = vmatprep.subr.bf16.mxu0 %v2054
    %2126 = vmatpush1.bf16.msra.mxu0 %v2053
    %2127 = vmatprep.subr.bf16.mxu0 %v2050
    %2128 = vmatpush1.bf16.msra.mxu0 %v2049
    %2129 = vmatprep.subr.bf16.mxu0 0
    %2130 = vmatpush2.bf16.msra.mxu0 0
    %2131 = vmatprep.subr.bf16.mxu0 0
    %2132 = vmatpush2.bf16.msra.mxu0 0
    %2133 = vmatprep.subr.bf16.mxu0 0
    %2134 = vmatpush2.bf16.msra.mxu0 0
    %2135 = vmatprep.subr.bf16.mxu0 0
    %2136 = vmatpush2.bf16.msra.mxu0 0
    %2137 = vmatprep.subr.bf16.mxu0 0
    %2138 = vmatpush2.bf16.msra.mxu0 0
    %2139 = vmatprep.subr.bf16.mxu0 0
    %2140 = vmatpush2.bf16.msra.mxu0 0
    %2141 = vmatprep.subr.bf16.mxu0 0
    %2142 = vmatpush2.bf16.msra.mxu0 0
    %2143 = vmatprep.subr.bf16.mxu0 0
    %2144 = vmatpush2.bf16.msra.mxu0 0
    %2145 = vmatprep.mubr.bf16.mxu0 0
    %2146 = vmatmul.mubr.bf16.gmra.mxu0 %v1920
    %v2147 = vpop.f32.mrf.mxu0
    %v2148 = vadd.f32 0.0, %v2147
    %v2149 = vpop.f32.mrf.mxu0
    %v2150 = vadd.f32 0.0, %v2149
    %v2151 = vpop.f32.mrf.mxu0
    %v2152 = vpop.f32.mrf.mxu0
    %2153 = vdwg.mxu0
    %2154 = vmatprep.subr.bf16.mxu0 %v2080
    %2155 = vmatpush1.bf16.msra.mxu0 %v2079
    %2156 = vmatprep.subr.bf16.mxu0 %v2076
    %2157 = vmatpush1.bf16.msra.mxu0 %v2075
    %2158 = vmatprep.subr.bf16.mxu0 %v2072
    %2159 = vmatpush1.bf16.msra.mxu0 %v2071
    %2160 = vmatprep.subr.bf16.mxu0 %v2068
    %2161 = vmatpush1.bf16.msra.mxu0 %v2067
    %2162 = vmatprep.subr.bf16.mxu0 %v2064
    %2163 = vmatpush1.bf16.msra.mxu0 %v2063
    %2164 = vmatprep.subr.bf16.mxu0 %v2060
    %2165 = vmatpush1.bf16.msra.mxu0 %v2059
    %2166 = vmatprep.subr.bf16.mxu0 %v2056
    %2167 = vmatpush1.bf16.msra.mxu0 %v2055
    %2168 = vmatprep.subr.bf16.mxu0 %v2052
    %2169 = vmatpush1.bf16.msra.mxu0 %v2051
    %2170 = vmatprep.subr.bf16.mxu0 0
    %2171 = vmatpush2.bf16.msra.mxu0 0
    %2172 = vmatprep.subr.bf16.mxu0 0
    %2173 = vmatpush2.bf16.msra.mxu0 0
    %2174 = vmatprep.subr.bf16.mxu0 0
    %2175 = vmatpush2.bf16.msra.mxu0 0
    %2176 = vmatprep.subr.bf16.mxu0 0
    %2177 = vmatpush2.bf16.msra.mxu0 0
    %2178 = vmatprep.subr.bf16.mxu0 0
    %2179 = vmatpush2.bf16.msra.mxu0 0
    %2180 = vmatprep.subr.bf16.mxu0 0
    %2181 = vmatpush2.bf16.msra.mxu0 0
    %2182 = vmatprep.subr.bf16.mxu0 0
    %2183 = vmatpush2.bf16.msra.mxu0 0
    %2184 = vmatprep.subr.bf16.mxu0 0
    %2185 = vmatpush2.bf16.msra.mxu0 0
    %2186 = vmatprep.mubr.bf16.mxu0 0
    %2187 = vmatmul.mubr.bf16.gmra.mxu0 %v1920
    %v2188 = vpop.f32.mrf.mxu0
    %v2189 = vadd.f32 0.0, %v2188
    %v2190 = vpop.f32.mrf.mxu0
    %v2191 = vadd.f32 0.0, %v2190
    %v2192 = vpop.f32.mrf.mxu0
    %v2193 = vpop.f32.mrf.mxu0
    %2194 = vdwg.mxu0
    %v2195 = vadd.f32 %v1914, %v2148
    %v2196 = vadd.f32 %v1915, %v2150
    %v2197 = vadd.f32 %v1916, %v2189
    %v2198 = vadd.f32 %v1917, %v2191
    %v2199 = vmul.f32 %v2195, 0.5
    %v2200 = vtanh.pop %v2199
    %v2201 = vmul.f32 %v2200, 0.5
    %v2202 = vadd.f32 %v2201, 0.5
    %v2203 = vmul.f32 %v2196, 0.5
    %v2204 = vtanh.pop %v2203
    %v2205 = vmul.f32 %v2204, 0.5
    %v2206 = vadd.f32 %v2205, 0.5
    %v2207 = vtanh.pop %v2197
    %v2208 = vmul.f32 %v2198, 0.5
    %v2209 = vtanh.pop %v2208
    %v2210 = vmul.f32 %v2209, 0.5
    %v2211 = vadd.f32 %v2210, 0.5
    %v2212 = vmul.f32 %v2206, %v1919
    %v2213 = vmul.f32 %v2202, %v2207
    %v2214 = vadd.f32 %v2212, %v2213
    %v2215 = vtanh.pop %v2214
    %v2216 = vmul.f32 %v2211, %v2215
    %2217 = vst [vmem:[#allocation3] sm:$0xff] %v2214
    %2218 = vst [vmem:[#allocation2] sm:$0xff] %v2216
    %v2219 = vpack.c.bf16 %v2216, %v2216
    %s2220 = scalar_lea.vmem [#allocation9], 24
    %2221 = vst [vmem:[%s2220] sm:$0xf] %v2219
    %s2222 = scalar_lea.vmem [#allocation4], 112
    %v2223 = vld [vmem:[%s2222] sm:$0xff]
    %v2224 = vld [vmem:[%s2222 + $0x8] sm:$0xff]
    %v2225 = vunpack.c.l.bf16 %v2223
    %v2226 = vunpack.c.h.bf16 %v2223
    %v2227 = vunpack.c.l.bf16 %v2224
    %v2228 = vunpack.c.h.bf16 %v2224
    %v2229 = vld [vmem:[#allocation2] sm:$0xff]
    %v2230 = vld [vmem:[#allocation3] sm:$0xff]
    %v2231 = vpack.c.bf16 %v2229, %v2229
    %v2232 = vld [vmem:[#allocation7] sm:$0xff]
    %v2233 = vld [vmem:[#allocation7 + $0x8] sm:$0xff]
    %v2234 = vld [vmem:[#allocation7 + $0x10] sm:$0xff]
    %v2235 = vld [vmem:[#allocation7 + $0x18] sm:$0xff]
    %v2236 = vld [vmem:[#allocation7 + $0x20] sm:$0xff]
    %v2237 = vld [vmem:[#allocation7 + $0x28] sm:$0xff]
    %v2238 = vld [vmem:[#allocation7 + $0x30] sm:$0xff]
    %v2239 = vld [vmem:[#allocation7 + $0x38] sm:$0xff]
    %v2240 = vld [vmem:[#allocation7 + $0x40] sm:$0xff]
    %v2241 = vld [vmem:[#allocation7 + $0x48] sm:$0xff]
    %v2242 = vld [vmem:[#allocation7 + $0x50] sm:$0xff]
    %v2243 = vld [vmem:[#allocation7 + $0x58] sm:$0xff]
    %v2244 = vld [vmem:[#allocation7 + $0x60] sm:$0xff]
    %v2245 = vld [vmem:[#allocation7 + $0x68] sm:$0xff]
    %v2246 = vld [vmem:[#allocation7 + $0x70] sm:$0xff]
    %v2247 = vld [vmem:[#allocation7 + $0x78] sm:$0xff]
    %v2248 = vld [vmem:[#allocation7 + $0x80] sm:$0xff]
    %v2249 = vld [vmem:[#allocation7 + $0x88] sm:$0xff]
    %v2250 = vld [vmem:[#allocation7 + $0x90] sm:$0xff]
    %v2251 = vld [vmem:[#allocation7 + $0x98] sm:$0xff]
    %v2252 = vld [vmem:[#allocation7 + $0xa0] sm:$0xff]
    %v2253 = vld [vmem:[#allocation7 + $0xa8] sm:$0xff]
    %v2254 = vld [vmem:[#allocation7 + $0xb0] sm:$0xff]
    %v2255 = vld [vmem:[#allocation7 + $0xb8] sm:$0xff]
    %v2256 = vld [vmem:[#allocation7 + $0xc0] sm:$0xff]
    %v2257 = vld [vmem:[#allocation7 + $0xc8] sm:$0xff]
    %v2258 = vld [vmem:[#allocation7 + $0xd0] sm:$0xff]
    %v2259 = vld [vmem:[#allocation7 + $0xd8] sm:$0xff]
    %v2260 = vld [vmem:[#allocation7 + $0xe0] sm:$0xff]
    %v2261 = vld [vmem:[#allocation7 + $0xe8] sm:$0xff]
    %v2262 = vld [vmem:[#allocation7 + $0xf0] sm:$0xff]
    %v2263 = vld [vmem:[#allocation7 + $0xf8] sm:$0xff]
    %v2296 = vunpack.c.l.b16 %v2232
    %v2297 = vunpack.c.h.b16 %v2232
    %v2298 = vunpack.c.l.b16 %v2233
    %v2299 = vunpack.c.h.b16 %v2233
    %v2300 = vunpack.c.l.b16 %v2234
    %v2301 = vunpack.c.h.b16 %v2234
    %v2302 = vunpack.c.l.b16 %v2235
    %v2303 = vunpack.c.h.b16 %v2235
    %v2304 = vunpack.c.l.b16 %v2236
    %v2305 = vunpack.c.h.b16 %v2236
    %v2306 = vunpack.c.l.b16 %v2237
    %v2307 = vunpack.c.h.b16 %v2237
    %v2308 = vunpack.c.l.b16 %v2238
    %v2309 = vunpack.c.h.b16 %v2238
    %v2310 = vunpack.c.l.b16 %v2239
    %v2311 = vunpack.c.h.b16 %v2239
    %v2312 = vunpack.c.l.b16 %v2240
    %v2313 = vunpack.c.h.b16 %v2240
    %v2314 = vunpack.c.l.b16 %v2241
    %v2315 = vunpack.c.h.b16 %v2241
    %v2316 = vunpack.c.l.b16 %v2242
    %v2317 = vunpack.c.h.b16 %v2242
    %v2318 = vunpack.c.l.b16 %v2243
    %v2319 = vunpack.c.h.b16 %v2243
    %v2320 = vunpack.c.l.b16 %v2244
    %v2321 = vunpack.c.h.b16 %v2244
    %v2322 = vunpack.c.l.b16 %v2245
    %v2323 = vunpack.c.h.b16 %v2245
    %v2324 = vunpack.c.l.b16 %v2246
    %v2325 = vunpack.c.h.b16 %v2246
    %v2326 = vunpack.c.l.b16 %v2247
    %v2327 = vunpack.c.h.b16 %v2247
    %v2328 = vunpack.c.l.b16 %v2248
    %v2329 = vunpack.c.h.b16 %v2248
    %v2330 = vunpack.c.l.b16 %v2249
    %v2331 = vunpack.c.h.b16 %v2249
    %v2332 = vunpack.c.l.b16 %v2250
    %v2333 = vunpack.c.h.b16 %v2250
    %v2334 = vunpack.c.l.b16 %v2251
    %v2335 = vunpack.c.h.b16 %v2251
    %v2336 = vunpack.c.l.b16 %v2252
    %v2337 = vunpack.c.h.b16 %v2252
    %v2338 = vunpack.c.l.b16 %v2253
    %v2339 = vunpack.c.h.b16 %v2253
    %v2340 = vunpack.c.l.b16 %v2254
    %v2341 = vunpack.c.h.b16 %v2254
    %v2342 = vunpack.c.l.b16 %v2255
    %v2343 = vunpack.c.h.b16 %v2255
    %v2344 = vunpack.c.l.b16 %v2256
    %v2345 = vunpack.c.h.b16 %v2256
    %v2346 = vunpack.c.l.b16 %v2257
    %v2347 = vunpack.c.h.b16 %v2257
    %v2348 = vunpack.c.l.b16 %v2258
    %v2349 = vunpack.c.h.b16 %v2258
    %v2350 = vunpack.c.l.b16 %v2259
    %v2351 = vunpack.c.h.b16 %v2259
    %v2352 = vunpack.c.l.b16 %v2260
    %v2353 = vunpack.c.h.b16 %v2260
    %v2354 = vunpack.c.l.b16 %v2261
    %v2355 = vunpack.c.h.b16 %v2261
    %v2356 = vunpack.c.l.b16 %v2262
    %v2357 = vunpack.c.h.b16 %v2262
    %v2358 = vunpack.c.l.b16 %v2263
    %v2359 = vunpack.c.h.b16 %v2263
    %v2360 = vpack.c.b16 %v2300, %v2296
    %v2361 = vpack.c.b16 %v2301, %v2297
    %v2362 = vpack.c.b16 %v2302, %v2298
    %v2363 = vpack.c.b16 %v2303, %v2299
    %v2364 = vpack.c.b16 %v2308, %v2304
    %v2365 = vpack.c.b16 %v2309, %v2305
    %v2366 = vpack.c.b16 %v2310, %v2306
    %v2367 = vpack.c.b16 %v2311, %v2307
    %v2368 = vpack.c.b16 %v2316, %v2312
    %v2369 = vpack.c.b16 %v2317, %v2313
    %v2370 = vpack.c.b16 %v2318, %v2314
    %v2371 = vpack.c.b16 %v2319, %v2315
    %v2372 = vpack.c.b16 %v2324, %v2320
    %v2373 = vpack.c.b16 %v2325, %v2321
    %v2374 = vpack.c.b16 %v2326, %v2322
    %v2375 = vpack.c.b16 %v2327, %v2323
    %v2376 = vpack.c.b16 %v2332, %v2328
    %v2377 = vpack.c.b16 %v2333, %v2329
    %v2378 = vpack.c.b16 %v2334, %v2330
    %v2379 = vpack.c.b16 %v2335, %v2331
    %v2380 = vpack.c.b16 %v2340, %v2336
    %v2381 = vpack.c.b16 %v2341, %v2337
    %v2382 = vpack.c.b16 %v2342, %v2338
    %v2383 = vpack.c.b16 %v2343, %v2339
    %v2384 = vpack.c.b16 %v2348, %v2344
    %v2385 = vpack.c.b16 %v2349, %v2345
    %v2386 = vpack.c.b16 %v2350, %v2346
    %v2387 = vpack.c.b16 %v2351, %v2347
    %v2388 = vpack.c.b16 %v2356, %v2352
    %v2389 = vpack.c.b16 %v2357, %v2353
    %v2390 = vpack.c.b16 %v2358, %v2354
    %v2391 = vpack.c.b16 %v2359, %v2355
    %2424 = vmatprep.subr.bf16.mxu0 %v2389
    %2425 = vmatpush1.bf16.msra.mxu0 %v2388
    %2426 = vmatprep.subr.bf16.mxu0 %v2385
    %2427 = vmatpush1.bf16.msra.mxu0 %v2384
    %2428 = vmatprep.subr.bf16.mxu0 %v2381
    %2429 = vmatpush1.bf16.msra.mxu0 %v2380
    %2430 = vmatprep.subr.bf16.mxu0 %v2377
    %2431 = vmatpush1.bf16.msra.mxu0 %v2376
    %2432 = vmatprep.subr.bf16.mxu0 %v2373
    %2433 = vmatpush1.bf16.msra.mxu0 %v2372
    %2434 = vmatprep.subr.bf16.mxu0 %v2369
    %2435 = vmatpush1.bf16.msra.mxu0 %v2368
    %2436 = vmatprep.subr.bf16.mxu0 %v2365
    %2437 = vmatpush1.bf16.msra.mxu0 %v2364
    %2438 = vmatprep.subr.bf16.mxu0 %v2361
    %2439 = vmatpush1.bf16.msra.mxu0 %v2360
    %2440 = vmatprep.subr.bf16.mxu0 0
    %2441 = vmatpush2.bf16.msra.mxu0 0
    %2442 = vmatprep.subr.bf16.mxu0 0
    %2443 = vmatpush2.bf16.msra.mxu0 0
    %2444 = vmatprep.subr.bf16.mxu0 0
    %2445 = vmatpush2.bf16.msra.mxu0 0
    %2446 = vmatprep.subr.bf16.mxu0 0
    %2447 = vmatpush2.bf16.msra.mxu0 0
    %2448 = vmatprep.subr.bf16.mxu0 0
    %2449 = vmatpush2.bf16.msra.mxu0 0
    %2450 = vmatprep.subr.bf16.mxu0 0
    %2451 = vmatpush2.bf16.msra.mxu0 0
    %2452 = vmatprep.subr.bf16.mxu0 0
    %2453 = vmatpush2.bf16.msra.mxu0 0
    %2454 = vmatprep.subr.bf16.mxu0 0
    %2455 = vmatpush2.bf16.msra.mxu0 0
    %2456 = vmatprep.mubr.bf16.mxu0 0
    %2457 = vmatmul.mubr.bf16.gmra.mxu0 %v2231
    %v2458 = vpop.f32.mrf.mxu0
    %v2459 = vadd.f32 0.0, %v2458
    %v2460 = vpop.f32.mrf.mxu0
    %v2461 = vadd.f32 0.0, %v2460
    %v2462 = vpop.f32.mrf.mxu0
    %v2463 = vpop.f32.mrf.mxu0
    %2464 = vdwg.mxu0
    %2465 = vmatprep.subr.bf16.mxu0 %v2391
    %2466 = vmatpush1.bf16.msra.mxu0 %v2390
    %2467 = vmatprep.subr.bf16.mxu0 %v2387
    %2468 = vmatpush1.bf16.msra.mxu0 %v2386
    %2469 = vmatprep.subr.bf16.mxu0 %v2383
    %2470 = vmatpush1.bf16.msra.mxu0 %v2382
    %2471 = vmatprep.subr.bf16.mxu0 %v2379
    %2472 = vmatpush1.bf16.msra.mxu0 %v2378
    %2473 = vmatprep.subr.bf16.mxu0 %v2375
    %2474 = vmatpush1.bf16.msra.mxu0 %v2374
    %2475 = vmatprep.subr.bf16.mxu0 %v2371
    %2476 = vmatpush1.bf16.msra.mxu0 %v2370
    %2477 = vmatprep.subr.bf16.mxu0 %v2367
    %2478 = vmatpush1.bf16.msra.mxu0 %v2366
    %2479 = vmatprep.subr.bf16.mxu0 %v2363
    %2480 = vmatpush1.bf16.msra.mxu0 %v2362
    %2481 = vmatprep.subr.bf16.mxu0 0
    %2482 = vmatpush2.bf16.msra.mxu0 0
    %2483 = vmatprep.subr.bf16.mxu0 0
    %2484 = vmatpush2.bf16.msra.mxu0 0
    %2485 = vmatprep.subr.bf16.mxu0 0
    %2486 = vmatpush2.bf16.msra.mxu0 0
    %2487 = vmatprep.subr.bf16.mxu0 0
    %2488 = vmatpush2.bf16.msra.mxu0 0
    %2489 = vmatprep.subr.bf16.mxu0 0
    %2490 = vmatpush2.bf16.msra.mxu0 0
    %2491 = vmatprep.subr.bf16.mxu0 0
    %2492 = vmatpush2.bf16.msra.mxu0 0
    %2493 = vmatprep.subr.bf16.mxu0 0
    %2494 = vmatpush2.bf16.msra.mxu0 0
    %2495 = vmatprep.subr.bf16.mxu0 0
    %2496 = vmatpush2.bf16.msra.mxu0 0
    %2497 = vmatprep.mubr.bf16.mxu0 0
    %2498 = vmatmul.mubr.bf16.gmra.mxu0 %v2231
    %v2499 = vpop.f32.mrf.mxu0
    %v2500 = vadd.f32 0.0, %v2499
    %v2501 = vpop.f32.mrf.mxu0
    %v2502 = vadd.f32 0.0, %v2501
    %v2503 = vpop.f32.mrf.mxu0
    %v2504 = vpop.f32.mrf.mxu0
    %2505 = vdwg.mxu0
    %v2506 = vadd.f32 %v2225, %v2459
    %v2507 = vadd.f32 %v2226, %v2461
    %v2508 = vadd.f32 %v2227, %v2500
    %v2509 = vadd.f32 %v2228, %v2502
    %v2510 = vmul.f32 %v2506, 0.5
    %v2511 = vtanh.pop %v2510
    %v2512 = vmul.f32 %v2511, 0.5
    %v2513 = vadd.f32 %v2512, 0.5
    %v2514 = vmul.f32 %v2507, 0.5
    %v2515 = vtanh.pop %v2514
    %v2516 = vmul.f32 %v2515, 0.5
    %v2517 = vadd.f32 %v2516, 0.5
    %v2518 = vtanh.pop %v2508
    %v2519 = vmul.f32 %v2509, 0.5
    %v2520 = vtanh.pop %v2519
    %v2521 = vmul.f32 %v2520, 0.5
    %v2522 = vadd.f32 %v2521, 0.5
    %v2523 = vmul.f32 %v2517, %v2230
    %v2524 = vmul.f32 %v2513, %v2518
    %v2525 = vadd.f32 %v2523, %v2524
    %v2526 = vtanh.pop %v2525
    %v2527 = vmul.f32 %v2522, %v2526
    %2528 = vst [vmem:[#allocation3] sm:$0xff] %v2525
    %2529 = vst [vmem:[#allocation2] sm:$0xff] %v2527
    %v2530 = vpack.c.bf16 %v2527, %v2527
    %s2531 = scalar_lea.vmem [#allocation9], 28
    %2532 = vst [vmem:[%s2531] sm:$0xf] %v2530
    // Predicated region
    $region22: #{tpu_custom_call.1} parent=1 // pred_check
      _
    $region23: #{tpu_custom_call.1} parent=1 // pred_check_branch
      %2534 = sbr.rel (0) target = $region25
    $region24: #{tpu_custom_call.1} parent=1 // pred_region
      %s2536 = ssub.s32 512, 512
      %2537 = vsyncadd [#allocation6], %s2536
      %s2538 = sshll.u32 [#allocation9], 4
      %s2539 = int_to_ptr.vmem [resolvable:$true] %s2538
      %2544 = dma.vmem_to_hbm [thread:$0]  %s2539, 512, %s2, [#allocation6], 64, 64, 4
    $region25: #{tpu_custom_call.1} parent=1 // pred_fallthru
      _
    // Predicated region
    $region26: #{tpu_custom_call.1} parent=1 // pred_check
      _
    $region27: #{tpu_custom_call.1} parent=1 // pred_check_branch
      %2546 = sbr.rel (0) target = $region29
    $region28: #{tpu_custom_call.1} parent=1 // pred_region
      %2547 = dma.done [#allocation6], 512
    $region29: #{tpu_custom_call.1} parent=1 // pred_fallthru
      _
    %2548 = vsyncpa [#allocation5], 1
    %2549 = vsyncpa [#allocation8], 1
    %2550 = vsyncpa [#allocation6], 1

</llo_original>
